<compile_context>
chip_gen: v7x
topology: tpu7x:2x2x1
jax: 0.10.0
libtpu: 0.0.40
codegen_flags: <defaults>
</compile_context>

<pallas_src>
from collections import OrderedDict
from functools import partial

import jax
import jax.numpy as jnp
import numpy as np
from jax.experimental import pallas as pl
from jax.experimental.pallas import tpu as pltpu


KSIZE = 5          # depthwise kernel size
PAD = 2            # spatial padding
NTAPS = KSIZE * KSIZE
NACC = 4           # partial accumulators in the tap loop (VALU ILP)


def _round_up(x, m):
    return (x + m - 1) // m * m


def pick_tap_dtype():
    """bf16 tap loop on v6e/v7x (bf16 VALU, halves x HBM/VMEM); f32 elsewhere."""
    try:
        kind = jax.devices()[0].device_kind.lower()
    except Exception:
        return jnp.float32
    if "tpu" not in kind:
        return jnp.float32
    if any(v in kind for v in ("v2", "v3", "v4", "v5")):
        return jnp.float32          # no bf16 VPU on these generations
    return jnp.bfloat16


# -----------------------------------------------------------------------------
# Kernel: one grid step = (batch element n, head h)   (NH innermost)
# -----------------------------------------------------------------------------
def head_kernel(x_ref, dw_ref, b1_ref, pw_ref, b2_ref, fw_ref, fb_ref, o_ref,
                *, wp, l_out):
    """Channel-major layout (channels on sublanes, flattened spatial on lanes).

      x_ref  : (C, Lp)      tap-dtype  zero-padded rows flattened, stride wp
      dw_ref : (C, 25)      tap-dtype  depthwise 5x5 weights * BN1 scale (folded)
      b1_ref : (C, 1)       f32        folded BN1 bias
      pw_ref : (Ch, C)      bf16       pointwise weights^T * BN2 scale (folded)
      b2_ref : (Ch, 1)      f32        folded BN2 bias
      fw_ref : (Kp, Ch)     bf16       classifier weights^T (K zero-padded to Kp)
      fb_ref : (Kp, 1)      f32        classifier bias (zero-padded)
      o_ref  : (Kp, l_out)  f32        logits, channel-major & lane-dense
    """
    # ---- depthwise 5x5 (BN1 scale folded into dw).  Per-tap ref slices keep
    # the lane shift on the load path; 4 partial f32 accumulators give the
    # scheduler ILP across the 25 mul+add pairs.
    parts = [None] * NACC
    for t in range(NTAPS):
        dy, dx = divmod(t, KSIZE)
        s = dy * wp + dx
        prod = (x_ref[:, s:s + l_out] * dw_ref[:, t:t + 1]).astype(jnp.float32)
        j = t % NACC
        parts[j] = prod if parts[j] is None else parts[j] + prod
    acc = (parts[0] + parts[1]) + (parts[2] + parts[3]) + b1_ref[...]
    y = jnp.maximum(acc, 0.0).astype(jnp.bfloat16)              # (C, l_out)

    # ---- pointwise 1x1 conv (BN2 scale folded into pw), transposed on MXU
    y2 = jnp.dot(pw_ref[...], y, preferred_element_type=jnp.float32)  # (Ch, l_out)
    y2 = jnp.maximum(y2 + b2_ref[...], 0.0).astype(jnp.bfloat16)

    # ---- final 1x1 classifier (+bias): lane-dense (Kp, l_out) result/store
    out = jnp.dot(fw_ref[...], y2, preferred_element_type=jnp.float32) + fb_ref[...]
    o_ref[...] = out


# -----------------------------------------------------------------------------
# Parameters (synthetic, deterministic) + eval-mode BN folding / packing
# -----------------------------------------------------------------------------
def make_head_params(key, decoder_channels, head_channels, num_classes, class_key):
    params = OrderedDict()
    for i, ck in enumerate(class_key):
        k = jax.random.fold_in(key, i)
        ks = jax.random.split(k, 12)
        C, Ch, K = decoder_channels, head_channels, num_classes[i]
        params[ck] = dict(
            dw=jax.random.normal(ks[0], (KSIZE, KSIZE, C), jnp.float32) * 0.1,
            g1=1.0 + 0.1 * jax.random.normal(ks[1], (C,), jnp.float32),
            be1=0.1 * jax.random.normal(ks[2], (C,), jnp.float32),
            m1=0.05 * jax.random.normal(ks[3], (C,), jnp.float32),
            v1=1.0 + 0.1 * jax.random.uniform(ks[4], (C,), jnp.float32),
            pw=jax.random.normal(ks[5], (C, Ch), jnp.float32) / np.sqrt(C),
            g2=1.0 + 0.1 * jax.random.normal(ks[6], (Ch,), jnp.float32),
            be2=0.1 * jax.random.normal(ks[7], (Ch,), jnp.float32),
            m2=0.05 * jax.random.normal(ks[8], (Ch,), jnp.float32),
            v2=1.0 + 0.1 * jax.random.uniform(ks[9], (Ch,), jnp.float32),
            fw=jax.random.normal(ks[10], (Ch, K), jnp.float32) / np.sqrt(Ch),
            fb=0.1 * jax.random.normal(ks[11], (K,), jnp.float32),
        )
    return params


def fold_bn(gamma, beta, mean, var, eps=1e-5):
    scale = gamma / jnp.sqrt(var + eps)
    return scale, beta - mean * scale


def pack_head_params(params, tap_dtype):
    """Fold eval-mode BN into the conv weights and stack heads along axis 0.

    Called ONCE ahead of time (hoisted out of the forward path)."""
    k_max = max(p["fw"].shape[1] for p in params.values())
    kp = _round_up(max(k_max, 8), 8)            # pad classifier outputs to a sublane tile
    dw_l, b1_l, pw_l, b2_l, fw_l, fb_l = [], [], [], [], [], []
    for p in params.values():
        s1, b1 = fold_bn(p["g1"], p["be1"], p["m1"], p["v1"])
        s2, b2 = fold_bn(p["g2"], p["be2"], p["m2"], p["v2"])
        C = p["dw"].shape[-1]
        Ch, K = p["fw"].shape
        # (5,5,C)*scale -> (25, C) -> (C, 25): channels on sublanes, taps on lanes.
        dw_l.append((p["dw"] * s1).reshape(NTAPS, C).T.astype(tap_dtype))    # (C, 25)
        b1_l.append(b1.reshape(C, 1))                                        # (C, 1)
        pw_l.append((p["pw"] * s2[None, :]).T.astype(jnp.bfloat16))          # (Ch, C)
        b2_l.append(b2.reshape(Ch, 1))                                       # (Ch, 1)
        fw_l.append(jnp.pad(p["fw"].T, ((0, kp - K), (0, 0))).astype(jnp.bfloat16))
        fb_l.append(jnp.pad(p["fb"], (0, kp - K)).reshape(kp, 1))
    stack = lambda xs: jnp.stack(xs, axis=0)
    return (stack(dw_l), stack(b1_l), stack(pw_l), stack(b2_l),
            stack(fw_l), stack(fb_l))


# -----------------------------------------------------------------------------
# Forward (matches Head.forward: OrderedDict{key: (N, K_i, H, W)} in NCHW)
# -----------------------------------------------------------------------------
def build_head_forward(packed, class_key, num_classes):
    dw, b1, pw_t, b2, fw_t, fb = packed
    tap_dtype = dw.dtype
    NH, C, _ = dw.shape
    Ch = pw_t.shape[1]
    Kp = fw_t.shape[1]

    @jax.jit
    def forward(x_nchw):
        N, C_in, H, W = x_nchw.shape
        assert C_in == C
        wp, hp = W + 2 * PAD, H + 2 * PAD
        l_out = _round_up(H * wp, 128)                  # lane-dense output width
        need = (KSIZE - 1) * wp + (KSIZE - 1) + l_out   # max tap read extent
        extra_rows = (need - hp * wp + wp - 1) // wp    # > 0 by construction
        lp = (hp + extra_rows) * wp
        assert lp >= need

        # Single fused pad: spatial padding + zero lane tail in one jnp.pad,
        # then a free contiguous reshape (no second pad, no transposes).
        xp = jnp.pad(x_nchw.astype(tap_dtype),
                     ((0, 0), (0, 0), (PAD, PAD + extra_rows), (PAD, PAD)))
        x_flat = xp.reshape(N, C, lp)

        out = pl.pallas_call(
            partial(head_kernel, wp=wp, l_out=l_out),
            out_shape=jax.ShapeDtypeStruct((N, NH, Kp, l_out), jnp.float32),
            grid_spec=pltpu.PrefetchScalarGridSpec(
                num_scalar_prefetch=0,
                # NH innermost: x's block index is constant along it, so the
                # shared input is DMA'd once per batch element.
                grid=(N, NH),
                in_specs=[
                    pl.BlockSpec((None, C, lp), lambda n, h: (n, 0, 0)),
                    pl.BlockSpec((None, C, NTAPS), lambda n, h: (h, 0, 0)),
                    pl.BlockSpec((None, C, 1), lambda n, h: (h, 0, 0)),
                    pl.BlockSpec((None, Ch, C), lambda n, h: (h, 0, 0)),
                    pl.BlockSpec((None, Ch, 1), lambda n, h: (h, 0, 0)),
                    pl.BlockSpec((None, Kp, Ch), lambda n, h: (h, 0, 0)),
                    pl.BlockSpec((None, Kp, 1), lambda n, h: (h, 0, 0)),
                ],
                out_specs=pl.BlockSpec((None, None, Kp, l_out),
                                       lambda n, h: (n, h, 0, 0)),
            ),
            compiler_params=pltpu.CompilerParams(
                dimension_semantics=("parallel", "arbitrary"),
                vmem_limit_bytes=32 * 1024 * 1024),
        )(x_flat, dw, b1, pw_t, b2, fw_t, fb)

        pred = OrderedDict()
        for i, ck in enumerate(class_key):
            k_i = num_classes[i]
            o = out[:, i, :k_i, :H * wp].reshape(N, k_i, H, wp)[:, :, :, :W]
            pred[ck] = o                                         # already NCHW
        return pred

    return forward


# Pure-f32 reference (exactly the PyTorch eval-mode head; eval-mode BN folding
# is mathematically exact).  The kernel feeds the MXU bf16 inputs (and runs
# bf16 taps on v6e/v7x), so the comparison tolerance below accounts for that
# quantization.
def head_forward_ref(x_nchw, params):
    N, C, H, W = x_nchw.shape
    xp = jnp.pad(x_nchw.astype(jnp.float32),
                 ((0, 0), (0, 0), (PAD, PAD), (PAD, PAD)))
    pred = OrderedDict()
    for ck, p in params.items():
        s1, b1 = fold_bn(p["g1"], p["be1"], p["m1"], p["v1"])
        s2, b2 = fold_bn(p["g2"], p["be2"], p["m2"], p["v2"])
        dw_f = p["dw"] * s1                                      # (5,5,C)
        acc = jnp.zeros((N, C, H, W), jnp.float32) + b1[None, :, None, None]
        for dy in range(KSIZE):
            for dx in range(KSIZE):
                acc = acc + (xp[:, :, dy:dy + H, dx:dx + W]
                             * dw_f[dy, dx][None, :, None, None])
        y = jnp.maximum(acc, 0.0)
        y2 = jnp.einsum("nchw,cd->ndhw", y, p["pw"] * s2[None, :])
        y2 = jnp.maximum(y2 + b2[None, :, None, None], 0.0)
        out = jnp.einsum("ndhw,dk->nkhw", y2, p["fw"])
        pred[ck] = out + p["fb"][None, :, None, None]
    return pred


if __name__ == "__main__":
    decoder_channels = 32
    head_channels = 32
    num_classes = (3, 2)
    class_key = ("semantic", "center")

    key = jax.random.PRNGKey(0)
    kx, kp = jax.random.split(key)
    x = jax.random.normal(kx, (2, decoder_channels, 16, 16), jnp.float32)
    params = make_head_params(kp, decoder_channels, head_channels,
                              num_classes, class_key)

    tap_dtype = pick_tap_dtype()
    packed = pack_head_params(params, tap_dtype)      # folded/packed ONCE (hoisted)
    forward = build_head_forward(packed, class_key, num_classes)

    pred = forward(x)
    pred = {k: jax.block_until_ready(v) for k, v in pred.items()}

    ref = head_forward_ref(x, params)                 # pure f32 (PyTorch-equivalent)
    # Tolerance covers the kernel's bf16 MXU inputs (+ bf16 tap loop on v6e/v7x);
    # real bugs (wrong tap offsets / BN folding) produce O(0.1-1) errors.
    for i, ck in enumerate(class_key):
        assert pred[ck].shape == (2, num_classes[i], 16, 16)
        np.testing.assert_allclose(np.asarray(pred[ck]), np.asarray(ref[ck]),
                                   rtol=5e-2, atol=5e-2)

    print("KERNEL_OK")
</pallas_src>

<mosaic_0001>
module attributes {stable_mosaic.version = 11 : i64} {
  func.func @head_kernel(%arg0: i32, %arg1: i32, %arg2: memref<1x32x480xf32, #tpu.memory_space<vmem>>, %arg3: memref<1x32x25xf32, #tpu.memory_space<vmem>>, %arg4: memref<1x32x1xf32, #tpu.memory_space<vmem>>, %arg5: memref<1x32x32xbf16, #tpu.memory_space<vmem>>, %arg6: memref<1x32x1xf32, #tpu.memory_space<vmem>>, %arg7: memref<1x8x32xbf16, #tpu.memory_space<vmem>>, %arg8: memref<1x8x1xf32, #tpu.memory_space<vmem>>, %arg9: memref<1x1x8x384xf32, #tpu.memory_space<vmem>>) attributes {dimension_semantics = [#tpu.dimension_semantics<parallel>, #tpu.dimension_semantics<arbitrary>], iteration_bounds = array<i64: 2, 2>, scalar_prefetch = 0 : i64, scratch_operands = 0 : i64, tpu.core_type = #tpu.core_type<tc>, window_params = [{transform_indices = @transform_0, window_bounds = array<i64: 1, 32, 480>}, {transform_indices = @transform_1, window_bounds = array<i64: 1, 32, 25>}, {transform_indices = @transform_2, window_bounds = array<i64: 1, 32, 1>}, {transform_indices = @transform_3, window_bounds = array<i64: 1, 32, 32>}, {transform_indices = @transform_4, window_bounds = array<i64: 1, 32, 1>}, {transform_indices = @transform_5, window_bounds = array<i64: 1, 8, 32>}, {transform_indices = @transform_6, window_bounds = array<i64: 1, 8, 1>}, {transform_indices = @transform_7, window_bounds = array<i64: 1, 1, 8, 384>}]} {
    %c0 = arith.constant 0 : index
    %c0_0 = arith.constant 0 : index
    %c0_1 = arith.constant 0 : index
    %0 = vector.load %arg2[%c0, %c0_0, %c0_1] : memref<1x32x480xf32, #tpu.memory_space<vmem>>, vector<1x32x384xf32>
    %1 = vector.shape_cast %0 : vector<1x32x384xf32> to vector<32x384xf32>
    %c0_2 = arith.constant 0 : index
    %c0_3 = arith.constant 0 : index
    %c0_4 = arith.constant 0 : index
    %2 = vector.load %arg3[%c0_2, %c0_3, %c0_4] : memref<1x32x25xf32, #tpu.memory_space<vmem>>, vector<1x32x1xf32>
    %3 = vector.shape_cast %2 : vector<1x32x1xf32> to vector<32x1xf32>
    %4 = vector.broadcast %3 : vector<32x1xf32> to vector<32x384xf32>
    %5 = arith.mulf %1, %4 : vector<32x384xf32>
    %c0_5 = arith.constant 0 : index
    %c0_6 = arith.constant 0 : index
    %c1 = arith.constant 1 : index
    %6 = vector.load %arg2[%c0_5, %c0_6, %c1] : memref<1x32x480xf32, #tpu.memory_space<vmem>>, vector<1x32x384xf32>
    %7 = vector.shape_cast %6 : vector<1x32x384xf32> to vector<32x384xf32>
    %c0_7 = arith.constant 0 : index
    %c0_8 = arith.constant 0 : index
    %c1_9 = arith.constant 1 : index
    %8 = vector.load %arg3[%c0_7, %c0_8, %c1_9] : memref<1x32x25xf32, #tpu.memory_space<vmem>>, vector<1x32x1xf32>
    %9 = vector.shape_cast %8 : vector<1x32x1xf32> to vector<32x1xf32>
    %10 = vector.broadcast %9 : vector<32x1xf32> to vector<32x384xf32>
    %11 = arith.mulf %7, %10 : vector<32x384xf32>
    %c0_10 = arith.constant 0 : index
    %c0_11 = arith.constant 0 : index
    %c2 = arith.constant 2 : index
    %12 = vector.load %arg2[%c0_10, %c0_11, %c2] : memref<1x32x480xf32, #tpu.memory_space<vmem>>, vector<1x32x384xf32>
    %13 = vector.shape_cast %12 : vector<1x32x384xf32> to vector<32x384xf32>
    %c0_12 = arith.constant 0 : index
    %c0_13 = arith.constant 0 : index
    %c2_14 = arith.constant 2 : index
    %14 = vector.load %arg3[%c0_12, %c0_13, %c2_14] : memref<1x32x25xf32, #tpu.memory_space<vmem>>, vector<1x32x1xf32>
    %15 = vector.shape_cast %14 : vector<1x32x1xf32> to vector<32x1xf32>
    %16 = vector.broadcast %15 : vector<32x1xf32> to vector<32x384xf32>
    %17 = arith.mulf %13, %16 : vector<32x384xf32>
    %c0_15 = arith.constant 0 : index
    %c0_16 = arith.constant 0 : index
    %c3 = arith.constant 3 : index
    %18 = vector.load %arg2[%c0_15, %c0_16, %c3] : memref<1x32x480xf32, #tpu.memory_space<vmem>>, vector<1x32x384xf32>
    %19 = vector.shape_cast %18 : vector<1x32x384xf32> to vector<32x384xf32>
    %c0_17 = arith.constant 0 : index
    %c0_18 = arith.constant 0 : index
    %c3_19 = arith.constant 3 : index
    %20 = vector.load %arg3[%c0_17, %c0_18, %c3_19] : memref<1x32x25xf32, #tpu.memory_space<vmem>>, vector<1x32x1xf32>
    %21 = vector.shape_cast %20 : vector<1x32x1xf32> to vector<32x1xf32>
    %22 = vector.broadcast %21 : vector<32x1xf32> to vector<32x384xf32>
    %23 = arith.mulf %19, %22 : vector<32x384xf32>
    %c0_20 = arith.constant 0 : index
    %c0_21 = arith.constant 0 : index
    %c4 = arith.constant 4 : index
    %24 = vector.load %arg2[%c0_20, %c0_21, %c4] : memref<1x32x480xf32, #tpu.memory_space<vmem>>, vector<1x32x384xf32>
    %25 = vector.shape_cast %24 : vector<1x32x384xf32> to vector<32x384xf32>
    %c0_22 = arith.constant 0 : index
    %c0_23 = arith.constant 0 : index
    %c4_24 = arith.constant 4 : index
    %26 = vector.load %arg3[%c0_22, %c0_23, %c4_24] : memref<1x32x25xf32, #tpu.memory_space<vmem>>, vector<1x32x1xf32>
    %27 = vector.shape_cast %26 : vector<1x32x1xf32> to vector<32x1xf32>
    %28 = vector.broadcast %27 : vector<32x1xf32> to vector<32x384xf32>
    %29 = arith.mulf %25, %28 : vector<32x384xf32>
    %30 = arith.addf %5, %29 : vector<32x384xf32>
    %c0_25 = arith.constant 0 : index
    %c0_26 = arith.constant 0 : index
    %c20 = arith.constant 20 : index
    %31 = vector.load %arg2[%c0_25, %c0_26, %c20] : memref<1x32x480xf32, #tpu.memory_space<vmem>>, vector<1x32x384xf32>
    %32 = vector.shape_cast %31 : vector<1x32x384xf32> to vector<32x384xf32>
    %c0_27 = arith.constant 0 : index
    %c0_28 = arith.constant 0 : index
    %c5 = arith.constant 5 : index
    %33 = vector.load %arg3[%c0_27, %c0_28, %c5] : memref<1x32x25xf32, #tpu.memory_space<vmem>>, vector<1x32x1xf32>
    %34 = vector.shape_cast %33 : vector<1x32x1xf32> to vector<32x1xf32>
    %35 = vector.broadcast %34 : vector<32x1xf32> to vector<32x384xf32>
    %36 = arith.mulf %32, %35 : vector<32x384xf32>
    %37 = arith.addf %11, %36 : vector<32x384xf32>
    %c0_29 = arith.constant 0 : index
    %c0_30 = arith.constant 0 : index
    %c21 = arith.constant 21 : index
    %38 = vector.load %arg2[%c0_29, %c0_30, %c21] : memref<1x32x480xf32, #tpu.memory_space<vmem>>, vector<1x32x384xf32>
    %39 = vector.shape_cast %38 : vector<1x32x384xf32> to vector<32x384xf32>
    %c0_31 = arith.constant 0 : index
    %c0_32 = arith.constant 0 : index
    %c6 = arith.constant 6 : index
    %40 = vector.load %arg3[%c0_31, %c0_32, %c6] : memref<1x32x25xf32, #tpu.memory_space<vmem>>, vector<1x32x1xf32>
    %41 = vector.shape_cast %40 : vector<1x32x1xf32> to vector<32x1xf32>
    %42 = vector.broadcast %41 : vector<32x1xf32> to vector<32x384xf32>
    %43 = arith.mulf %39, %42 : vector<32x384xf32>
    %44 = arith.addf %17, %43 : vector<32x384xf32>
    %c0_33 = arith.constant 0 : index
    %c0_34 = arith.constant 0 : index
    %c22 = arith.constant 22 : index
    %45 = vector.load %arg2[%c0_33, %c0_34, %c22] : memref<1x32x480xf32, #tpu.memory_space<vmem>>, vector<1x32x384xf32>
    %46 = vector.shape_cast %45 : vector<1x32x384xf32> to vector<32x384xf32>
    %c0_35 = arith.constant 0 : index
    %c0_36 = arith.constant 0 : index
    %c7 = arith.constant 7 : index
    %47 = vector.load %arg3[%c0_35, %c0_36, %c7] : memref<1x32x25xf32, #tpu.memory_space<vmem>>, vector<1x32x1xf32>
    %48 = vector.shape_cast %47 : vector<1x32x1xf32> to vector<32x1xf32>
    %49 = vector.broadcast %48 : vector<32x1xf32> to vector<32x384xf32>
    %50 = arith.mulf %46, %49 : vector<32x384xf32>
    %51 = arith.addf %23, %50 : vector<32x384xf32>
    %c0_37 = arith.constant 0 : index
    %c0_38 = arith.constant 0 : index
    %c23 = arith.constant 23 : index
    %52 = vector.load %arg2[%c0_37, %c0_38, %c23] : memref<1x32x480xf32, #tpu.memory_space<vmem>>, vector<1x32x384xf32>
    %53 = vector.shape_cast %52 : vector<1x32x384xf32> to vector<32x384xf32>
    %c0_39 = arith.constant 0 : index
    %c0_40 = arith.constant 0 : index
    %c8 = arith.constant 8 : index
    %54 = vector.load %arg3[%c0_39, %c0_40, %c8] : memref<1x32x25xf32, #tpu.memory_space<vmem>>, vector<1x32x1xf32>
    %55 = vector.shape_cast %54 : vector<1x32x1xf32> to vector<32x1xf32>
    %56 = vector.broadcast %55 : vector<32x1xf32> to vector<32x384xf32>
    %57 = arith.mulf %53, %56 : vector<32x384xf32>
    %58 = arith.addf %30, %57 : vector<32x384xf32>
    %c0_41 = arith.constant 0 : index
    %c0_42 = arith.constant 0 : index
    %c24 = arith.constant 24 : index
    %59 = vector.load %arg2[%c0_41, %c0_42, %c24] : memref<1x32x480xf32, #tpu.memory_space<vmem>>, vector<1x32x384xf32>
    %60 = vector.shape_cast %59 : vector<1x32x384xf32> to vector<32x384xf32>
    %c0_43 = arith.constant 0 : index
    %c0_44 = arith.constant 0 : index
    %c9 = arith.constant 9 : index
    %61 = vector.load %arg3[%c0_43, %c0_44, %c9] : memref<1x32x25xf32, #tpu.memory_space<vmem>>, vector<1x32x1xf32>
    %62 = vector.shape_cast %61 : vector<1x32x1xf32> to vector<32x1xf32>
    %63 = vector.broadcast %62 : vector<32x1xf32> to vector<32x384xf32>
    %64 = arith.mulf %60, %63 : vector<32x384xf32>
    %65 = arith.addf %37, %64 : vector<32x384xf32>
    %c0_45 = arith.constant 0 : index
    %c0_46 = arith.constant 0 : index
    %c40 = arith.constant 40 : index
    %66 = vector.load %arg2[%c0_45, %c0_46, %c40] : memref<1x32x480xf32, #tpu.memory_space<vmem>>, vector<1x32x384xf32>
    %67 = vector.shape_cast %66 : vector<1x32x384xf32> to vector<32x384xf32>
    %c0_47 = arith.constant 0 : index
    %c0_48 = arith.constant 0 : index
    %c10 = arith.constant 10 : index
    %68 = vector.load %arg3[%c0_47, %c0_48, %c10] : memref<1x32x25xf32, #tpu.memory_space<vmem>>, vector<1x32x1xf32>
    %69 = vector.shape_cast %68 : vector<1x32x1xf32> to vector<32x1xf32>
    %70 = vector.broadcast %69 : vector<32x1xf32> to vector<32x384xf32>
    %71 = arith.mulf %67, %70 : vector<32x384xf32>
    %72 = arith.addf %44, %71 : vector<32x384xf32>
    %c0_49 = arith.constant 0 : index
    %c0_50 = arith.constant 0 : index
    %c41 = arith.constant 41 : index
    %73 = vector.load %arg2[%c0_49, %c0_50, %c41] : memref<1x32x480xf32, #tpu.memory_space<vmem>>, vector<1x32x384xf32>
    %74 = vector.shape_cast %73 : vector<1x32x384xf32> to vector<32x384xf32>
    %c0_51 = arith.constant 0 : index
    %c0_52 = arith.constant 0 : index
    %c11 = arith.constant 11 : index
    %75 = vector.load %arg3[%c0_51, %c0_52, %c11] : memref<1x32x25xf32, #tpu.memory_space<vmem>>, vector<1x32x1xf32>
    %76 = vector.shape_cast %75 : vector<1x32x1xf32> to vector<32x1xf32>
    %77 = vector.broadcast %76 : vector<32x1xf32> to vector<32x384xf32>
    %78 = arith.mulf %74, %77 : vector<32x384xf32>
    %79 = arith.addf %51, %78 : vector<32x384xf32>
    %c0_53 = arith.constant 0 : index
    %c0_54 = arith.constant 0 : index
    %c42 = arith.constant 42 : index
    %80 = vector.load %arg2[%c0_53, %c0_54, %c42] : memref<1x32x480xf32, #tpu.memory_space<vmem>>, vector<1x32x384xf32>
    %81 = vector.shape_cast %80 : vector<1x32x384xf32> to vector<32x384xf32>
    %c0_55 = arith.constant 0 : index
    %c0_56 = arith.constant 0 : index
    %c12 = arith.constant 12 : index
    %82 = vector.load %arg3[%c0_55, %c0_56, %c12] : memref<1x32x25xf32, #tpu.memory_space<vmem>>, vector<1x32x1xf32>
    %83 = vector.shape_cast %82 : vector<1x32x1xf32> to vector<32x1xf32>
    %84 = vector.broadcast %83 : vector<32x1xf32> to vector<32x384xf32>
    %85 = arith.mulf %81, %84 : vector<32x384xf32>
    %86 = arith.addf %58, %85 : vector<32x384xf32>
    %c0_57 = arith.constant 0 : index
    %c0_58 = arith.constant 0 : index
    %c43 = arith.constant 43 : index
    %87 = vector.load %arg2[%c0_57, %c0_58, %c43] : memref<1x32x480xf32, #tpu.memory_space<vmem>>, vector<1x32x384xf32>
    %88 = vector.shape_cast %87 : vector<1x32x384xf32> to vector<32x384xf32>
    %c0_59 = arith.constant 0 : index
    %c0_60 = arith.constant 0 : index
    %c13 = arith.constant 13 : index
    %89 = vector.load %arg3[%c0_59, %c0_60, %c13] : memref<1x32x25xf32, #tpu.memory_space<vmem>>, vector<1x32x1xf32>
    %90 = vector.shape_cast %89 : vector<1x32x1xf32> to vector<32x1xf32>
    %91 = vector.broadcast %90 : vector<32x1xf32> to vector<32x384xf32>
    %92 = arith.mulf %88, %91 : vector<32x384xf32>
    %93 = arith.addf %65, %92 : vector<32x384xf32>
    %c0_61 = arith.constant 0 : index
    %c0_62 = arith.constant 0 : index
    %c44 = arith.constant 44 : index
    %94 = vector.load %arg2[%c0_61, %c0_62, %c44] : memref<1x32x480xf32, #tpu.memory_space<vmem>>, vector<1x32x384xf32>
    %95 = vector.shape_cast %94 : vector<1x32x384xf32> to vector<32x384xf32>
    %c0_63 = arith.constant 0 : index
    %c0_64 = arith.constant 0 : index
    %c14 = arith.constant 14 : index
    %96 = vector.load %arg3[%c0_63, %c0_64, %c14] : memref<1x32x25xf32, #tpu.memory_space<vmem>>, vector<1x32x1xf32>
    %97 = vector.shape_cast %96 : vector<1x32x1xf32> to vector<32x1xf32>
    %98 = vector.broadcast %97 : vector<32x1xf32> to vector<32x384xf32>
    %99 = arith.mulf %95, %98 : vector<32x384xf32>
    %100 = arith.addf %72, %99 : vector<32x384xf32>
    %c0_65 = arith.constant 0 : index
    %c0_66 = arith.constant 0 : index
    %c60 = arith.constant 60 : index
    %101 = vector.load %arg2[%c0_65, %c0_66, %c60] : memref<1x32x480xf32, #tpu.memory_space<vmem>>, vector<1x32x384xf32>
    %102 = vector.shape_cast %101 : vector<1x32x384xf32> to vector<32x384xf32>
    %c0_67 = arith.constant 0 : index
    %c0_68 = arith.constant 0 : index
    %c15 = arith.constant 15 : index
    %103 = vector.load %arg3[%c0_67, %c0_68, %c15] : memref<1x32x25xf32, #tpu.memory_space<vmem>>, vector<1x32x1xf32>
    %104 = vector.shape_cast %103 : vector<1x32x1xf32> to vector<32x1xf32>
    %105 = vector.broadcast %104 : vector<32x1xf32> to vector<32x384xf32>
    %106 = arith.mulf %102, %105 : vector<32x384xf32>
    %107 = arith.addf %79, %106 : vector<32x384xf32>
    %c0_69 = arith.constant 0 : index
    %c0_70 = arith.constant 0 : index
    %c61 = arith.constant 61 : index
    %108 = vector.load %arg2[%c0_69, %c0_70, %c61] : memref<1x32x480xf32, #tpu.memory_space<vmem>>, vector<1x32x384xf32>
    %109 = vector.shape_cast %108 : vector<1x32x384xf32> to vector<32x384xf32>
    %c0_71 = arith.constant 0 : index
    %c0_72 = arith.constant 0 : index
    %c16 = arith.constant 16 : index
    %110 = vector.load %arg3[%c0_71, %c0_72, %c16] : memref<1x32x25xf32, #tpu.memory_space<vmem>>, vector<1x32x1xf32>
    %111 = vector.shape_cast %110 : vector<1x32x1xf32> to vector<32x1xf32>
    %112 = vector.broadcast %111 : vector<32x1xf32> to vector<32x384xf32>
    %113 = arith.mulf %109, %112 : vector<32x384xf32>
    %114 = arith.addf %86, %113 : vector<32x384xf32>
    %c0_73 = arith.constant 0 : index
    %c0_74 = arith.constant 0 : index
    %c62 = arith.constant 62 : index
    %115 = vector.load %arg2[%c0_73, %c0_74, %c62] : memref<1x32x480xf32, #tpu.memory_space<vmem>>, vector<1x32x384xf32>
    %116 = vector.shape_cast %115 : vector<1x32x384xf32> to vector<32x384xf32>
    %c0_75 = arith.constant 0 : index
    %c0_76 = arith.constant 0 : index
    %c17 = arith.constant 17 : index
    %117 = vector.load %arg3[%c0_75, %c0_76, %c17] : memref<1x32x25xf32, #tpu.memory_space<vmem>>, vector<1x32x1xf32>
    %118 = vector.shape_cast %117 : vector<1x32x1xf32> to vector<32x1xf32>
    %119 = vector.broadcast %118 : vector<32x1xf32> to vector<32x384xf32>
    %120 = arith.mulf %116, %119 : vector<32x384xf32>
    %121 = arith.addf %93, %120 : vector<32x384xf32>
    %c0_77 = arith.constant 0 : index
    %c0_78 = arith.constant 0 : index
    %c63 = arith.constant 63 : index
    %122 = vector.load %arg2[%c0_77, %c0_78, %c63] : memref<1x32x480xf32, #tpu.memory_space<vmem>>, vector<1x32x384xf32>
    %123 = vector.shape_cast %122 : vector<1x32x384xf32> to vector<32x384xf32>
    %c0_79 = arith.constant 0 : index
    %c0_80 = arith.constant 0 : index
    %c18 = arith.constant 18 : index
    %124 = vector.load %arg3[%c0_79, %c0_80, %c18] : memref<1x32x25xf32, #tpu.memory_space<vmem>>, vector<1x32x1xf32>
    %125 = vector.shape_cast %124 : vector<1x32x1xf32> to vector<32x1xf32>
    %126 = vector.broadcast %125 : vector<32x1xf32> to vector<32x384xf32>
    %127 = arith.mulf %123, %126 : vector<32x384xf32>
    %128 = arith.addf %100, %127 : vector<32x384xf32>
    %c0_81 = arith.constant 0 : index
    %c0_82 = arith.constant 0 : index
    %c64 = arith.constant 64 : index
    %129 = vector.load %arg2[%c0_81, %c0_82, %c64] : memref<1x32x480xf32, #tpu.memory_space<vmem>>, vector<1x32x384xf32>
    %130 = vector.shape_cast %129 : vector<1x32x384xf32> to vector<32x384xf32>
    %c0_83 = arith.constant 0 : index
    %c0_84 = arith.constant 0 : index
    %c19 = arith.constant 19 : index
    %131 = vector.load %arg3[%c0_83, %c0_84, %c19] : memref<1x32x25xf32, #tpu.memory_space<vmem>>, vector<1x32x1xf32>
    %132 = vector.shape_cast %131 : vector<1x32x1xf32> to vector<32x1xf32>
    %133 = vector.broadcast %132 : vector<32x1xf32> to vector<32x384xf32>
    %134 = arith.mulf %130, %133 : vector<32x384xf32>
    %135 = arith.addf %107, %134 : vector<32x384xf32>
    %c0_85 = arith.constant 0 : index
    %c0_86 = arith.constant 0 : index
    %c80 = arith.constant 80 : index
    %136 = vector.load %arg2[%c0_85, %c0_86, %c80] : memref<1x32x480xf32, #tpu.memory_space<vmem>>, vector<1x32x384xf32>
    %137 = vector.shape_cast %136 : vector<1x32x384xf32> to vector<32x384xf32>
    %c0_87 = arith.constant 0 : index
    %c0_88 = arith.constant 0 : index
    %c20_89 = arith.constant 20 : index
    %138 = vector.load %arg3[%c0_87, %c0_88, %c20_89] : memref<1x32x25xf32, #tpu.memory_space<vmem>>, vector<1x32x1xf32>
    %139 = vector.shape_cast %138 : vector<1x32x1xf32> to vector<32x1xf32>
    %140 = vector.broadcast %139 : vector<32x1xf32> to vector<32x384xf32>
    %141 = arith.mulf %137, %140 : vector<32x384xf32>
    %142 = arith.addf %114, %141 : vector<32x384xf32>
    %c0_90 = arith.constant 0 : index
    %c0_91 = arith.constant 0 : index
    %c81 = arith.constant 81 : index
    %143 = vector.load %arg2[%c0_90, %c0_91, %c81] : memref<1x32x480xf32, #tpu.memory_space<vmem>>, vector<1x32x384xf32>
    %144 = vector.shape_cast %143 : vector<1x32x384xf32> to vector<32x384xf32>
    %c0_92 = arith.constant 0 : index
    %c0_93 = arith.constant 0 : index
    %c21_94 = arith.constant 21 : index
    %145 = vector.load %arg3[%c0_92, %c0_93, %c21_94] : memref<1x32x25xf32, #tpu.memory_space<vmem>>, vector<1x32x1xf32>
    %146 = vector.shape_cast %145 : vector<1x32x1xf32> to vector<32x1xf32>
    %147 = vector.broadcast %146 : vector<32x1xf32> to vector<32x384xf32>
    %148 = arith.mulf %144, %147 : vector<32x384xf32>
    %149 = arith.addf %121, %148 : vector<32x384xf32>
    %c0_95 = arith.constant 0 : index
    %c0_96 = arith.constant 0 : index
    %c82 = arith.constant 82 : index
    %150 = vector.load %arg2[%c0_95, %c0_96, %c82] : memref<1x32x480xf32, #tpu.memory_space<vmem>>, vector<1x32x384xf32>
    %151 = vector.shape_cast %150 : vector<1x32x384xf32> to vector<32x384xf32>
    %c0_97 = arith.constant 0 : index
    %c0_98 = arith.constant 0 : index
    %c22_99 = arith.constant 22 : index
    %152 = vector.load %arg3[%c0_97, %c0_98, %c22_99] : memref<1x32x25xf32, #tpu.memory_space<vmem>>, vector<1x32x1xf32>
    %153 = vector.shape_cast %152 : vector<1x32x1xf32> to vector<32x1xf32>
    %154 = vector.broadcast %153 : vector<32x1xf32> to vector<32x384xf32>
    %155 = arith.mulf %151, %154 : vector<32x384xf32>
    %156 = arith.addf %128, %155 : vector<32x384xf32>
    %c0_100 = arith.constant 0 : index
    %c0_101 = arith.constant 0 : index
    %c83 = arith.constant 83 : index
    %157 = vector.load %arg2[%c0_100, %c0_101, %c83] : memref<1x32x480xf32, #tpu.memory_space<vmem>>, vector<1x32x384xf32>
    %158 = vector.shape_cast %157 : vector<1x32x384xf32> to vector<32x384xf32>
    %c0_102 = arith.constant 0 : index
    %c0_103 = arith.constant 0 : index
    %c23_104 = arith.constant 23 : index
    %159 = vector.load %arg3[%c0_102, %c0_103, %c23_104] : memref<1x32x25xf32, #tpu.memory_space<vmem>>, vector<1x32x1xf32>
    %160 = vector.shape_cast %159 : vector<1x32x1xf32> to vector<32x1xf32>
    %161 = vector.broadcast %160 : vector<32x1xf32> to vector<32x384xf32>
    %162 = arith.mulf %158, %161 : vector<32x384xf32>
    %163 = arith.addf %135, %162 : vector<32x384xf32>
    %c0_105 = arith.constant 0 : index
    %c0_106 = arith.constant 0 : index
    %c84 = arith.constant 84 : index
    %164 = vector.load %arg2[%c0_105, %c0_106, %c84] : memref<1x32x480xf32, #tpu.memory_space<vmem>>, vector<1x32x384xf32>
    %165 = vector.shape_cast %164 : vector<1x32x384xf32> to vector<32x384xf32>
    %c0_107 = arith.constant 0 : index
    %c0_108 = arith.constant 0 : index
    %c24_109 = arith.constant 24 : index
    %166 = vector.load %arg3[%c0_107, %c0_108, %c24_109] : memref<1x32x25xf32, #tpu.memory_space<vmem>>, vector<1x32x1xf32>
    %167 = vector.shape_cast %166 : vector<1x32x1xf32> to vector<32x1xf32>
    %168 = vector.broadcast %167 : vector<32x1xf32> to vector<32x384xf32>
    %169 = arith.mulf %165, %168 : vector<32x384xf32>
    %170 = arith.addf %142, %169 : vector<32x384xf32>
    %171 = arith.addf %170, %149 : vector<32x384xf32>
    %172 = arith.addf %156, %163 : vector<32x384xf32>
    %173 = arith.addf %171, %172 : vector<32x384xf32>
    %c0_110 = arith.constant 0 : index
    %c0_111 = arith.constant 0 : index
    %c0_112 = arith.constant 0 : index
    %174 = vector.load %arg4[%c0_110, %c0_111, %c0_112] : memref<1x32x1xf32, #tpu.memory_space<vmem>>, vector<1x32x1xf32>
    %175 = vector.shape_cast %174 : vector<1x32x1xf32> to vector<32x1xf32>
    %176 = vector.broadcast %175 : vector<32x1xf32> to vector<32x384xf32>
    %177 = arith.addf %173, %176 : vector<32x384xf32>
    %cst = arith.constant 0.000000e+00 : f32
    %178 = vector.broadcast %cst : f32 to vector<32x384xf32>
    %179 = arith.maximumf %177, %178 : vector<32x384xf32>
    %180 = arith.truncf %179 : vector<32x384xf32> to vector<32x384xbf16>
    %c0_113 = arith.constant 0 : index
    %c0_114 = arith.constant 0 : index
    %c0_115 = arith.constant 0 : index
    %181 = vector.load %arg5[%c0_113, %c0_114, %c0_115] : memref<1x32x32xbf16, #tpu.memory_space<vmem>>, vector<1x32x32xbf16>
    %182 = vector.shape_cast %181 : vector<1x32x32xbf16> to vector<32x32xbf16>
    %cst_116 = arith.constant dense<0.000000e+00> : vector<32x384xf32>
    %183 = tpu.matmul %182, %180, %cst_116 {dimension_numbers = #tpu.dot_dimension_numbers<[1], [0], [0], [1], [0, 0, 1, 1], [], []>} : vector<32x32xbf16>, vector<32x384xbf16>, vector<32x384xf32> -> vector<32x384xf32>
    %c0_117 = arith.constant 0 : index
    %c0_118 = arith.constant 0 : index
    %c0_119 = arith.constant 0 : index
    %184 = vector.load %arg6[%c0_117, %c0_118, %c0_119] : memref<1x32x1xf32, #tpu.memory_space<vmem>>, vector<1x32x1xf32>
    %185 = vector.shape_cast %184 : vector<1x32x1xf32> to vector<32x1xf32>
    %186 = vector.broadcast %185 : vector<32x1xf32> to vector<32x384xf32>
    %187 = arith.addf %183, %186 : vector<32x384xf32>
    %cst_120 = arith.constant 0.000000e+00 : f32
    %188 = vector.broadcast %cst_120 : f32 to vector<32x384xf32>
    %189 = arith.maximumf %187, %188 : vector<32x384xf32>
    %190 = arith.truncf %189 : vector<32x384xf32> to vector<32x384xbf16>
    %c0_121 = arith.constant 0 : index
    %c0_122 = arith.constant 0 : index
    %c0_123 = arith.constant 0 : index
    %191 = vector.load %arg7[%c0_121, %c0_122, %c0_123] : memref<1x8x32xbf16, #tpu.memory_space<vmem>>, vector<1x8x32xbf16>
    %192 = vector.shape_cast %191 : vector<1x8x32xbf16> to vector<8x32xbf16>
    %cst_124 = arith.constant dense<0.000000e+00> : vector<8x384xf32>
    %193 = tpu.matmul %192, %190, %cst_124 {dimension_numbers = #tpu.dot_dimension_numbers<[1], [0], [0], [1], [0, 0, 1, 1], [], []>} : vector<8x32xbf16>, vector<32x384xbf16>, vector<8x384xf32> -> vector<8x384xf32>
    %c0_125 = arith.constant 0 : index
    %c0_126 = arith.constant 0 : index
    %c0_127 = arith.constant 0 : index
    %194 = vector.load %arg8[%c0_125, %c0_126, %c0_127] : memref<1x8x1xf32, #tpu.memory_space<vmem>>, vector<1x8x1xf32>
    %195 = vector.shape_cast %194 : vector<1x8x1xf32> to vector<8x1xf32>
    %196 = vector.broadcast %195 : vector<8x1xf32> to vector<8x384xf32>
    %197 = arith.addf %193, %196 : vector<8x384xf32>
    %c0_128 = arith.constant 0 : index
    %c0_129 = arith.constant 0 : index
    %c0_130 = arith.constant 0 : index
    %c0_131 = arith.constant 0 : index
    %198 = vector.load %arg9[%c0_128, %c0_129, %c0_130, %c0_131] : memref<1x1x8x384xf32, #tpu.memory_space<vmem>>, vector<1x1x8x384xf32>
    %199 = vector.shape_cast %198 : vector<1x1x8x384xf32> to vector<8x384xf32>
    %200 = vector.shape_cast %197 : vector<8x384xf32> to vector<1x1x8x384xf32>
    tpu.vector_store %arg9[%c0_128, %c0_129, %c0_130, %c0_131], %200 {strides = array<i32>} : memref<1x1x8x384xf32, #tpu.memory_space<vmem>>, vector<1x1x8x384xf32>,
    return
  }
  func.func @transform_0(%arg0: i32, %arg1: i32) -> (i32, i32, i32) {
    %c0_i32 = arith.constant 0 : i32
    %c0_i32_0 = arith.constant 0 : i32
    %c0_i32_1 = arith.constant 0 : i32
    return %arg0, %c0_i32, %c0_i32_0 : i32, i32, i32
  }
  func.func @transform_1(%arg0: i32, %arg1: i32) -> (i32, i32, i32) {
    %c0_i32 = arith.constant 0 : i32
    %c0_i32_0 = arith.constant 0 : i32
    %c0_i32_1 = arith.constant 0 : i32
    return %arg1, %c0_i32, %c0_i32_0 : i32, i32, i32
  }
  func.func @transform_2(%arg0: i32, %arg1: i32) -> (i32, i32, i32) {
    %c0_i32 = arith.constant 0 : i32
    %c0_i32_0 = arith.constant 0 : i32
    %c0_i32_1 = arith.constant 0 : i32
    return %arg1, %c0_i32, %c0_i32_0 : i32, i32, i32
  }
  func.func @transform_3(%arg0: i32, %arg1: i32) -> (i32, i32, i32) {
    %c0_i32 = arith.constant 0 : i32
    %c0_i32_0 = arith.constant 0 : i32
    %c0_i32_1 = arith.constant 0 : i32
    return %arg1, %c0_i32, %c0_i32_0 : i32, i32, i32
  }
  func.func @transform_4(%arg0: i32, %arg1: i32) -> (i32, i32, i32) {
    %c0_i32 = arith.constant 0 : i32
    %c0_i32_0 = arith.constant 0 : i32
    %c0_i32_1 = arith.constant 0 : i32
    return %arg1, %c0_i32, %c0_i32_0 : i32, i32, i32
  }
  func.func @transform_5(%arg0: i32, %arg1: i32) -> (i32, i32, i32) {
    %c0_i32 = arith.constant 0 : i32
    %c0_i32_0 = arith.constant 0 : i32
    %c0_i32_1 = arith.constant 0 : i32
    return %arg1, %c0_i32, %c0_i32_0 : i32, i32, i32
  }
  func.func @transform_6(%arg0: i32, %arg1: i32) -> (i32, i32, i32) {
    %c0_i32 = arith.constant 0 : i32
    %c0_i32_0 = arith.constant 0 : i32
    %c0_i32_1 = arith.constant 0 : i32
    return %arg1, %c0_i32, %c0_i32_0 : i32, i32, i32
  }
  func.func @transform_7(%arg0: i32, %arg1: i32) -> (i32, i32, i32, i32) {
    %c0_i32 = arith.constant 0 : i32
    %c0_i32_0 = arith.constant 0 : i32
    %c0_i32_1 = arith.constant 0 : i32
    return %arg0, %arg1, %c0_i32, %c0_i32_0 : i32, i32, i32, i32
  }
}

</mosaic_0001>

<llo_original>
// kernel: squeeze.3
$region0: #{squeeze.3}
  %s0 = inlined_call_operand.vmem [shape: f32[2,1,2,320], index: 0, kind: input, shape index: {}]
  %s1 = inlined_call_operand.hbm [shape: f32[2,2,16,20], index: 1, kind: output, shape index: {}]
  $region1: #{squeeze.3} parent=0
    #allocation0 [shape = 'u8[32768]{0}', space=vmem, size = 0x8000, scoped, tag = 'operand span for operand 1']
    #allocation1 [shape = 's32[1]{0}', space=sflag, size = 0x4, scoped, tag = 'scoped memory for squeeze.3']
    #allocation2 [shape = 'u8[24576]{0}', space=vmem, size = 0x6000, scoped, tag = 'scoped mem for input reshape']
    %2 = vsyncpa [#allocation1], 0
    %s4 = sshllo.u32 0, 2
    %s5 = smul.addr 2, 5
    %s6 = scalar_lea.vmem %s0, %s5
    %v7 = vld [vmem:[%s6] sm:%s4]
    %s8 = scalar_lea.vmem [#allocation2], 40
    %9 = vst [vmem:[%s8] sm:%s4] %v7
    %s10 = smul.addr 2, 4
    %s11 = scalar_lea.vmem %s0, %s10
    %v12 = vld [vmem:[%s11] sm:%s4]
    %s13 = scalar_lea.vmem [#allocation2], 32
    %14 = vst [vmem:[%s13] sm:%s4] %v12
    %s15 = smul.addr 2, 3
    %s16 = scalar_lea.vmem %s0, %s15
    %v17 = vld [vmem:[%s16] sm:%s4]
    %s18 = scalar_lea.vmem [#allocation2], 24
    %19 = vst [vmem:[%s18] sm:%s4] %v17
    %s20 = smul.addr 2, 2
    %s21 = scalar_lea.vmem %s0, %s20
    %v22 = vld [vmem:[%s21] sm:%s4]
    %s23 = scalar_lea.vmem [#allocation2], 16
    %24 = vst [vmem:[%s23] sm:%s4] %v22
    %s25 = scalar_lea.vmem %s0, 2
    %v26 = vld [vmem:[%s25] sm:%s4]
    %s27 = scalar_lea.vmem [#allocation2], 8
    %28 = vst [vmem:[%s27] sm:%s4] %v26
    %v29 = vld [vmem:[%s0] sm:%s4]
    %30 = vst [vmem:[#allocation2] sm:%s4] %v29
    %v31 = vld [vmem:[#allocation2] sm:$0x3]
    %vm32 = vcmask 162816
    %33 = vst.msk [vmem:[#allocation0] ss:$16 sm:$0x3] %vm32, %v31
    %s34 = scalar_lea.vmem [#allocation2], 24
    %v35 = vld [vmem:[%s34] sm:$0x3]
    %vm36 = vcmask 162816
    %s37 = scalar_lea.vmem [#allocation0], 32
    %38 = vst.msk [vmem:[%s37] ss:$16 sm:$0x3] %vm36, %v35
    %s39 = scalar_lea.vmem [#allocation2], 16
    %v40 = vld [vmem:[%s39] sm:$0x3]
    %s41 = scalar_lea.vmem [#allocation2], 38
    %v42 = vld [vmem:[%s41] sm:$0xc]
    %vm43 = vcmask 1043458
    %v44 = vsel %vm43, %v42, %v40
    %45 = vrot.lane.b32.xlu0 %v44, 124
    %v46 = vpop.permute.xlu0 %45
    %vm47 = vcmask 162816
    %s48 = scalar_lea.vmem [#allocation0], 13
    %49 = vst.msk [vmem:[%s48] ss:$16 sm:$0x3] %vm47, %v46
    %s50 = scalar_lea.vmem [#allocation0], 13
    %51 = vst.msk [vmem:[%s50] ss:$16 sm:$0xc] %vm47, %v46
    %s52 = scalar_lea.vmem [#allocation2], 8
    %v53 = vld [vmem:[%s52] sm:$0x3]
    %s54 = scalar_lea.vmem [#allocation2], 30
    %v55 = vld [vmem:[%s54] sm:$0xc]
    %vm56 = vcmask 1043458
    %v57 = vsel %vm56, %v55, %v53
    %58 = vrot.lane.b32.xlu0 %v57, 116
    %v59 = vpop.permute.xlu0 %58
    %vm60 = vcmask 162816
    %s61 = scalar_lea.vmem [#allocation0], 7
    %62 = vst.msk [vmem:[%s61] ss:$16 sm:$0x3] %vm60, %v59
    %s63 = scalar_lea.vmem [#allocation0], 7
    %64 = vst.msk [vmem:[%s63] ss:$16 sm:$0xc] %vm60, %v59
    %v65 = vld [vmem:[#allocation2] sm:$0x3]
    %s66 = scalar_lea.vmem [#allocation2], 22
    %v67 = vld [vmem:[%s66] sm:$0xc]
    %vm68 = vcmask 1043458
    %v69 = vsel %vm68, %v67, %v65
    %70 = vrot.lane.b32.xlu0 %v69, 108
    %v71 = vpop.permute.xlu0 %70
    %vm72 = vcmask 162816
    %s73 = scalar_lea.vmem [#allocation0], 1
    %74 = vst.msk [vmem:[%s73] ss:$16 sm:$0x3] %vm72, %v71
    %s75 = scalar_lea.vmem [#allocation0], 1
    %76 = vst.msk [vmem:[%s75] ss:$16 sm:$0xc] %vm72, %v71
    %s77 = scalar_lea.vmem [#allocation2], 16
    %v78 = vld [vmem:[%s77] sm:$0x3]
    %s79 = scalar_lea.vmem [#allocation2], 38
    %v80 = vld [vmem:[%s79] sm:$0xc]
    %vm81 = vcmask 1043458
    %v82 = vsel %vm81, %v80, %v78
    %83 = vrot.lane.b32.xlu0 %v82, 104
    %v84 = vpop.permute.xlu0 %83
    %vm85 = vcmask 162816
    %s86 = scalar_lea.vmem [#allocation0], 14
    %87 = vst.msk [vmem:[%s86] ss:$16 sm:$0x3] %vm85, %v84
    %s88 = scalar_lea.vmem [#allocation0], 14
    %89 = vst.msk [vmem:[%s88] ss:$16 sm:$0xc] %vm85, %v84
    %s90 = scalar_lea.vmem [#allocation2], 8
    %v91 = vld [vmem:[%s90] sm:$0x3]
    %s92 = scalar_lea.vmem [#allocation2], 30
    %v93 = vld [vmem:[%s92] sm:$0xc]
    %vm94 = vcmask 1043458
    %v95 = vsel %vm94, %v93, %v91
    %96 = vrot.lane.b32.xlu0 %v95, 96
    %v97 = vpop.permute.xlu0 %96
    %vm98 = vcmask 162816
    %s99 = scalar_lea.vmem [#allocation0], 8
    %100 = vst.msk [vmem:[%s99] ss:$16 sm:$0x3] %vm98, %v97
    %s101 = scalar_lea.vmem [#allocation0], 8
    %102 = vst.msk [vmem:[%s101] ss:$16 sm:$0xc] %vm98, %v97
    %v103 = vld [vmem:[#allocation2] sm:$0x3]
    %s104 = scalar_lea.vmem [#allocation2], 22
    %v105 = vld [vmem:[%s104] sm:$0xc]
    %vm106 = vcmask 1043458
    %v107 = vsel %vm106, %v105, %v103
    %108 = vrot.lane.b32.xlu0 %v107, 88
    %v109 = vpop.permute.xlu0 %108
    %vm110 = vcmask 162816
    %s111 = scalar_lea.vmem [#allocation0], 2
    %112 = vst.msk [vmem:[%s111] ss:$16 sm:$0x3] %vm110, %v109
    %s113 = scalar_lea.vmem [#allocation0], 2
    %114 = vst.msk [vmem:[%s113] ss:$16 sm:$0xc] %vm110, %v109
    %s115 = scalar_lea.vmem [#allocation2], 16
    %v116 = vld [vmem:[%s115] sm:$0x3]
    %s117 = scalar_lea.vmem [#allocation2], 38
    %v118 = vld [vmem:[%s117] sm:$0xc]
    %vm119 = vcmask 1043458
    %v120 = vsel %vm119, %v118, %v116
    %121 = vrot.lane.b32.xlu0 %v120, 84
    %v122 = vpop.permute.xlu0 %121
    %vm123 = vcmask 162816
    %s124 = scalar_lea.vmem [#allocation0], 15
    %125 = vst.msk [vmem:[%s124] ss:$16 sm:$0x3] %vm123, %v122
    %s126 = scalar_lea.vmem [#allocation0], 15
    %127 = vst.msk [vmem:[%s126] ss:$16 sm:$0xc] %vm123, %v122
    %s128 = scalar_lea.vmem [#allocation2], 8
    %v129 = vld [vmem:[%s128] sm:$0x3]
    %s130 = scalar_lea.vmem [#allocation2], 30
    %v131 = vld [vmem:[%s130] sm:$0xc]
    %vm132 = vcmask 1043458
    %v133 = vsel %vm132, %v131, %v129
    %134 = vrot.lane.b32.xlu0 %v133, 76
    %v135 = vpop.permute.xlu0 %134
    %vm136 = vcmask 162816
    %s137 = scalar_lea.vmem [#allocation0], 9
    %138 = vst.msk [vmem:[%s137] ss:$16 sm:$0x3] %vm136, %v135
    %s139 = scalar_lea.vmem [#allocation0], 9
    %140 = vst.msk [vmem:[%s139] ss:$16 sm:$0xc] %vm136, %v135
    %v141 = vld [vmem:[#allocation2] sm:$0x3]
    %s142 = scalar_lea.vmem [#allocation2], 22
    %v143 = vld [vmem:[%s142] sm:$0xc]
    %vm144 = vcmask 1043458
    %v145 = vsel %vm144, %v143, %v141
    %146 = vrot.lane.b32.xlu0 %v145, 68
    %v147 = vpop.permute.xlu0 %146
    %vm148 = vcmask 162816
    %s149 = scalar_lea.vmem [#allocation0], 3
    %150 = vst.msk [vmem:[%s149] ss:$16 sm:$0x3] %vm148, %v147
    %s151 = scalar_lea.vmem [#allocation0], 3
    %152 = vst.msk [vmem:[%s151] ss:$16 sm:$0xc] %vm148, %v147
    %s153 = scalar_lea.vmem [#allocation2], 8
    %v154 = vld [vmem:[%s153] sm:$0x3]
    %s155 = scalar_lea.vmem [#allocation2], 30
    %v156 = vld [vmem:[%s155] sm:$0xc]
    %vm157 = vcmask 1043458
    %v158 = vsel %vm157, %v156, %v154
    %159 = vrot.lane.b32.xlu0 %v158, 56
    %v160 = vpop.permute.xlu0 %159
    %vm161 = vcmask 162816
    %s162 = scalar_lea.vmem [#allocation0], 10
    %163 = vst.msk [vmem:[%s162] ss:$16 sm:$0x3] %vm161, %v160
    %s164 = scalar_lea.vmem [#allocation0], 10
    %165 = vst.msk [vmem:[%s164] ss:$16 sm:$0xc] %vm161, %v160
    %v166 = vld [vmem:[#allocation2] sm:$0x3]
    %s167 = scalar_lea.vmem [#allocation2], 22
    %v168 = vld [vmem:[%s167] sm:$0xc]
    %vm169 = vcmask 1043458
    %v170 = vsel %vm169, %v168, %v166
    %171 = vrot.lane.b32.xlu0 %v170, 48
    %v172 = vpop.permute.xlu0 %171
    %vm173 = vcmask 162816
    %s174 = scalar_lea.vmem [#allocation0], 4
    %175 = vst.msk [vmem:[%s174] ss:$16 sm:$0x3] %vm173, %v172
    %s176 = scalar_lea.vmem [#allocation0], 4
    %177 = vst.msk [vmem:[%s176] ss:$16 sm:$0xc] %vm173, %v172
    %s178 = scalar_lea.vmem [#allocation2], 8
    %v179 = vld [vmem:[%s178] sm:$0x3]
    %s180 = scalar_lea.vmem [#allocation2], 30
    %v181 = vld [vmem:[%s180] sm:$0xc]
    %vm182 = vcmask 1043458
    %v183 = vsel %vm182, %v181, %v179
    %184 = vrot.lane.b32.xlu0 %v183, 36
    %v185 = vpop.permute.xlu0 %184
    %vm186 = vcmask 162816
    %s187 = scalar_lea.vmem [#allocation0], 11
    %188 = vst.msk [vmem:[%s187] ss:$16 sm:$0x3] %vm186, %v185
    %s189 = scalar_lea.vmem [#allocation0], 11
    %190 = vst.msk [vmem:[%s189] ss:$16 sm:$0xc] %vm186, %v185
    %v191 = vld [vmem:[#allocation2] sm:$0x3]
    %s192 = scalar_lea.vmem [#allocation2], 22
    %v193 = vld [vmem:[%s192] sm:$0xc]
    %vm194 = vcmask 1043458
    %v195 = vsel %vm194, %v193, %v191
    %196 = vrot.lane.b32.xlu0 %v195, 28
    %v197 = vpop.permute.xlu0 %196
    %vm198 = vcmask 162816
    %s199 = scalar_lea.vmem [#allocation0], 5
    %200 = vst.msk [vmem:[%s199] ss:$16 sm:$0x3] %vm198, %v197
    %s201 = scalar_lea.vmem [#allocation0], 5
    %202 = vst.msk [vmem:[%s201] ss:$16 sm:$0xc] %vm198, %v197
    %s203 = scalar_lea.vmem [#allocation2], 8
    %v204 = vld [vmem:[%s203] sm:$0x3]
    %s205 = scalar_lea.vmem [#allocation2], 30
    %v206 = vld [vmem:[%s205] sm:$0xc]
    %vm207 = vcmask 1043458
    %v208 = vsel %vm207, %v206, %v204
    %s209 = scalar_lea.vmem [#allocation2], 16
    %v210 = vld [vmem:[%s209] sm:$0x3]
    %s211 = scalar_lea.vmem [#allocation2], 38
    %v212 = vld [vmem:[%s211] sm:$0xc]
    %vm213 = vcmask 1043458
    %v214 = vsel %vm213, %v212, %v210
    %vm215 = vcmask 916480
    %v216 = vsel %vm215, %v214, %v208
    %217 = vrot.lane.b32.xlu0 %v216, 16
    %v218 = vpop.permute.xlu0 %217
    %vm219 = vcmask 130048
    %s220 = scalar_lea.vmem [#allocation0], 12
    %221 = vst.msk [vmem:[%s220] ss:$16 sm:$0x3] %vm219, %v218
    %s222 = scalar_lea.vmem [#allocation0], 12
    %223 = vst.msk [vmem:[%s222] ss:$16 sm:$0xc] %vm219, %v218
    %vm224 = vcmask 162944
    %s225 = scalar_lea.vmem [#allocation0], 12
    %226 = vst.msk [vmem:[%s225] ss:$16 sm:$0x3] %vm224, %v218
    %s227 = scalar_lea.vmem [#allocation0], 12
    %228 = vst.msk [vmem:[%s227] ss:$16 sm:$0xc] %vm224, %v218
    %v229 = vld [vmem:[#allocation2] sm:$0x3]
    %s230 = scalar_lea.vmem [#allocation2], 22
    %v231 = vld [vmem:[%s230] sm:$0xc]
    %vm232 = vcmask 1043458
    %v233 = vsel %vm232, %v231, %v229
    %s234 = scalar_lea.vmem [#allocation2], 8
    %v235 = vld [vmem:[%s234] sm:$0x3]
    %s236 = scalar_lea.vmem [#allocation2], 30
    %v237 = vld [vmem:[%s236] sm:$0xc]
    %vm238 = vcmask 1043458
    %v239 = vsel %vm238, %v237, %v235
    %vm240 = vcmask 982016
    %v241 = vsel %vm240, %v239, %v233
    %242 = vrot.lane.b32.xlu0 %v241, 8
    %v243 = vpop.permute.xlu0 %242
    %vm244 = vcmask 64512
    %s245 = scalar_lea.vmem [#allocation0], 6
    %246 = vst.msk [vmem:[%s245] ss:$16 sm:$0x3] %vm244, %v243
    %s247 = scalar_lea.vmem [#allocation0], 6
    %248 = vst.msk [vmem:[%s247] ss:$16 sm:$0xc] %vm244, %v243
    %vm249 = vcmask 162880
    %s250 = scalar_lea.vmem [#allocation0], 6
    %251 = vst.msk [vmem:[%s250] ss:$16 sm:$0x3] %vm249, %v243
    %s252 = scalar_lea.vmem [#allocation0], 6
    %253 = vst.msk [vmem:[%s252] ss:$16 sm:$0xc] %vm249, %v243
    %s255 = ssub.s32 1024, 1024
    %256 = vsyncadd [#allocation1], %s255
    %s258 = sshll.u32 [#allocation0], 4
    %s259 = int_to_ptr.vmem [resolvable:$true] %s258
    %261 = dma.vmem_to_hbm [thread:$0]  %s259, 1024, %s1, [#allocation1]
    %262 = dma.done [#allocation1], 1024
    %263 = vsyncpa [#allocation1], 1

// kernel: squeeze.2
$region0: #{squeeze.2}
  %s0 = inlined_call_operand.vmem [shape: f32[2,1,3,320], index: 0, kind: input, shape index: {}]
  %s1 = inlined_call_operand.vmem [shape: f32[2,3,16,20], index: 1, kind: output, shape index: {}]
  $region1: #{squeeze.2} parent=0
    #allocation0 [shape = 'u8[36864]{0}', space=vmem, size = 0x9000, scoped, tag = 'scoped mem for input reshape']
    %s3 = sshllo.u32 0, 2
    %s4 = smul.addr 2, 8
    %s5 = scalar_lea.vmem %s0, %s4
    %v6 = vld [vmem:[%s5] sm:%s3]
    %s7 = scalar_lea.vmem [#allocation0], 64
    %8 = vst [vmem:[%s7] sm:%s3] %v6
    %s9 = smul.addr 2, 7
    %s10 = scalar_lea.vmem %s0, %s9
    %v11 = vld [vmem:[%s10] sm:%s3]
    %s12 = scalar_lea.vmem [#allocation0], 56
    %13 = vst [vmem:[%s12] sm:%s3] %v11
    %s14 = smul.addr 2, 6
    %s15 = scalar_lea.vmem %s0, %s14
    %v16 = vld [vmem:[%s15] sm:%s3]
    %s17 = scalar_lea.vmem [#allocation0], 48
    %18 = vst [vmem:[%s17] sm:%s3] %v16
    %s19 = smul.addr 2, 5
    %s20 = scalar_lea.vmem %s0, %s19
    %v21 = vld [vmem:[%s20] sm:%s3]
    %s22 = scalar_lea.vmem [#allocation0], 40
    %23 = vst [vmem:[%s22] sm:%s3] %v21
    %s24 = smul.addr 2, 4
    %s25 = scalar_lea.vmem %s0, %s24
    %v26 = vld [vmem:[%s25] sm:%s3]
    %s27 = scalar_lea.vmem [#allocation0], 32
    %28 = vst [vmem:[%s27] sm:%s3] %v26
    %s29 = smul.addr 2, 3
    %s30 = scalar_lea.vmem %s0, %s29
    %v31 = vld [vmem:[%s30] sm:%s3]
    %s32 = scalar_lea.vmem [#allocation0], 24
    %33 = vst [vmem:[%s32] sm:%s3] %v31
    %s34 = smul.addr 2, 2
    %s35 = scalar_lea.vmem %s0, %s34
    %v36 = vld [vmem:[%s35] sm:%s3]
    %s37 = scalar_lea.vmem [#allocation0], 16
    %38 = vst [vmem:[%s37] sm:%s3] %v36
    %s39 = scalar_lea.vmem %s0, 2
    %v40 = vld [vmem:[%s39] sm:%s3]
    %s41 = scalar_lea.vmem [#allocation0], 8
    %42 = vst [vmem:[%s41] sm:%s3] %v40
    %v43 = vld [vmem:[%s0] sm:%s3]
    %44 = vst [vmem:[#allocation0] sm:%s3] %v43
    %v45 = vld [vmem:[#allocation0] sm:$0x3]
    %vm46 = vcmask 162816
    %47 = vst.msk [vmem:[%s1] ss:$16 sm:$0x3] %vm46, %v45
    %s48 = scalar_lea.vmem [#allocation0], 24
    %v49 = vld [vmem:[%s48] sm:$0x3]
    %vm50 = vcmask 162816
    %s51 = scalar_lea.vmem %s1, 32
    %52 = vst.msk [vmem:[%s51] ss:$16 sm:$0x3] %vm50, %v49
    %s53 = scalar_lea.vmem [#allocation0], 48
    %v54 = vld [vmem:[%s53] sm:$0x3]
    %vm55 = vcmask 162816
    %s56 = scalar_lea.vmem %s1, 64
    %57 = vst.msk [vmem:[%s56] ss:$16 sm:$0x3] %vm55, %v54
    %s58 = scalar_lea.vmem [#allocation0], 16
    %v59 = vld [vmem:[%s58] sm:$0x3]
    %s60 = scalar_lea.vmem [#allocation0], 38
    %v61 = vld [vmem:[%s60] sm:$0xc]
    %vm62 = vcmask 1043458
    %v63 = vsel %vm62, %v61, %v59
    %s64 = scalar_lea.vmem [#allocation0], 60
    %v65 = vld [vmem:[%s64] sm:$0x30]
    %vm66 = vcmask 1045508
    %v67 = vsel %vm66, %v65, %v63
    %68 = vrot.lane.b32.xlu0 %v67, 124
    %v69 = vpop.permute.xlu0 %68
    %vm70 = vcmask 162816
    %s71 = scalar_lea.vmem %s1, 13
    %72 = vst.msk [vmem:[%s71] ss:$16 sm:$0x3] %vm70, %v69
    %s73 = scalar_lea.vmem %s1, 13
    %74 = vst.msk [vmem:[%s73] ss:$16 sm:$0xc] %vm70, %v69
    %s75 = scalar_lea.vmem %s1, 13
    %76 = vst.msk [vmem:[%s75] ss:$16 sm:$0x30] %vm70, %v69
    %s77 = scalar_lea.vmem [#allocation0], 8
    %v78 = vld [vmem:[%s77] sm:$0x3]
    %s79 = scalar_lea.vmem [#allocation0], 30
    %v80 = vld [vmem:[%s79] sm:$0xc]
    %vm81 = vcmask 1043458
    %v82 = vsel %vm81, %v80, %v78
    %s83 = scalar_lea.vmem [#allocation0], 52
    %v84 = vld [vmem:[%s83] sm:$0x30]
    %vm85 = vcmask 1045508
    %v86 = vsel %vm85, %v84, %v82
    %87 = vrot.lane.b32.xlu0 %v86, 116
    %v88 = vpop.permute.xlu0 %87
    %vm89 = vcmask 162816
    %s90 = scalar_lea.vmem %s1, 7
    %91 = vst.msk [vmem:[%s90] ss:$16 sm:$0x3] %vm89, %v88
    %s92 = scalar_lea.vmem %s1, 7
    %93 = vst.msk [vmem:[%s92] ss:$16 sm:$0xc] %vm89, %v88
    %s94 = scalar_lea.vmem %s1, 7
    %95 = vst.msk [vmem:[%s94] ss:$16 sm:$0x30] %vm89, %v88
    %v96 = vld [vmem:[#allocation0] sm:$0x3]
    %s97 = scalar_lea.vmem [#allocation0], 22
    %v98 = vld [vmem:[%s97] sm:$0xc]
    %vm99 = vcmask 1043458
    %v100 = vsel %vm99, %v98, %v96
    %s101 = scalar_lea.vmem [#allocation0], 44
    %v102 = vld [vmem:[%s101] sm:$0x30]
    %vm103 = vcmask 1045508
    %v104 = vsel %vm103, %v102, %v100
    %105 = vrot.lane.b32.xlu0 %v104, 108
    %v106 = vpop.permute.xlu0 %105
    %vm107 = vcmask 162816
    %s108 = scalar_lea.vmem %s1, 1
    %109 = vst.msk [vmem:[%s108] ss:$16 sm:$0x3] %vm107, %v106
    %s110 = scalar_lea.vmem %s1, 1
    %111 = vst.msk [vmem:[%s110] ss:$16 sm:$0xc] %vm107, %v106
    %s112 = scalar_lea.vmem %s1, 1
    %113 = vst.msk [vmem:[%s112] ss:$16 sm:$0x30] %vm107, %v106
    %s114 = scalar_lea.vmem [#allocation0], 16
    %v115 = vld [vmem:[%s114] sm:$0x3]
    %s116 = scalar_lea.vmem [#allocation0], 38
    %v117 = vld [vmem:[%s116] sm:$0xc]
    %vm118 = vcmask 1043458
    %v119 = vsel %vm118, %v117, %v115
    %s120 = scalar_lea.vmem [#allocation0], 60
    %v121 = vld [vmem:[%s120] sm:$0x30]
    %vm122 = vcmask 1045508
    %v123 = vsel %vm122, %v121, %v119
    %124 = vrot.lane.b32.xlu0 %v123, 104
    %v125 = vpop.permute.xlu0 %124
    %vm126 = vcmask 162816
    %s127 = scalar_lea.vmem %s1, 14
    %128 = vst.msk [vmem:[%s127] ss:$16 sm:$0x3] %vm126, %v125
    %s129 = scalar_lea.vmem %s1, 14
    %130 = vst.msk [vmem:[%s129] ss:$16 sm:$0xc] %vm126, %v125
    %s131 = scalar_lea.vmem %s1, 14
    %132 = vst.msk [vmem:[%s131] ss:$16 sm:$0x30] %vm126, %v125
    %s133 = scalar_lea.vmem [#allocation0], 8
    %v134 = vld [vmem:[%s133] sm:$0x3]
    %s135 = scalar_lea.vmem [#allocation0], 30
    %v136 = vld [vmem:[%s135] sm:$0xc]
    %vm137 = vcmask 1043458
    %v138 = vsel %vm137, %v136, %v134
    %s139 = scalar_lea.vmem [#allocation0], 52
    %v140 = vld [vmem:[%s139] sm:$0x30]
    %vm141 = vcmask 1045508
    %v142 = vsel %vm141, %v140, %v138
    %143 = vrot.lane.b32.xlu0 %v142, 96
    %v144 = vpop.permute.xlu0 %143
    %vm145 = vcmask 162816
    %s146 = scalar_lea.vmem %s1, 8
    %147 = vst.msk [vmem:[%s146] ss:$16 sm:$0x3] %vm145, %v144
    %s148 = scalar_lea.vmem %s1, 8
    %149 = vst.msk [vmem:[%s148] ss:$16 sm:$0xc] %vm145, %v144
    %s150 = scalar_lea.vmem %s1, 8
    %151 = vst.msk [vmem:[%s150] ss:$16 sm:$0x30] %vm145, %v144
    %v152 = vld [vmem:[#allocation0] sm:$0x3]
    %s153 = scalar_lea.vmem [#allocation0], 22
    %v154 = vld [vmem:[%s153] sm:$0xc]
    %vm155 = vcmask 1043458
    %v156 = vsel %vm155, %v154, %v152
    %s157 = scalar_lea.vmem [#allocation0], 44
    %v158 = vld [vmem:[%s157] sm:$0x30]
    %vm159 = vcmask 1045508
    %v160 = vsel %vm159, %v158, %v156
    %161 = vrot.lane.b32.xlu0 %v160, 88
    %v162 = vpop.permute.xlu0 %161
    %vm163 = vcmask 162816
    %s164 = scalar_lea.vmem %s1, 2
    %165 = vst.msk [vmem:[%s164] ss:$16 sm:$0x3] %vm163, %v162
    %s166 = scalar_lea.vmem %s1, 2
    %167 = vst.msk [vmem:[%s166] ss:$16 sm:$0xc] %vm163, %v162
    %s168 = scalar_lea.vmem %s1, 2
    %169 = vst.msk [vmem:[%s168] ss:$16 sm:$0x30] %vm163, %v162
    %s170 = scalar_lea.vmem [#allocation0], 16
    %v171 = vld [vmem:[%s170] sm:$0x3]
    %s172 = scalar_lea.vmem [#allocation0], 38
    %v173 = vld [vmem:[%s172] sm:$0xc]
    %vm174 = vcmask 1043458
    %v175 = vsel %vm174, %v173, %v171
    %s176 = scalar_lea.vmem [#allocation0], 60
    %v177 = vld [vmem:[%s176] sm:$0x30]
    %vm178 = vcmask 1045508
    %v179 = vsel %vm178, %v177, %v175
    %180 = vrot.lane.b32.xlu0 %v179, 84
    %v181 = vpop.permute.xlu0 %180
    %vm182 = vcmask 162816
    %s183 = scalar_lea.vmem %s1, 15
    %184 = vst.msk [vmem:[%s183] ss:$16 sm:$0x3] %vm182, %v181
    %s185 = scalar_lea.vmem %s1, 15
    %186 = vst.msk [vmem:[%s185] ss:$16 sm:$0xc] %vm182, %v181
    %s187 = scalar_lea.vmem %s1, 15
    %188 = vst.msk [vmem:[%s187] ss:$16 sm:$0x30] %vm182, %v181
    %s189 = scalar_lea.vmem [#allocation0], 8
    %v190 = vld [vmem:[%s189] sm:$0x3]
    %s191 = scalar_lea.vmem [#allocation0], 30
    %v192 = vld [vmem:[%s191] sm:$0xc]
    %vm193 = vcmask 1043458
    %v194 = vsel %vm193, %v192, %v190
    %s195 = scalar_lea.vmem [#allocation0], 52
    %v196 = vld [vmem:[%s195] sm:$0x30]
    %vm197 = vcmask 1045508
    %v198 = vsel %vm197, %v196, %v194
    %199 = vrot.lane.b32.xlu0 %v198, 76
    %v200 = vpop.permute.xlu0 %199
    %vm201 = vcmask 162816
    %s202 = scalar_lea.vmem %s1, 9
    %203 = vst.msk [vmem:[%s202] ss:$16 sm:$0x3] %vm201, %v200
    %s204 = scalar_lea.vmem %s1, 9
    %205 = vst.msk [vmem:[%s204] ss:$16 sm:$0xc] %vm201, %v200
    %s206 = scalar_lea.vmem %s1, 9
    %207 = vst.msk [vmem:[%s206] ss:$16 sm:$0x30] %vm201, %v200
    %v208 = vld [vmem:[#allocation0] sm:$0x3]
    %s209 = scalar_lea.vmem [#allocation0], 22
    %v210 = vld [vmem:[%s209] sm:$0xc]
    %vm211 = vcmask 1043458
    %v212 = vsel %vm211, %v210, %v208
    %s213 = scalar_lea.vmem [#allocation0], 44
    %v214 = vld [vmem:[%s213] sm:$0x30]
    %vm215 = vcmask 1045508
    %v216 = vsel %vm215, %v214, %v212
    %217 = vrot.lane.b32.xlu0 %v216, 68
    %v218 = vpop.permute.xlu0 %217
    %vm219 = vcmask 162816
    %s220 = scalar_lea.vmem %s1, 3
    %221 = vst.msk [vmem:[%s220] ss:$16 sm:$0x3] %vm219, %v218
    %s222 = scalar_lea.vmem %s1, 3
    %223 = vst.msk [vmem:[%s222] ss:$16 sm:$0xc] %vm219, %v218
    %s224 = scalar_lea.vmem %s1, 3
    %225 = vst.msk [vmem:[%s224] ss:$16 sm:$0x30] %vm219, %v218
    %s226 = scalar_lea.vmem [#allocation0], 8
    %v227 = vld [vmem:[%s226] sm:$0x3]
    %s228 = scalar_lea.vmem [#allocation0], 30
    %v229 = vld [vmem:[%s228] sm:$0xc]
    %vm230 = vcmask 1043458
    %v231 = vsel %vm230, %v229, %v227
    %s232 = scalar_lea.vmem [#allocation0], 52
    %v233 = vld [vmem:[%s232] sm:$0x30]
    %vm234 = vcmask 1045508
    %v235 = vsel %vm234, %v233, %v231
    %236 = vrot.lane.b32.xlu0 %v235, 56
    %v237 = vpop.permute.xlu0 %236
    %vm238 = vcmask 162816
    %s239 = scalar_lea.vmem %s1, 10
    %240 = vst.msk [vmem:[%s239] ss:$16 sm:$0x3] %vm238, %v237
    %s241 = scalar_lea.vmem %s1, 10
    %242 = vst.msk [vmem:[%s241] ss:$16 sm:$0xc] %vm238, %v237
    %s243 = scalar_lea.vmem %s1, 10
    %244 = vst.msk [vmem:[%s243] ss:$16 sm:$0x30] %vm238, %v237
    %v245 = vld [vmem:[#allocation0] sm:$0x3]
    %s246 = scalar_lea.vmem [#allocation0], 22
    %v247 = vld [vmem:[%s246] sm:$0xc]
    %vm248 = vcmask 1043458
    %v249 = vsel %vm248, %v247, %v245
    %s250 = scalar_lea.vmem [#allocation0], 44
    %v251 = vld [vmem:[%s250] sm:$0x30]
    %vm252 = vcmask 1045508
    %v253 = vsel %vm252, %v251, %v249
    %254 = vrot.lane.b32.xlu0 %v253, 48
    %v255 = vpop.permute.xlu0 %254
    %vm256 = vcmask 162816
    %s257 = scalar_lea.vmem %s1, 4
    %258 = vst.msk [vmem:[%s257] ss:$16 sm:$0x3] %vm256, %v255
    %s259 = scalar_lea.vmem %s1, 4
    %260 = vst.msk [vmem:[%s259] ss:$16 sm:$0xc] %vm256, %v255
    %s261 = scalar_lea.vmem %s1, 4
    %262 = vst.msk [vmem:[%s261] ss:$16 sm:$0x30] %vm256, %v255
    %s263 = scalar_lea.vmem [#allocation0], 8
    %v264 = vld [vmem:[%s263] sm:$0x3]
    %s265 = scalar_lea.vmem [#allocation0], 30
    %v266 = vld [vmem:[%s265] sm:$0xc]
    %vm267 = vcmask 1043458
    %v268 = vsel %vm267, %v266, %v264
    %s269 = scalar_lea.vmem [#allocation0], 52
    %v270 = vld [vmem:[%s269] sm:$0x30]
    %vm271 = vcmask 1045508
    %v272 = vsel %vm271, %v270, %v268
    %273 = vrot.lane.b32.xlu0 %v272, 36
    %v274 = vpop.permute.xlu0 %273
    %vm275 = vcmask 162816
    %s276 = scalar_lea.vmem %s1, 11
    %277 = vst.msk [vmem:[%s276] ss:$16 sm:$0x3] %vm275, %v274
    %s278 = scalar_lea.vmem %s1, 11
    %279 = vst.msk [vmem:[%s278] ss:$16 sm:$0xc] %vm275, %v274
    %s280 = scalar_lea.vmem %s1, 11
    %281 = vst.msk [vmem:[%s280] ss:$16 sm:$0x30] %vm275, %v274
    %v282 = vld [vmem:[#allocation0] sm:$0x3]
    %s283 = scalar_lea.vmem [#allocation0], 22
    %v284 = vld [vmem:[%s283] sm:$0xc]
    %vm285 = vcmask 1043458
    %v286 = vsel %vm285, %v284, %v282
    %s287 = scalar_lea.vmem [#allocation0], 44
    %v288 = vld [vmem:[%s287] sm:$0x30]
    %vm289 = vcmask 1045508
    %v290 = vsel %vm289, %v288, %v286
    %291 = vrot.lane.b32.xlu0 %v290, 28
    %v292 = vpop.permute.xlu0 %291
    %vm293 = vcmask 162816
    %s294 = scalar_lea.vmem %s1, 5
    %295 = vst.msk [vmem:[%s294] ss:$16 sm:$0x3] %vm293, %v292
    %s296 = scalar_lea.vmem %s1, 5
    %297 = vst.msk [vmem:[%s296] ss:$16 sm:$0xc] %vm293, %v292
    %s298 = scalar_lea.vmem %s1, 5
    %299 = vst.msk [vmem:[%s298] ss:$16 sm:$0x30] %vm293, %v292
    %s300 = scalar_lea.vmem [#allocation0], 8
    %v301 = vld [vmem:[%s300] sm:$0x3]
    %s302 = scalar_lea.vmem [#allocation0], 30
    %v303 = vld [vmem:[%s302] sm:$0xc]
    %vm304 = vcmask 1043458
    %v305 = vsel %vm304, %v303, %v301
    %s306 = scalar_lea.vmem [#allocation0], 52
    %v307 = vld [vmem:[%s306] sm:$0x30]
    %vm308 = vcmask 1045508
    %v309 = vsel %vm308, %v307, %v305
    %s310 = scalar_lea.vmem [#allocation0], 16
    %v311 = vld [vmem:[%s310] sm:$0x3]
    %s312 = scalar_lea.vmem [#allocation0], 38
    %v313 = vld [vmem:[%s312] sm:$0xc]
    %vm314 = vcmask 1043458
    %v315 = vsel %vm314, %v313, %v311
    %s316 = scalar_lea.vmem [#allocation0], 60
    %v317 = vld [vmem:[%s316] sm:$0x30]
    %vm318 = vcmask 1045508
    %v319 = vsel %vm318, %v317, %v315
    %vm320 = vcmask 916480
    %v321 = vsel %vm320, %v319, %v309
    %322 = vrot.lane.b32.xlu0 %v321, 16
    %v323 = vpop.permute.xlu0 %322
    %vm324 = vcmask 130048
    %s325 = scalar_lea.vmem %s1, 12
    %326 = vst.msk [vmem:[%s325] ss:$16 sm:$0x3] %vm324, %v323
    %s327 = scalar_lea.vmem %s1, 12
    %328 = vst.msk [vmem:[%s327] ss:$16 sm:$0xc] %vm324, %v323
    %s329 = scalar_lea.vmem %s1, 12
    %330 = vst.msk [vmem:[%s329] ss:$16 sm:$0x30] %vm324, %v323
    %vm331 = vcmask 162944
    %s332 = scalar_lea.vmem %s1, 12
    %333 = vst.msk [vmem:[%s332] ss:$16 sm:$0x3] %vm331, %v323
    %s334 = scalar_lea.vmem %s1, 12
    %335 = vst.msk [vmem:[%s334] ss:$16 sm:$0xc] %vm331, %v323
    %s336 = scalar_lea.vmem %s1, 12
    %337 = vst.msk [vmem:[%s336] ss:$16 sm:$0x30] %vm331, %v323
    %v338 = vld [vmem:[#allocation0] sm:$0x3]
    %s339 = scalar_lea.vmem [#allocation0], 22
    %v340 = vld [vmem:[%s339] sm:$0xc]
    %vm341 = vcmask 1043458
    %v342 = vsel %vm341, %v340, %v338
    %s343 = scalar_lea.vmem [#allocation0], 44
    %v344 = vld [vmem:[%s343] sm:$0x30]
    %vm345 = vcmask 1045508
    %v346 = vsel %vm345, %v344, %v342
    %s347 = scalar_lea.vmem [#allocation0], 8
    %v348 = vld [vmem:[%s347] sm:$0x3]
    %s349 = scalar_lea.vmem [#allocation0], 30
    %v350 = vld [vmem:[%s349] sm:$0xc]
    %vm351 = vcmask 1043458
    %v352 = vsel %vm351, %v350, %v348
    %s353 = scalar_lea.vmem [#allocation0], 52
    %v354 = vld [vmem:[%s353] sm:$0x30]
    %vm355 = vcmask 1045508
    %v356 = vsel %vm355, %v354, %v352
    %vm357 = vcmask 982016
    %v358 = vsel %vm357, %v356, %v346
    %359 = vrot.lane.b32.xlu0 %v358, 8
    %v360 = vpop.permute.xlu0 %359
    %vm361 = vcmask 64512
    %s362 = scalar_lea.vmem %s1, 6
    %363 = vst.msk [vmem:[%s362] ss:$16 sm:$0x3] %vm361, %v360
    %s364 = scalar_lea.vmem %s1, 6
    %365 = vst.msk [vmem:[%s364] ss:$16 sm:$0xc] %vm361, %v360
    %s366 = scalar_lea.vmem %s1, 6
    %367 = vst.msk [vmem:[%s366] ss:$16 sm:$0x30] %vm361, %v360
    %vm368 = vcmask 162880
    %s369 = scalar_lea.vmem %s1, 6
    %370 = vst.msk [vmem:[%s369] ss:$16 sm:$0x3] %vm368, %v360
    %s371 = scalar_lea.vmem %s1, 6
    %372 = vst.msk [vmem:[%s371] ss:$16 sm:$0xc] %vm368, %v360
    %s373 = scalar_lea.vmem %s1, 6
    %374 = vst.msk [vmem:[%s373] ss:$16 sm:$0x30] %vm368, %v360

// kernel: forward.1
$region0: #{forward.1}
  #allocation0 [shape = 'u32[]', space=smem, size = 0x4, offset = 0x4, fixed_abs, tag = 'smem constant byte address 0x4 - core index']
  #allocation1 [shape = 'u32[144,128]{1,0:T(1,128)}', space=vmem, size = 0x12000, scoped, tag = 'internal scratch']
  %s0 = inlined_call_operand.vmem [shape: f32[2,32,480], index: 0, kind: input, shape index: {}]
  %s1 = inlined_call_operand.vmem [shape: f32[2,32,25], index: 1, kind: input, shape index: {}]
  %s2 = inlined_call_operand.vmem [shape: f32[2,32,1], index: 2, kind: input, shape index: {}]
  %s3 = inlined_call_operand.vmem [shape: bf16[2,32,32], index: 3, kind: input, shape index: {}]
  %s4 = inlined_call_operand.vmem [shape: f32[2,32,1], index: 4, kind: input, shape index: {}]
  %s5 = inlined_call_operand.vmem [shape: bf16[2,8,32], index: 5, kind: input, shape index: {}]
  %s6 = inlined_call_operand.vmem [shape: f32[2,8,1], index: 6, kind: input, shape index: {}]
  %s7 = inlined_call_operand.vmem [shape: f32[2,2,8,384], index: 7, kind: output, shape index: {}]
  %s8 = sld [smem:[#allocation0]]
  $region61: #{forward.1} parent=0
    _
  %s10 = ssub.s32 1, %s8
  %s11 = scalar_select 0, %s10, %s8
  loop: start=0, step=1, limit=6
  $region2: #{forward.1} parent=0 // loop_pre_header
    _
  $region3: #{forward.1} parent=0 // loop_header
    %s13 = sphi 0, %s17
    %p14 = scmp.ge.s32.totalorder %s13, 6
    %s20 = sphi 0, %s32
    %s21 = sphi 0, %s28
    %s22 = sphi 0, %s20
    %s23 = sphi 0, %s21
    %s24 = sphi 0, %s22
    %s25 = sphi 0, %s23
    %s35 = sphi 0, %s37
    %s38 = sphi 0, %s35
    %s39 = sphi 0, %s38
    %s55 = sphi 0, %s39
    %s61 = sphi 0, %s63
    %s64 = sphi 0, %s61
    %s65 = sphi 0, %s64
    %s81 = sphi 0, %s65
    %s87 = sphi 0, %s89
    %s90 = sphi 0, %s87
    %s91 = sphi 0, %s90
    %s107 = sphi 0, %s91
    %s113 = sphi 0, %s115
    %s116 = sphi 0, %s113
    %s117 = sphi 0, %s116
    %s133 = sphi 0, %s117
    %s139 = sphi 0, %s141
    %s142 = sphi 0, %s139
    %s143 = sphi 0, %s142
    %s159 = sphi 0, %s143
    %s165 = sphi 0, %s167
    %s168 = sphi 0, %s165
    %s169 = sphi 0, %s168
    %s185 = sphi 0, %s169
    %s191 = sphi 0, %s193
    %s194 = sphi 0, %s191
    %s195 = sphi 0, %s194
    %s211 = sphi 0, %s195
    %s219 = sphi 0, %s221
    %s222 = sphi 0, %s219
    %s223 = sphi 0, %s222
    %s239 = sphi 0, %s223
  $region4: #{forward.1} parent=0 // loop_header_branch
    %16 = sbr.rel (%p14) target = $region8
  $region5: #{forward.1} parent=0 // loop_body
    %s18 = ssub.s32 %s13, 1
    %s19 = ssub.s32 %s13, 2
    %s26 = sadd.s32 1, %s21
    %p27 = scmp.ge.s32.totalorder %s26, 2
    %s28 = scalar_select %p27, 0, %s26
    %s29 = sadd.s32 1, %s20
    %s30 = scalar_select %p27, %s29, %s20
    %p31 = scmp.ge.s32.totalorder %s30, 2
    %s32 = scalar_select %p31, 0, %s30
    %s33 = ssub.s32 %s20, %s32
    %p34 = scmp.eq.s32.totalorder %s33, 0
    %s36 = sadd.s32 %s35, 1
    %s37 = scalar_select %p34, %s35, %s36
    %p40 = pneg %p34
    %p41 = scmp.eq.s32.totalorder %s13, 3
    %p42 = por %p40, %p41
    %p43 = scmp.ne.s32.totalorder %s35, %s38
    %p44 = scmp.eq.s32.totalorder %s13, 0
    %p45 = por %p43, %p44
    %p46 = scmp.ne.s32.totalorder %s35, %s38
    %p47 = scmp.eq.s32.totalorder %s18, 3
    %p48 = por %p46, %p47
    %p49 = scmp.ne.s32.totalorder %s38, %s39
    %p50 = scmp.eq.s32.totalorder %s18, 0
    %p51 = por %p49, %p50
    %p52 = scmp.ne.s32.totalorder %s38, %s39
    %p53 = scmp.eq.s32.totalorder %s19, 3
    %p54 = por %p52, %p53
    %p56 = scmp.ne.s32.totalorder %s39, %s55
    %p57 = scmp.eq.s32.totalorder %s19, 0
    %p58 = por %p56, %p57
    %s59 = ssub.s32 %s21, %s28
    %p60 = scmp.eq.s32.totalorder %s59, 0
    %s62 = sadd.s32 %s61, 1
    %s63 = scalar_select %p60, %s61, %s62
    %p66 = pneg %p60
    %p67 = scmp.eq.s32.totalorder %s13, 3
    %p68 = por %p66, %p67
    %p69 = scmp.ne.s32.totalorder %s61, %s64
    %p70 = scmp.eq.s32.totalorder %s13, 0
    %p71 = por %p69, %p70
    %p72 = scmp.ne.s32.totalorder %s61, %s64
    %p73 = scmp.eq.s32.totalorder %s18, 3
    %p74 = por %p72, %p73
    %p75 = scmp.ne.s32.totalorder %s64, %s65
    %p76 = scmp.eq.s32.totalorder %s18, 0
    %p77 = por %p75, %p76
    %p78 = scmp.ne.s32.totalorder %s64, %s65
    %p79 = scmp.eq.s32.totalorder %s19, 3
    %p80 = por %p78, %p79
    %p82 = scmp.ne.s32.totalorder %s65, %s81
    %p83 = scmp.eq.s32.totalorder %s19, 0
    %p84 = por %p82, %p83
    %s85 = ssub.s32 %s21, %s28
    %p86 = scmp.eq.s32.totalorder %s85, 0
    %s88 = sadd.s32 %s87, 1
    %s89 = scalar_select %p86, %s87, %s88
    %p92 = pneg %p86
    %p93 = scmp.eq.s32.totalorder %s13, 3
    %p94 = por %p92, %p93
    %p95 = scmp.ne.s32.totalorder %s87, %s90
    %p96 = scmp.eq.s32.totalorder %s13, 0
    %p97 = por %p95, %p96
    %p98 = scmp.ne.s32.totalorder %s87, %s90
    %p99 = scmp.eq.s32.totalorder %s18, 3
    %p100 = por %p98, %p99
    %p101 = scmp.ne.s32.totalorder %s90, %s91
    %p102 = scmp.eq.s32.totalorder %s18, 0
    %p103 = por %p101, %p102
    %p104 = scmp.ne.s32.totalorder %s90, %s91
    %p105 = scmp.eq.s32.totalorder %s19, 3
    %p106 = por %p104, %p105
    %p108 = scmp.ne.s32.totalorder %s91, %s107
    %p109 = scmp.eq.s32.totalorder %s19, 0
    %p110 = por %p108, %p109
    %s111 = ssub.s32 %s21, %s28
    %p112 = scmp.eq.s32.totalorder %s111, 0
    %s114 = sadd.s32 %s113, 1
    %s115 = scalar_select %p112, %s113, %s114
    %p118 = pneg %p112
    %p119 = scmp.eq.s32.totalorder %s13, 3
    %p120 = por %p118, %p119
    %p121 = scmp.ne.s32.totalorder %s113, %s116
    %p122 = scmp.eq.s32.totalorder %s13, 0
    %p123 = por %p121, %p122
    %p124 = scmp.ne.s32.totalorder %s113, %s116
    %p125 = scmp.eq.s32.totalorder %s18, 3
    %p126 = por %p124, %p125
    %p127 = scmp.ne.s32.totalorder %s116, %s117
    %p128 = scmp.eq.s32.totalorder %s18, 0
    %p129 = por %p127, %p128
    %p130 = scmp.ne.s32.totalorder %s116, %s117
    %p131 = scmp.eq.s32.totalorder %s19, 3
    %p132 = por %p130, %p131
    %p134 = scmp.ne.s32.totalorder %s117, %s133
    %p135 = scmp.eq.s32.totalorder %s19, 0
    %p136 = por %p134, %p135
    %s137 = ssub.s32 %s21, %s28
    %p138 = scmp.eq.s32.totalorder %s137, 0
    %s140 = sadd.s32 %s139, 1
    %s141 = scalar_select %p138, %s139, %s140
    %p144 = pneg %p138
    %p145 = scmp.eq.s32.totalorder %s13, 3
    %p146 = por %p144, %p145
    %p147 = scmp.ne.s32.totalorder %s139, %s142
    %p148 = scmp.eq.s32.totalorder %s13, 0
    %p149 = por %p147, %p148
    %p150 = scmp.ne.s32.totalorder %s139, %s142
    %p151 = scmp.eq.s32.totalorder %s18, 3
    %p152 = por %p150, %p151
    %p153 = scmp.ne.s32.totalorder %s142, %s143
    %p154 = scmp.eq.s32.totalorder %s18, 0
    %p155 = por %p153, %p154
    %p156 = scmp.ne.s32.totalorder %s142, %s143
    %p157 = scmp.eq.s32.totalorder %s19, 3
    %p158 = por %p156, %p157
    %p160 = scmp.ne.s32.totalorder %s143, %s159
    %p161 = scmp.eq.s32.totalorder %s19, 0
    %p162 = por %p160, %p161
    %s163 = ssub.s32 %s21, %s28
    %p164 = scmp.eq.s32.totalorder %s163, 0
    %s166 = sadd.s32 %s165, 1
    %s167 = scalar_select %p164, %s165, %s166
    %p170 = pneg %p164
    %p171 = scmp.eq.s32.totalorder %s13, 3
    %p172 = por %p170, %p171
    %p173 = scmp.ne.s32.totalorder %s165, %s168
    %p174 = scmp.eq.s32.totalorder %s13, 0
    %p175 = por %p173, %p174
    %p176 = scmp.ne.s32.totalorder %s165, %s168
    %p177 = scmp.eq.s32.totalorder %s18, 3
    %p178 = por %p176, %p177
    %p179 = scmp.ne.s32.totalorder %s168, %s169
    %p180 = scmp.eq.s32.totalorder %s18, 0
    %p181 = por %p179, %p180
    %p182 = scmp.ne.s32.totalorder %s168, %s169
    %p183 = scmp.eq.s32.totalorder %s19, 3
    %p184 = por %p182, %p183
    %p186 = scmp.ne.s32.totalorder %s169, %s185
    %p187 = scmp.eq.s32.totalorder %s19, 0
    %p188 = por %p186, %p187
    %s189 = ssub.s32 %s21, %s28
    %p190 = scmp.eq.s32.totalorder %s189, 0
    %s192 = sadd.s32 %s191, 1
    %s193 = scalar_select %p190, %s191, %s192
    %p196 = pneg %p190
    %p197 = scmp.eq.s32.totalorder %s13, 3
    %p198 = por %p196, %p197
    %p199 = scmp.ne.s32.totalorder %s191, %s194
    %p200 = scmp.eq.s32.totalorder %s13, 0
    %p201 = por %p199, %p200
    %p202 = scmp.ne.s32.totalorder %s191, %s194
    %p203 = scmp.eq.s32.totalorder %s18, 3
    %p204 = por %p202, %p203
    %p205 = scmp.ne.s32.totalorder %s194, %s195
    %p206 = scmp.eq.s32.totalorder %s18, 0
    %p207 = por %p205, %p206
    %p208 = scmp.ne.s32.totalorder %s194, %s195
    %p209 = scmp.eq.s32.totalorder %s19, 3
    %p210 = por %p208, %p209
    %p212 = scmp.ne.s32.totalorder %s195, %s211
    %p213 = scmp.eq.s32.totalorder %s19, 0
    %p214 = por %p212, %p213
    %s215 = ssub.s32 %s20, %s32
    %s216 = ssub.s32 %s21, %s28
    %s217 = sor.u32 %s215, %s216
    %p218 = scmp.eq.s32.totalorder %s217, 0
    %s220 = sadd.s32 %s219, 1
    %s221 = scalar_select %p218, %s219, %s220
    %p224 = pneg %p218
    %p225 = scmp.eq.s32.totalorder %s13, 3
    %p226 = por %p224, %p225
    %p227 = scmp.ne.s32.totalorder %s219, %s222
    %p228 = scmp.eq.s32.totalorder %s13, 0
    %p229 = por %p227, %p228
    %p230 = scmp.ne.s32.totalorder %s219, %s222
    %p231 = scmp.eq.s32.totalorder %s18, 3
    %p232 = por %p230, %p231
    %p233 = scmp.ne.s32.totalorder %s222, %s223
    %p234 = scmp.eq.s32.totalorder %s18, 0
    %p235 = por %p233, %p234
    %p236 = scmp.ne.s32.totalorder %s222, %s223
    %p237 = scmp.eq.s32.totalorder %s19, 3
    %p238 = por %p236, %p237
    %p240 = scmp.ne.s32.totalorder %s223, %s239
    %p241 = scmp.eq.s32.totalorder %s19, 0
    %p242 = por %p240, %p241
    %p243 = scmp.le.s32.totalorder 1, %s13
    %p244 = scmp.lt.s32.totalorder %s13, 5
    %p245 = pnand %p243, %p244
    %p246 = pneg %p245
    // Predicated region
    $region9: #{forward.1} parent=5 // pred_check
      _
    $region10: #{forward.1} parent=5 // pred_check_branch
      %248 = sbr.rel (%p245) target = $region12
    $region11: #{forward.1} parent=5 // pred_region
      %s249 = ssub.s32 %s13, 1
    $region12: #{forward.1} parent=5 // pred_fallthru
      _
    %p250 = scmp.lt.s32.totalorder %s13, 4
    // Predicated region
    $region13: #{forward.1} parent=5 // pred_check
      %p251 = pneg %p250
    $region14: #{forward.1} parent=5 // pred_check_branch
      %253 = sbr.rel (%p251) target = $region16
    $region15: #{forward.1} parent=5 // pred_region
      // Predicated region
      $region17: #{forward.1} parent=15 // pred_check
        %p254 = pneg %p45
      $region18: #{forward.1} parent=15 // pred_check_branch
        %256 = sbr.rel (%p254) target = $region20
      $region19: #{forward.1} parent=15 // pred_region
        %p257 = scmp.lt.s32.totalorder %s20, 1
        %s258 = scalar_select %p257, %s20, 1
        %s259 = smul.addr %s258, 16
        %s260 = smul.addr %s259, 8
        %s261 = scalar_lea.vmem %s0, %s260
      $region20: #{forward.1} parent=15 // pred_fallthru
        _
      // Predicated region
      $region21: #{forward.1} parent=15 // pred_check
        %p262 = pneg %p71
      $region22: #{forward.1} parent=15 // pred_check_branch
        %264 = sbr.rel (%p262) target = $region24
      $region23: #{forward.1} parent=15 // pred_region
        %p265 = scmp.lt.s32.totalorder %s21, 1
        %s266 = scalar_select %p265, %s21, 1
        %s267 = smul.addr %s266, 4
        %s268 = smul.addr %s267, 8
        %s269 = scalar_lea.vmem %s1, %s268
      $region24: #{forward.1} parent=15 // pred_fallthru
        _
      // Predicated region
      $region25: #{forward.1} parent=15 // pred_check
        %p270 = pneg %p97
      $region26: #{forward.1} parent=15 // pred_check_branch
        %272 = sbr.rel (%p270) target = $region28
      $region27: #{forward.1} parent=15 // pred_region
        %p273 = scmp.lt.s32.totalorder %s21, 1
        %s274 = scalar_select %p273, %s21, 1
        %s275 = smul.addr %s274, 4
        %s276 = smul.addr %s275, 8
        %s277 = scalar_lea.vmem %s2, %s276
      $region28: #{forward.1} parent=15 // pred_fallthru
        _
      // Predicated region
      $region29: #{forward.1} parent=15 // pred_check
        %p278 = pneg %p123
      $region30: #{forward.1} parent=15 // pred_check_branch
        %280 = sbr.rel (%p278) target = $region32
      $region31: #{forward.1} parent=15 // pred_region
        %p281 = scmp.lt.s32.totalorder %s21, 1
        %s282 = scalar_select %p281, %s21, 1
        %s283 = smul.addr %s282, 4
        %s284 = smul.addr %s283, 4
        %s285 = scalar_lea.vmem %s3, %s284
      $region32: #{forward.1} parent=15 // pred_fallthru
        _
      // Predicated region
      $region33: #{forward.1} parent=15 // pred_check
        %p286 = pneg %p149
      $region34: #{forward.1} parent=15 // pred_check_branch
        %288 = sbr.rel (%p286) target = $region36
      $region35: #{forward.1} parent=15 // pred_region
        %p289 = scmp.lt.s32.totalorder %s21, 1
        %s290 = scalar_select %p289, %s21, 1
        %s291 = smul.addr %s290, 4
        %s292 = smul.addr %s291, 8
        %s293 = scalar_lea.vmem %s4, %s292
      $region36: #{forward.1} parent=15 // pred_fallthru
        _
      // Predicated region
      $region37: #{forward.1} parent=15 // pred_check
        %p294 = pneg %p175
      $region38: #{forward.1} parent=15 // pred_check_branch
        %296 = sbr.rel (%p294) target = $region40
      $region39: #{forward.1} parent=15 // pred_region
        %p297 = scmp.lt.s32.totalorder %s21, 1
        %s298 = scalar_select %p297, %s21, 1
        %s299 = smul.addr %s298, 4
        %s300 = scalar_lea.vmem %s5, %s299
      $region40: #{forward.1} parent=15 // pred_fallthru
        _
      // Predicated region
      $region41: #{forward.1} parent=15 // pred_check
        %p301 = pneg %p201
      $region42: #{forward.1} parent=15 // pred_check_branch
        %303 = sbr.rel (%p301) target = $region44
      $region43: #{forward.1} parent=15 // pred_region
        %p304 = scmp.lt.s32.totalorder %s21, 1
        %s305 = scalar_select %p304, %s21, 1
        %s306 = smul.addr %s305, 8
        %s307 = scalar_lea.vmem %s6, %s306
      $region44: #{forward.1} parent=15 // pred_fallthru
        _
    $region16: #{forward.1} parent=5 // pred_fallthru
      _
    %p308 = scmp.le.s32.totalorder 1, %s13
    %p309 = scmp.lt.s32.totalorder %s13, 5
    %p310 = pnand %p308, %p309
    %p311 = pneg %p310
    // Predicated region
    $region45: #{forward.1} parent=5 // pred_check
      _
    $region46: #{forward.1} parent=5 // pred_check_branch
      %313 = sbr.rel (%p310) target = $region48
    $region47: #{forward.1} parent=5 // pred_region
      %s314 = ssub.s32 %s13, 1
      %p315 = scmp.lt.s32.totalorder %s22, 1
      %s316 = scalar_select %p315, %s22, 1
      %s317 = smul.addr %s316, 16
      %s318 = smul.addr %s317, 8
      %s319 = scalar_lea.vmem %s0, %s318
      %p320 = pneg %p51
      %p321 = pneg %p48
      %p322 = scmp.lt.s32.totalorder %s23, 1
      %s323 = scalar_select %p322, %s23, 1
      %s324 = smul.addr %s323, 4
      %s325 = smul.addr %s324, 8
      %s326 = scalar_lea.vmem %s1, %s325
      %p327 = pneg %p77
      %p328 = pneg %p74
      %p329 = scmp.lt.s32.totalorder %s23, 1
      %s330 = scalar_select %p329, %s23, 1
      %s331 = smul.addr %s330, 4
      %s332 = smul.addr %s331, 8
      %s333 = scalar_lea.vmem %s2, %s332
      %p334 = pneg %p103
      %p335 = pneg %p100
      %p336 = scmp.lt.s32.totalorder %s23, 1
      %s337 = scalar_select %p336, %s23, 1
      %s338 = smul.addr %s337, 4
      %s339 = smul.addr %s338, 4
      %s340 = scalar_lea.vmem %s3, %s339
      %p341 = pneg %p129
      %p342 = pneg %p126
      %p343 = scmp.lt.s32.totalorder %s23, 1
      %s344 = scalar_select %p343, %s23, 1
      %s345 = smul.addr %s344, 4
      %s346 = smul.addr %s345, 8
      %s347 = scalar_lea.vmem %s4, %s346
      %p348 = pneg %p155
      %p349 = pneg %p152
      %p350 = scmp.lt.s32.totalorder %s23, 1
      %s351 = scalar_select %p350, %s23, 1
      %s352 = smul.addr %s351, 4
      %s353 = scalar_lea.vmem %s5, %s352
      %p354 = pneg %p181
      %p355 = pneg %p178
      %p356 = scmp.lt.s32.totalorder %s23, 1
      %s357 = scalar_select %p356, %s23, 1
      %s358 = smul.addr %s357, 8
      %s359 = scalar_lea.vmem %s6, %s358
      %p360 = pneg %p207
      %p361 = pneg %p204
      %p362 = pneg %p235
      %p363 = pneg %p232
      %p364 = scmp.lt.s32.totalorder %s22, 1
      %s365 = scalar_select %p364, %s22, 1
      %p366 = scmp.lt.s32.totalorder %s23, 1
      %s367 = scalar_select %p366, %s23, 1
      %s368 = smul.addr %s367, 3
      %s369 = smul.addr %s365, 6
      %s370 = sadd.s32 %s368, %s369
      %s371 = smul.addr %s370, 8
      %s372 = scalar_lea.vmem %s7, %s371
      %p373 = scmp.lt.s32.totalorder %s22, 1
      %s374 = scalar_select %p373, %s22, 1
      %s375 = smul.addr %s374, 16
      %s376 = smul.addr %s375, 8
      %s377 = scalar_lea.vmem %s0, %s376
      %p378 = scmp.lt.s32.totalorder %s23, 1
      %s379 = scalar_select %p378, %s23, 1
      %s380 = smul.addr %s379, 4
      %s381 = smul.addr %s380, 8
      %s382 = scalar_lea.vmem %s1, %s381
      %p383 = scmp.lt.s32.totalorder %s23, 1
      %s384 = scalar_select %p383, %s23, 1
      %s385 = smul.addr %s384, 4
      %s386 = smul.addr %s385, 8
      %s387 = scalar_lea.vmem %s2, %s386
      %p388 = scmp.lt.s32.totalorder %s23, 1
      %s389 = scalar_select %p388, %s23, 1
      %s390 = smul.addr %s389, 4
      %s391 = smul.addr %s390, 4
      %s392 = scalar_lea.vmem %s3, %s391
      %p393 = scmp.lt.s32.totalorder %s23, 1
      %s394 = scalar_select %p393, %s23, 1
      %s395 = smul.addr %s394, 4
      %s396 = smul.addr %s395, 8
      %s397 = scalar_lea.vmem %s4, %s396
      %p398 = scmp.lt.s32.totalorder %s23, 1
      %s399 = scalar_select %p398, %s23, 1
      %s400 = smul.addr %s399, 4
      %s401 = scalar_lea.vmem %s5, %s400
      %p402 = scmp.lt.s32.totalorder %s23, 1
      %s403 = scalar_select %p402, %s23, 1
      %s404 = smul.addr %s403, 8
      %s405 = scalar_lea.vmem %s6, %s404
      %p406 = scmp.lt.s32.totalorder %s22, 1
      %s407 = scalar_select %p406, %s22, 1
      %p408 = scmp.lt.s32.totalorder %s23, 1
      %s409 = scalar_select %p408, %s23, 1
      %s410 = smul.addr %s409, 3
      %s411 = smul.addr %s407, 6
      %s412 = sadd.s32 %s410, %s411
      %s413 = smul.addr %s412, 8
      %s414 = scalar_lea.vmem %s7, %s413
      %v416 = vld [vmem:[%s377] sm:$0xff]
      %v417 = vld [vmem:[%s377 + $0x8] sm:$0xff]
      %v418 = vld [vmem:[%s377 + $0x10] sm:$0xff]
      %v419 = vld [vmem:[%s377 + $0x20] sm:$0xff]
      %v420 = vld [vmem:[%s377 + $0x28] sm:$0xff]
      %v421 = vld [vmem:[%s377 + $0x30] sm:$0xff]
      %v422 = vld [vmem:[%s377 + $0x40] sm:$0xff]
      %v423 = vld [vmem:[%s377 + $0x48] sm:$0xff]
      %v424 = vld [vmem:[%s377 + $0x50] sm:$0xff]
      %v425 = vld [vmem:[%s377 + $0x60] sm:$0xff]
      %v426 = vld [vmem:[%s377 + $0x68] sm:$0xff]
      %v427 = vld [vmem:[%s377 + $0x70] sm:$0xff]
      %v428 = vld [vmem:[%s382] sm:$0xff]
      %v429 = vld [vmem:[%s382 + $0x8] sm:$0xff]
      %v430 = vld [vmem:[%s382 + $0x10] sm:$0xff]
      %v431 = vld [vmem:[%s382 + $0x18] sm:$0xff]
      %433 = vset.pattern.permute.xlu0 0
      %434 = vperm.xlu0 %433, %v428
      %v435 = vpop.permute.xlu0 %434
      %438 = vset.pattern.permute.xlu0 0
      %439 = vperm.xlu0 %438, %v429
      %v440 = vpop.permute.xlu0 %439
      %443 = vset.pattern.permute.xlu0 0
      %444 = vperm.xlu0 %443, %v430
      %v445 = vpop.permute.xlu0 %444
      %448 = vset.pattern.permute.xlu0 0
      %449 = vperm.xlu0 %448, %v431
      %v450 = vpop.permute.xlu0 %449
      %v452 = vmul.f32 %v416, %v435
      %v453 = vmul.f32 %v417, %v435
      %v454 = vmul.f32 %v418, %v435
      %v455 = vmul.f32 %v419, %v440
      %v456 = vmul.f32 %v420, %v440
      %v457 = vmul.f32 %v421, %v440
      %v458 = vmul.f32 %v422, %v445
      %v459 = vmul.f32 %v423, %v445
      %v460 = vmul.f32 %v424, %v445
      %v461 = vmul.f32 %v425, %v450
      %v462 = vmul.f32 %v426, %v450
      %v463 = vmul.f32 %v427, %v450
      %v464 = vld [vmem:[%s377] sm:$0xff]
      %v465 = vld [vmem:[%s377 + $0x8] sm:$0xff]
      %v466 = vld [vmem:[%s377 + $0x10] sm:$0xff]
      %v467 = vld [vmem:[%s377 + $0x18] sm:$0xff]
      %v468 = vld [vmem:[%s377 + $0x20] sm:$0xff]
      %v469 = vld [vmem:[%s377 + $0x28] sm:$0xff]
      %v470 = vld [vmem:[%s377 + $0x30] sm:$0xff]
      %v471 = vld [vmem:[%s377 + $0x38] sm:$0xff]
      %v472 = vld [vmem:[%s377 + $0x40] sm:$0xff]
      %v473 = vld [vmem:[%s377 + $0x48] sm:$0xff]
      %v474 = vld [vmem:[%s377 + $0x50] sm:$0xff]
      %v475 = vld [vmem:[%s377 + $0x58] sm:$0xff]
      %v476 = vld [vmem:[%s377 + $0x60] sm:$0xff]
      %v477 = vld [vmem:[%s377 + $0x68] sm:$0xff]
      %v478 = vld [vmem:[%s377 + $0x70] sm:$0xff]
      %v479 = vld [vmem:[%s377 + $0x78] sm:$0xff]
      %480 = vset.pattern.permute.xlu0 1
      %481 = vperm.xlu0 %480, %v428
      %v482 = vpop.permute.xlu0 %481
      %484 = vset.pattern.permute.xlu0 1
      %485 = vperm.xlu0 %484, %v429
      %v486 = vpop.permute.xlu0 %485
      %488 = vset.pattern.permute.xlu0 1
      %489 = vperm.xlu0 %488, %v430
      %v490 = vpop.permute.xlu0 %489
      %492 = vset.pattern.permute.xlu0 1
      %493 = vperm.xlu0 %492, %v431
      %v494 = vpop.permute.xlu0 %493
      %v496 = vmul.f32 %v464, %v482
      %v497 = vmul.f32 %v465, %v482
      %v498 = vmul.f32 %v466, %v482
      %v499 = vmul.f32 %v467, %v482
      %v500 = vmul.f32 %v468, %v486
      %v501 = vmul.f32 %v469, %v486
      %v502 = vmul.f32 %v470, %v486
      %v503 = vmul.f32 %v471, %v486
      %v504 = vmul.f32 %v472, %v490
      %v505 = vmul.f32 %v473, %v490
      %v506 = vmul.f32 %v474, %v490
      %v507 = vmul.f32 %v475, %v490
      %v508 = vmul.f32 %v476, %v494
      %v509 = vmul.f32 %v477, %v494
      %v510 = vmul.f32 %v478, %v494
      %v511 = vmul.f32 %v479, %v494
      %512 = vset.pattern.permute.xlu0 2
      %513 = vperm.xlu0 %512, %v428
      %v514 = vpop.permute.xlu0 %513
      %516 = vset.pattern.permute.xlu0 2
      %517 = vperm.xlu0 %516, %v429
      %v518 = vpop.permute.xlu0 %517
      %520 = vset.pattern.permute.xlu0 2
      %521 = vperm.xlu0 %520, %v430
      %v522 = vpop.permute.xlu0 %521
      %524 = vset.pattern.permute.xlu0 2
      %525 = vperm.xlu0 %524, %v431
      %v526 = vpop.permute.xlu0 %525
      %v528 = vmul.f32 %v464, %v514
      %v529 = vmul.f32 %v465, %v514
      %v530 = vmul.f32 %v466, %v514
      %v531 = vmul.f32 %v467, %v514
      %v532 = vmul.f32 %v468, %v518
      %v533 = vmul.f32 %v469, %v518
      %v534 = vmul.f32 %v470, %v518
      %v535 = vmul.f32 %v471, %v518
      %v536 = vmul.f32 %v472, %v522
      %v537 = vmul.f32 %v473, %v522
      %v538 = vmul.f32 %v474, %v522
      %v539 = vmul.f32 %v475, %v522
      %v540 = vmul.f32 %v476, %v526
      %v541 = vmul.f32 %v477, %v526
      %v542 = vmul.f32 %v478, %v526
      %v543 = vmul.f32 %v479, %v526
      %544 = vset.pattern.permute.xlu0 3
      %545 = vperm.xlu0 %544, %v428
      %v546 = vpop.permute.xlu0 %545
      %548 = vset.pattern.permute.xlu0 3
      %549 = vperm.xlu0 %548, %v429
      %v550 = vpop.permute.xlu0 %549
      %552 = vset.pattern.permute.xlu0 3
      %553 = vperm.xlu0 %552, %v430
      %v554 = vpop.permute.xlu0 %553
      %556 = vset.pattern.permute.xlu0 3
      %557 = vperm.xlu0 %556, %v431
      %v558 = vpop.permute.xlu0 %557
      %v560 = vmul.f32 %v464, %v546
      %v561 = vmul.f32 %v465, %v546
      %v562 = vmul.f32 %v466, %v546
      %v563 = vmul.f32 %v467, %v546
      %v564 = vmul.f32 %v468, %v550
      %v565 = vmul.f32 %v469, %v550
      %v566 = vmul.f32 %v470, %v550
      %v567 = vmul.f32 %v471, %v550
      %v568 = vmul.f32 %v472, %v554
      %v569 = vmul.f32 %v473, %v554
      %v570 = vmul.f32 %v474, %v554
      %v571 = vmul.f32 %v475, %v554
      %v572 = vmul.f32 %v476, %v558
      %v573 = vmul.f32 %v477, %v558
      %v574 = vmul.f32 %v478, %v558
      %v575 = vmul.f32 %v479, %v558
      %576 = vset.pattern.permute.xlu0 4
      %577 = vperm.xlu0 %576, %v428
      %v578 = vpop.permute.xlu0 %577
      %580 = vset.pattern.permute.xlu0 4
      %581 = vperm.xlu0 %580, %v429
      %v582 = vpop.permute.xlu0 %581
      %584 = vset.pattern.permute.xlu0 4
      %585 = vperm.xlu0 %584, %v430
      %v586 = vpop.permute.xlu0 %585
      %588 = vset.pattern.permute.xlu0 4
      %589 = vperm.xlu0 %588, %v431
      %v590 = vpop.permute.xlu0 %589
      %v592 = vmul.f32 %v464, %v578
      %v593 = vmul.f32 %v465, %v578
      %v594 = vmul.f32 %v466, %v578
      %v595 = vmul.f32 %v467, %v578
      %v596 = vmul.f32 %v468, %v582
      %v597 = vmul.f32 %v469, %v582
      %v598 = vmul.f32 %v470, %v582
      %v599 = vmul.f32 %v471, %v582
      %v600 = vmul.f32 %v472, %v586
      %v601 = vmul.f32 %v473, %v586
      %v602 = vmul.f32 %v474, %v586
      %v603 = vmul.f32 %v475, %v586
      %v604 = vmul.f32 %v476, %v590
      %v605 = vmul.f32 %v477, %v590
      %v606 = vmul.f32 %v478, %v590
      %v607 = vmul.f32 %v479, %v590
      %624 = vrot.lane.b32.xlu0 %v592, 124
      %v625 = vpop.permute.xlu0 %624
      %626 = vrot.lane.b32.xlu0 %v593, 124
      %v627 = vpop.permute.xlu0 %626
      %628 = vrot.lane.b32.xlu0 %v594, 124
      %v629 = vpop.permute.xlu0 %628
      %630 = vrot.lane.b32.xlu0 %v595, 124
      %v631 = vpop.permute.xlu0 %630
      %632 = vrot.lane.b32.xlu0 %v596, 124
      %v633 = vpop.permute.xlu0 %632
      %634 = vrot.lane.b32.xlu0 %v597, 124
      %v635 = vpop.permute.xlu0 %634
      %636 = vrot.lane.b32.xlu0 %v598, 124
      %v637 = vpop.permute.xlu0 %636
      %638 = vrot.lane.b32.xlu0 %v599, 124
      %v639 = vpop.permute.xlu0 %638
      %640 = vrot.lane.b32.xlu0 %v600, 124
      %v641 = vpop.permute.xlu0 %640
      %642 = vrot.lane.b32.xlu0 %v601, 124
      %v643 = vpop.permute.xlu0 %642
      %644 = vrot.lane.b32.xlu0 %v602, 124
      %v645 = vpop.permute.xlu0 %644
      %646 = vrot.lane.b32.xlu0 %v603, 124
      %v647 = vpop.permute.xlu0 %646
      %648 = vrot.lane.b32.xlu0 %v604, 124
      %v649 = vpop.permute.xlu0 %648
      %650 = vrot.lane.b32.xlu0 %v605, 124
      %v651 = vpop.permute.xlu0 %650
      %652 = vrot.lane.b32.xlu0 %v606, 124
      %v653 = vpop.permute.xlu0 %652
      %654 = vrot.lane.b32.xlu0 %v607, 124
      %v655 = vpop.permute.xlu0 %654
      %vm656 = vcmask 1014784
      %v657 = vsel %vm656, %v625, %v627
      %v658 = vsel %vm656, %v627, %v629
      %v659 = vsel %vm656, %v629, %v631
      %v660 = vsel %vm656, %v633, %v635
      %v661 = vsel %vm656, %v635, %v637
      %v662 = vsel %vm656, %v637, %v639
      %v663 = vsel %vm656, %v641, %v643
      %v664 = vsel %vm656, %v643, %v645
      %v665 = vsel %vm656, %v645, %v647
      %v666 = vsel %vm656, %v649, %v651
      %v667 = vsel %vm656, %v651, %v653
      %v668 = vsel %vm656, %v653, %v655
      %v681 = vadd.f32 %v452, %v657
      %v682 = vadd.f32 %v453, %v658
      %v683 = vadd.f32 %v454, %v659
      %v684 = vadd.f32 %v455, %v660
      %v685 = vadd.f32 %v456, %v661
      %v686 = vadd.f32 %v457, %v662
      %v687 = vadd.f32 %v458, %v663
      %v688 = vadd.f32 %v459, %v664
      %v689 = vadd.f32 %v460, %v665
      %v690 = vadd.f32 %v461, %v666
      %v691 = vadd.f32 %v462, %v667
      %v692 = vadd.f32 %v463, %v668
      %693 = vset.pattern.permute.xlu0 5
      %694 = vperm.xlu0 %693, %v428
      %v695 = vpop.permute.xlu0 %694
      %697 = vset.pattern.permute.xlu0 5
      %698 = vperm.xlu0 %697, %v429
      %v699 = vpop.permute.xlu0 %698
      %701 = vset.pattern.permute.xlu0 5
      %702 = vperm.xlu0 %701, %v430
      %v703 = vpop.permute.xlu0 %702
      %705 = vset.pattern.permute.xlu0 5
      %706 = vperm.xlu0 %705, %v431
      %v707 = vpop.permute.xlu0 %706
      %v709 = vmul.f32 %v464, %v695
      %v710 = vmul.f32 %v465, %v695
      %v711 = vmul.f32 %v466, %v695
      %v712 = vmul.f32 %v467, %v695
      %v713 = vmul.f32 %v468, %v699
      %v714 = vmul.f32 %v469, %v699
      %v715 = vmul.f32 %v470, %v699
      %v716 = vmul.f32 %v471, %v699
      %v717 = vmul.f32 %v472, %v703
      %v718 = vmul.f32 %v473, %v703
      %v719 = vmul.f32 %v474, %v703
      %v720 = vmul.f32 %v475, %v703
      %v721 = vmul.f32 %v476, %v707
      %v722 = vmul.f32 %v477, %v707
      %v723 = vmul.f32 %v478, %v707
      %v724 = vmul.f32 %v479, %v707
      %741 = vrot.lane.b32.xlu0 %v709, 109
      %v742 = vpop.permute.xlu0 %741
      %743 = vrot.lane.b32.xlu0 %v710, 109
      %v744 = vpop.permute.xlu0 %743
      %745 = vrot.lane.b32.xlu0 %v711, 109
      %v746 = vpop.permute.xlu0 %745
      %747 = vrot.lane.b32.xlu0 %v712, 109
      %v748 = vpop.permute.xlu0 %747
      %749 = vrot.lane.b32.xlu0 %v713, 109
      %v750 = vpop.permute.xlu0 %749
      %751 = vrot.lane.b32.xlu0 %v714, 109
      %v752 = vpop.permute.xlu0 %751
      %753 = vrot.lane.b32.xlu0 %v715, 109
      %v754 = vpop.permute.xlu0 %753
      %755 = vrot.lane.b32.xlu0 %v716, 109
      %v756 = vpop.permute.xlu0 %755
      %757 = vrot.lane.b32.xlu0 %v717, 109
      %v758 = vpop.permute.xlu0 %757
      %759 = vrot.lane.b32.xlu0 %v718, 109
      %v760 = vpop.permute.xlu0 %759
      %761 = vrot.lane.b32.xlu0 %v719, 109
      %v762 = vpop.permute.xlu0 %761
      %763 = vrot.lane.b32.xlu0 %v720, 109
      %v764 = vpop.permute.xlu0 %763
      %765 = vrot.lane.b32.xlu0 %v721, 109
      %v766 = vpop.permute.xlu0 %765
      %767 = vrot.lane.b32.xlu0 %v722, 109
      %v768 = vpop.permute.xlu0 %767
      %769 = vrot.lane.b32.xlu0 %v723, 109
      %v770 = vpop.permute.xlu0 %769
      %771 = vrot.lane.b32.xlu0 %v724, 109
      %v772 = vpop.permute.xlu0 %771
      %vm773 = vcmask 891904
      %v774 = vsel %vm773, %v742, %v744
      %v775 = vsel %vm773, %v744, %v746
      %v776 = vsel %vm773, %v746, %v748
      %v777 = vsel %vm773, %v750, %v752
      %v778 = vsel %vm773, %v752, %v754
      %v779 = vsel %vm773, %v754, %v756
      %v780 = vsel %vm773, %v758, %v760
      %v781 = vsel %vm773, %v760, %v762
      %v782 = vsel %vm773, %v762, %v764
      %v783 = vsel %vm773, %v766, %v768
      %v784 = vsel %vm773, %v768, %v770
      %v785 = vsel %vm773, %v770, %v772
      %v802 = vadd.f32 %v496, %v774
      %v803 = vadd.f32 %v497, %v775
      %v804 = vadd.f32 %v498, %v776
      %v805 = vadd.f32 %v499, %v748
      %v806 = vadd.f32 %v500, %v777
      %v807 = vadd.f32 %v501, %v778
      %v808 = vadd.f32 %v502, %v779
      %v809 = vadd.f32 %v503, %v756
      %v810 = vadd.f32 %v504, %v780
      %v811 = vadd.f32 %v505, %v781
      %v812 = vadd.f32 %v506, %v782
      %v813 = vadd.f32 %v507, %v764
      %v814 = vadd.f32 %v508, %v783
      %v815 = vadd.f32 %v509, %v784
      %v816 = vadd.f32 %v510, %v785
      %v817 = vadd.f32 %v511, %v772
      %818 = vset.pattern.permute.xlu0 6
      %819 = vperm.xlu0 %818, %v428
      %v820 = vpop.permute.xlu0 %819
      %822 = vset.pattern.permute.xlu0 6
      %823 = vperm.xlu0 %822, %v429
      %v824 = vpop.permute.xlu0 %823
      %826 = vset.pattern.permute.xlu0 6
      %827 = vperm.xlu0 %826, %v430
      %v828 = vpop.permute.xlu0 %827
      %830 = vset.pattern.permute.xlu0 6
      %831 = vperm.xlu0 %830, %v431
      %v832 = vpop.permute.xlu0 %831
      %v834 = vmul.f32 %v464, %v820
      %v835 = vmul.f32 %v465, %v820
      %v836 = vmul.f32 %v466, %v820
      %v837 = vmul.f32 %v467, %v820
      %v838 = vmul.f32 %v468, %v824
      %v839 = vmul.f32 %v469, %v824
      %v840 = vmul.f32 %v470, %v824
      %v841 = vmul.f32 %v471, %v824
      %v842 = vmul.f32 %v472, %v828
      %v843 = vmul.f32 %v473, %v828
      %v844 = vmul.f32 %v474, %v828
      %v845 = vmul.f32 %v475, %v828
      %v846 = vmul.f32 %v476, %v832
      %v847 = vmul.f32 %v477, %v832
      %v848 = vmul.f32 %v478, %v832
      %v849 = vmul.f32 %v479, %v832
      %866 = vrot.lane.b32.xlu0 %v834, 109
      %v867 = vpop.permute.xlu0 %866
      %868 = vrot.lane.b32.xlu0 %v835, 109
      %v869 = vpop.permute.xlu0 %868
      %870 = vrot.lane.b32.xlu0 %v836, 109
      %v871 = vpop.permute.xlu0 %870
      %872 = vrot.lane.b32.xlu0 %v837, 109
      %v873 = vpop.permute.xlu0 %872
      %874 = vrot.lane.b32.xlu0 %v838, 109
      %v875 = vpop.permute.xlu0 %874
      %876 = vrot.lane.b32.xlu0 %v839, 109
      %v877 = vpop.permute.xlu0 %876
      %878 = vrot.lane.b32.xlu0 %v840, 109
      %v879 = vpop.permute.xlu0 %878
      %880 = vrot.lane.b32.xlu0 %v841, 109
      %v881 = vpop.permute.xlu0 %880
      %882 = vrot.lane.b32.xlu0 %v842, 109
      %v883 = vpop.permute.xlu0 %882
      %884 = vrot.lane.b32.xlu0 %v843, 109
      %v885 = vpop.permute.xlu0 %884
      %886 = vrot.lane.b32.xlu0 %v844, 109
      %v887 = vpop.permute.xlu0 %886
      %888 = vrot.lane.b32.xlu0 %v845, 109
      %v889 = vpop.permute.xlu0 %888
      %890 = vrot.lane.b32.xlu0 %v846, 109
      %v891 = vpop.permute.xlu0 %890
      %892 = vrot.lane.b32.xlu0 %v847, 109
      %v893 = vpop.permute.xlu0 %892
      %894 = vrot.lane.b32.xlu0 %v848, 109
      %v895 = vpop.permute.xlu0 %894
      %896 = vrot.lane.b32.xlu0 %v849, 109
      %v897 = vpop.permute.xlu0 %896
      %v898 = vsel %vm773, %v867, %v869
      %v899 = vsel %vm773, %v869, %v871
      %v900 = vsel %vm773, %v871, %v873
      %v901 = vsel %vm773, %v875, %v877
      %v902 = vsel %vm773, %v877, %v879
      %v903 = vsel %vm773, %v879, %v881
      %v904 = vsel %vm773, %v883, %v885
      %v905 = vsel %vm773, %v885, %v887
      %v906 = vsel %vm773, %v887, %v889
      %v907 = vsel %vm773, %v891, %v893
      %v908 = vsel %vm773, %v893, %v895
      %v909 = vsel %vm773, %v895, %v897
      %v926 = vadd.f32 %v528, %v898
      %v927 = vadd.f32 %v529, %v899
      %v928 = vadd.f32 %v530, %v900
      %v929 = vadd.f32 %v531, %v873
      %v930 = vadd.f32 %v532, %v901
      %v931 = vadd.f32 %v533, %v902
      %v932 = vadd.f32 %v534, %v903
      %v933 = vadd.f32 %v535, %v881
      %v934 = vadd.f32 %v536, %v904
      %v935 = vadd.f32 %v537, %v905
      %v936 = vadd.f32 %v538, %v906
      %v937 = vadd.f32 %v539, %v889
      %v938 = vadd.f32 %v540, %v907
      %v939 = vadd.f32 %v541, %v908
      %v940 = vadd.f32 %v542, %v909
      %v941 = vadd.f32 %v543, %v897
      %942 = vset.pattern.permute.xlu0 7
      %943 = vperm.xlu0 %942, %v428
      %v944 = vpop.permute.xlu0 %943
      %946 = vset.pattern.permute.xlu0 7
      %947 = vperm.xlu0 %946, %v429
      %v948 = vpop.permute.xlu0 %947
      %950 = vset.pattern.permute.xlu0 7
      %951 = vperm.xlu0 %950, %v430
      %v952 = vpop.permute.xlu0 %951
      %954 = vset.pattern.permute.xlu0 7
      %955 = vperm.xlu0 %954, %v431
      %v956 = vpop.permute.xlu0 %955
      %v958 = vmul.f32 %v464, %v944
      %v959 = vmul.f32 %v465, %v944
      %v960 = vmul.f32 %v466, %v944
      %v961 = vmul.f32 %v467, %v944
      %v962 = vmul.f32 %v468, %v948
      %v963 = vmul.f32 %v469, %v948
      %v964 = vmul.f32 %v470, %v948
      %v965 = vmul.f32 %v471, %v948
      %v966 = vmul.f32 %v472, %v952
      %v967 = vmul.f32 %v473, %v952
      %v968 = vmul.f32 %v474, %v952
      %v969 = vmul.f32 %v475, %v952
      %v970 = vmul.f32 %v476, %v956
      %v971 = vmul.f32 %v477, %v956
      %v972 = vmul.f32 %v478, %v956
      %v973 = vmul.f32 %v479, %v956
      %990 = vrot.lane.b32.xlu0 %v958, 109
      %v991 = vpop.permute.xlu0 %990
      %992 = vrot.lane.b32.xlu0 %v959, 109
      %v993 = vpop.permute.xlu0 %992
      %994 = vrot.lane.b32.xlu0 %v960, 109
      %v995 = vpop.permute.xlu0 %994
      %996 = vrot.lane.b32.xlu0 %v961, 109
      %v997 = vpop.permute.xlu0 %996
      %998 = vrot.lane.b32.xlu0 %v962, 109
      %v999 = vpop.permute.xlu0 %998
      %1000 = vrot.lane.b32.xlu0 %v963, 109
      %v1001 = vpop.permute.xlu0 %1000
      %1002 = vrot.lane.b32.xlu0 %v964, 109
      %v1003 = vpop.permute.xlu0 %1002
      %1004 = vrot.lane.b32.xlu0 %v965, 109
      %v1005 = vpop.permute.xlu0 %1004
      %1006 = vrot.lane.b32.xlu0 %v966, 109
      %v1007 = vpop.permute.xlu0 %1006
      %1008 = vrot.lane.b32.xlu0 %v967, 109
      %v1009 = vpop.permute.xlu0 %1008
      %1010 = vrot.lane.b32.xlu0 %v968, 109
      %v1011 = vpop.permute.xlu0 %1010
      %1012 = vrot.lane.b32.xlu0 %v969, 109
      %v1013 = vpop.permute.xlu0 %1012
      %1014 = vrot.lane.b32.xlu0 %v970, 109
      %v1015 = vpop.permute.xlu0 %1014
      %1016 = vrot.lane.b32.xlu0 %v971, 109
      %v1017 = vpop.permute.xlu0 %1016
      %1018 = vrot.lane.b32.xlu0 %v972, 109
      %v1019 = vpop.permute.xlu0 %1018
      %1020 = vrot.lane.b32.xlu0 %v973, 109
      %v1021 = vpop.permute.xlu0 %1020
      %v1022 = vsel %vm773, %v991, %v993
      %v1023 = vsel %vm773, %v993, %v995
      %v1024 = vsel %vm773, %v995, %v997
      %v1025 = vsel %vm773, %v999, %v1001
      %v1026 = vsel %vm773, %v1001, %v1003
      %v1027 = vsel %vm773, %v1003, %v1005
      %v1028 = vsel %vm773, %v1007, %v1009
      %v1029 = vsel %vm773, %v1009, %v1011
      %v1030 = vsel %vm773, %v1011, %v1013
      %v1031 = vsel %vm773, %v1015, %v1017
      %v1032 = vsel %vm773, %v1017, %v1019
      %v1033 = vsel %vm773, %v1019, %v1021
      %v1050 = vadd.f32 %v560, %v1022
      %v1051 = vadd.f32 %v561, %v1023
      %v1052 = vadd.f32 %v562, %v1024
      %v1053 = vadd.f32 %v563, %v997
      %v1054 = vadd.f32 %v564, %v1025
      %v1055 = vadd.f32 %v565, %v1026
      %v1056 = vadd.f32 %v566, %v1027
      %v1057 = vadd.f32 %v567, %v1005
      %v1058 = vadd.f32 %v568, %v1028
      %v1059 = vadd.f32 %v569, %v1029
      %v1060 = vadd.f32 %v570, %v1030
      %v1061 = vadd.f32 %v571, %v1013
      %v1062 = vadd.f32 %v572, %v1031
      %v1063 = vadd.f32 %v573, %v1032
      %v1064 = vadd.f32 %v574, %v1033
      %v1065 = vadd.f32 %v575, %v1021
      %1066 = vset.pattern.permute.xlu0 8
      %1067 = vperm.xlu0 %1066, %v428
      %v1068 = vpop.permute.xlu0 %1067
      %1070 = vset.pattern.permute.xlu0 8
      %1071 = vperm.xlu0 %1070, %v429
      %v1072 = vpop.permute.xlu0 %1071
      %1074 = vset.pattern.permute.xlu0 8
      %1075 = vperm.xlu0 %1074, %v430
      %v1076 = vpop.permute.xlu0 %1075
      %1078 = vset.pattern.permute.xlu0 8
      %1079 = vperm.xlu0 %1078, %v431
      %v1080 = vpop.permute.xlu0 %1079
      %v1082 = vmul.f32 %v464, %v1068
      %v1083 = vmul.f32 %v465, %v1068
      %v1084 = vmul.f32 %v466, %v1068
      %v1085 = vmul.f32 %v467, %v1068
      %v1086 = vmul.f32 %v468, %v1072
      %v1087 = vmul.f32 %v469, %v1072
      %v1088 = vmul.f32 %v470, %v1072
      %v1089 = vmul.f32 %v471, %v1072
      %v1090 = vmul.f32 %v472, %v1076
      %v1091 = vmul.f32 %v473, %v1076
      %v1092 = vmul.f32 %v474, %v1076
      %v1093 = vmul.f32 %v475, %v1076
      %v1094 = vmul.f32 %v476, %v1080
      %v1095 = vmul.f32 %v477, %v1080
      %v1096 = vmul.f32 %v478, %v1080
      %v1097 = vmul.f32 %v479, %v1080
      %1114 = vrot.lane.b32.xlu0 %v1082, 105
      %v1115 = vpop.permute.xlu0 %1114
      %1116 = vrot.lane.b32.xlu0 %v1083, 105
      %v1117 = vpop.permute.xlu0 %1116
      %1118 = vrot.lane.b32.xlu0 %v1084, 105
      %v1119 = vpop.permute.xlu0 %1118
      %1120 = vrot.lane.b32.xlu0 %v1085, 105
      %v1121 = vpop.permute.xlu0 %1120
      %1122 = vrot.lane.b32.xlu0 %v1086, 105
      %v1123 = vpop.permute.xlu0 %1122
      %1124 = vrot.lane.b32.xlu0 %v1087, 105
      %v1125 = vpop.permute.xlu0 %1124
      %1126 = vrot.lane.b32.xlu0 %v1088, 105
      %v1127 = vpop.permute.xlu0 %1126
      %1128 = vrot.lane.b32.xlu0 %v1089, 105
      %v1129 = vpop.permute.xlu0 %1128
      %1130 = vrot.lane.b32.xlu0 %v1090, 105
      %v1131 = vpop.permute.xlu0 %1130
      %1132 = vrot.lane.b32.xlu0 %v1091, 105
      %v1133 = vpop.permute.xlu0 %1132
      %1134 = vrot.lane.b32.xlu0 %v1092, 105
      %v1135 = vpop.permute.xlu0 %1134
      %1136 = vrot.lane.b32.xlu0 %v1093, 105
      %v1137 = vpop.permute.xlu0 %1136
      %1138 = vrot.lane.b32.xlu0 %v1094, 105
      %v1139 = vpop.permute.xlu0 %1138
      %1140 = vrot.lane.b32.xlu0 %v1095, 105
      %v1141 = vpop.permute.xlu0 %1140
      %1142 = vrot.lane.b32.xlu0 %v1096, 105
      %v1143 = vpop.permute.xlu0 %1142
      %1144 = vrot.lane.b32.xlu0 %v1097, 105
      %v1145 = vpop.permute.xlu0 %1144
      %vm1146 = vcmask 859136
      %v1147 = vsel %vm1146, %v1115, %v1117
      %v1148 = vsel %vm1146, %v1117, %v1119
      %v1149 = vsel %vm1146, %v1119, %v1121
      %v1150 = vsel %vm1146, %v1123, %v1125
      %v1151 = vsel %vm1146, %v1125, %v1127
      %v1152 = vsel %vm1146, %v1127, %v1129
      %v1153 = vsel %vm1146, %v1131, %v1133
      %v1154 = vsel %vm1146, %v1133, %v1135
      %v1155 = vsel %vm1146, %v1135, %v1137
      %v1156 = vsel %vm1146, %v1139, %v1141
      %v1157 = vsel %vm1146, %v1141, %v1143
      %v1158 = vsel %vm1146, %v1143, %v1145
      %v1171 = vadd.f32 %v681, %v1147
      %v1172 = vadd.f32 %v682, %v1148
      %v1173 = vadd.f32 %v683, %v1149
      %v1174 = vadd.f32 %v684, %v1150
      %v1175 = vadd.f32 %v685, %v1151
      %v1176 = vadd.f32 %v686, %v1152
      %v1177 = vadd.f32 %v687, %v1153
      %v1178 = vadd.f32 %v688, %v1154
      %v1179 = vadd.f32 %v689, %v1155
      %v1180 = vadd.f32 %v690, %v1156
      %v1181 = vadd.f32 %v691, %v1157
      %v1182 = vadd.f32 %v692, %v1158
      %1183 = vset.pattern.permute.xlu0 9
      %1184 = vperm.xlu0 %1183, %v428
      %v1185 = vpop.permute.xlu0 %1184
      %1187 = vset.pattern.permute.xlu0 9
      %1188 = vperm.xlu0 %1187, %v429
      %v1189 = vpop.permute.xlu0 %1188
      %1191 = vset.pattern.permute.xlu0 9
      %1192 = vperm.xlu0 %1191, %v430
      %v1193 = vpop.permute.xlu0 %1192
      %1195 = vset.pattern.permute.xlu0 9
      %1196 = vperm.xlu0 %1195, %v431
      %v1197 = vpop.permute.xlu0 %1196
      %v1199 = vmul.f32 %v464, %v1185
      %v1200 = vmul.f32 %v465, %v1185
      %v1201 = vmul.f32 %v466, %v1185
      %v1202 = vmul.f32 %v467, %v1185
      %v1203 = vmul.f32 %v468, %v1189
      %v1204 = vmul.f32 %v469, %v1189
      %v1205 = vmul.f32 %v470, %v1189
      %v1206 = vmul.f32 %v471, %v1189
      %v1207 = vmul.f32 %v472, %v1193
      %v1208 = vmul.f32 %v473, %v1193
      %v1209 = vmul.f32 %v474, %v1193
      %v1210 = vmul.f32 %v475, %v1193
      %v1211 = vmul.f32 %v476, %v1197
      %v1212 = vmul.f32 %v477, %v1197
      %v1213 = vmul.f32 %v478, %v1197
      %v1214 = vmul.f32 %v479, %v1197
      %1231 = vrot.lane.b32.xlu0 %v1199, 105
      %v1232 = vpop.permute.xlu0 %1231
      %1233 = vrot.lane.b32.xlu0 %v1200, 105
      %v1234 = vpop.permute.xlu0 %1233
      %1235 = vrot.lane.b32.xlu0 %v1201, 105
      %v1236 = vpop.permute.xlu0 %1235
      %1237 = vrot.lane.b32.xlu0 %v1202, 105
      %v1238 = vpop.permute.xlu0 %1237
      %1239 = vrot.lane.b32.xlu0 %v1203, 105
      %v1240 = vpop.permute.xlu0 %1239
      %1241 = vrot.lane.b32.xlu0 %v1204, 105
      %v1242 = vpop.permute.xlu0 %1241
      %1243 = vrot.lane.b32.xlu0 %v1205, 105
      %v1244 = vpop.permute.xlu0 %1243
      %1245 = vrot.lane.b32.xlu0 %v1206, 105
      %v1246 = vpop.permute.xlu0 %1245
      %1247 = vrot.lane.b32.xlu0 %v1207, 105
      %v1248 = vpop.permute.xlu0 %1247
      %1249 = vrot.lane.b32.xlu0 %v1208, 105
      %v1250 = vpop.permute.xlu0 %1249
      %1251 = vrot.lane.b32.xlu0 %v1209, 105
      %v1252 = vpop.permute.xlu0 %1251
      %1253 = vrot.lane.b32.xlu0 %v1210, 105
      %v1254 = vpop.permute.xlu0 %1253
      %1255 = vrot.lane.b32.xlu0 %v1211, 105
      %v1256 = vpop.permute.xlu0 %1255
      %1257 = vrot.lane.b32.xlu0 %v1212, 105
      %v1258 = vpop.permute.xlu0 %1257
      %1259 = vrot.lane.b32.xlu0 %v1213, 105
      %v1260 = vpop.permute.xlu0 %1259
      %1261 = vrot.lane.b32.xlu0 %v1214, 105
      %v1262 = vpop.permute.xlu0 %1261
      %v1263 = vsel %vm1146, %v1232, %v1234
      %v1264 = vsel %vm1146, %v1234, %v1236
      %v1265 = vsel %vm1146, %v1236, %v1238
      %v1266 = vsel %vm1146, %v1240, %v1242
      %v1267 = vsel %vm1146, %v1242, %v1244
      %v1268 = vsel %vm1146, %v1244, %v1246
      %v1269 = vsel %vm1146, %v1248, %v1250
      %v1270 = vsel %vm1146, %v1250, %v1252
      %v1271 = vsel %vm1146, %v1252, %v1254
      %v1272 = vsel %vm1146, %v1256, %v1258
      %v1273 = vsel %vm1146, %v1258, %v1260
      %v1274 = vsel %vm1146, %v1260, %v1262
      %v1291 = vadd.f32 %v802, %v1263
      %v1292 = vadd.f32 %v803, %v1264
      %v1293 = vadd.f32 %v804, %v1265
      %v1294 = vadd.f32 %v805, %v1238
      %v1295 = vadd.f32 %v806, %v1266
      %v1296 = vadd.f32 %v807, %v1267
      %v1297 = vadd.f32 %v808, %v1268
      %v1298 = vadd.f32 %v809, %v1246
      %v1299 = vadd.f32 %v810, %v1269
      %v1300 = vadd.f32 %v811, %v1270
      %v1301 = vadd.f32 %v812, %v1271
      %v1302 = vadd.f32 %v813, %v1254
      %v1303 = vadd.f32 %v814, %v1272
      %v1304 = vadd.f32 %v815, %v1273
      %v1305 = vadd.f32 %v816, %v1274
      %v1306 = vadd.f32 %v817, %v1262
      %1307 = vset.pattern.permute.xlu0 10
      %1308 = vperm.xlu0 %1307, %v428
      %v1309 = vpop.permute.xlu0 %1308
      %1311 = vset.pattern.permute.xlu0 10
      %1312 = vperm.xlu0 %1311, %v429
      %v1313 = vpop.permute.xlu0 %1312
      %1315 = vset.pattern.permute.xlu0 10
      %1316 = vperm.xlu0 %1315, %v430
      %v1317 = vpop.permute.xlu0 %1316
      %1319 = vset.pattern.permute.xlu0 10
      %1320 = vperm.xlu0 %1319, %v431
      %v1321 = vpop.permute.xlu0 %1320
      %v1323 = vmul.f32 %v464, %v1309
      %v1324 = vmul.f32 %v465, %v1309
      %v1325 = vmul.f32 %v466, %v1309
      %v1326 = vmul.f32 %v467, %v1309
      %v1327 = vmul.f32 %v468, %v1313
      %v1328 = vmul.f32 %v469, %v1313
      %v1329 = vmul.f32 %v470, %v1313
      %v1330 = vmul.f32 %v471, %v1313
      %v1331 = vmul.f32 %v472, %v1317
      %v1332 = vmul.f32 %v473, %v1317
      %v1333 = vmul.f32 %v474, %v1317
      %v1334 = vmul.f32 %v475, %v1317
      %v1335 = vmul.f32 %v476, %v1321
      %v1336 = vmul.f32 %v477, %v1321
      %v1337 = vmul.f32 %v478, %v1321
      %v1338 = vmul.f32 %v479, %v1321
      %1355 = vrot.lane.b32.xlu0 %v1323, 90
      %v1356 = vpop.permute.xlu0 %1355
      %1357 = vrot.lane.b32.xlu0 %v1324, 90
      %v1358 = vpop.permute.xlu0 %1357
      %1359 = vrot.lane.b32.xlu0 %v1325, 90
      %v1360 = vpop.permute.xlu0 %1359
      %1361 = vrot.lane.b32.xlu0 %v1326, 90
      %v1362 = vpop.permute.xlu0 %1361
      %1363 = vrot.lane.b32.xlu0 %v1327, 90
      %v1364 = vpop.permute.xlu0 %1363
      %1365 = vrot.lane.b32.xlu0 %v1328, 90
      %v1366 = vpop.permute.xlu0 %1365
      %1367 = vrot.lane.b32.xlu0 %v1329, 90
      %v1368 = vpop.permute.xlu0 %1367
      %1369 = vrot.lane.b32.xlu0 %v1330, 90
      %v1370 = vpop.permute.xlu0 %1369
      %1371 = vrot.lane.b32.xlu0 %v1331, 90
      %v1372 = vpop.permute.xlu0 %1371
      %1373 = vrot.lane.b32.xlu0 %v1332, 90
      %v1374 = vpop.permute.xlu0 %1373
      %1375 = vrot.lane.b32.xlu0 %v1333, 90
      %v1376 = vpop.permute.xlu0 %1375
      %1377 = vrot.lane.b32.xlu0 %v1334, 90
      %v1378 = vpop.permute.xlu0 %1377
      %1379 = vrot.lane.b32.xlu0 %v1335, 90
      %v1380 = vpop.permute.xlu0 %1379
      %1381 = vrot.lane.b32.xlu0 %v1336, 90
      %v1382 = vpop.permute.xlu0 %1381
      %1383 = vrot.lane.b32.xlu0 %v1337, 90
      %v1384 = vpop.permute.xlu0 %1383
      %1385 = vrot.lane.b32.xlu0 %v1338, 90
      %v1386 = vpop.permute.xlu0 %1385
      %vm1387 = vcmask 736256
      %v1388 = vsel %vm1387, %v1356, %v1358
      %v1389 = vsel %vm1387, %v1358, %v1360
      %v1390 = vsel %vm1387, %v1360, %v1362
      %v1391 = vsel %vm1387, %v1364, %v1366
      %v1392 = vsel %vm1387, %v1366, %v1368
      %v1393 = vsel %vm1387, %v1368, %v1370
      %v1394 = vsel %vm1387, %v1372, %v1374
      %v1395 = vsel %vm1387, %v1374, %v1376
      %v1396 = vsel %vm1387, %v1376, %v1378
      %v1397 = vsel %vm1387, %v1380, %v1382
      %v1398 = vsel %vm1387, %v1382, %v1384
      %v1399 = vsel %vm1387, %v1384, %v1386
      %v1416 = vadd.f32 %v926, %v1388
      %v1417 = vadd.f32 %v927, %v1389
      %v1418 = vadd.f32 %v928, %v1390
      %v1419 = vadd.f32 %v929, %v1362
      %v1420 = vadd.f32 %v930, %v1391
      %v1421 = vadd.f32 %v931, %v1392
      %v1422 = vadd.f32 %v932, %v1393
      %v1423 = vadd.f32 %v933, %v1370
      %v1424 = vadd.f32 %v934, %v1394
      %v1425 = vadd.f32 %v935, %v1395
      %v1426 = vadd.f32 %v936, %v1396
      %v1427 = vadd.f32 %v937, %v1378
      %v1428 = vadd.f32 %v938, %v1397
      %v1429 = vadd.f32 %v939, %v1398
      %v1430 = vadd.f32 %v940, %v1399
      %v1431 = vadd.f32 %v941, %v1386
      %1432 = vset.pattern.permute.xlu0 11
      %1433 = vperm.xlu0 %1432, %v428
      %v1434 = vpop.permute.xlu0 %1433
      %1436 = vset.pattern.permute.xlu0 11
      %1437 = vperm.xlu0 %1436, %v429
      %v1438 = vpop.permute.xlu0 %1437
      %1440 = vset.pattern.permute.xlu0 11
      %1441 = vperm.xlu0 %1440, %v430
      %v1442 = vpop.permute.xlu0 %1441
      %1444 = vset.pattern.permute.xlu0 11
      %1445 = vperm.xlu0 %1444, %v431
      %v1446 = vpop.permute.xlu0 %1445
      %v1448 = vmul.f32 %v464, %v1434
      %v1449 = vmul.f32 %v465, %v1434
      %v1450 = vmul.f32 %v466, %v1434
      %v1451 = vmul.f32 %v467, %v1434
      %v1452 = vmul.f32 %v468, %v1438
      %v1453 = vmul.f32 %v469, %v1438
      %v1454 = vmul.f32 %v470, %v1438
      %v1455 = vmul.f32 %v471, %v1438
      %v1456 = vmul.f32 %v472, %v1442
      %v1457 = vmul.f32 %v473, %v1442
      %v1458 = vmul.f32 %v474, %v1442
      %v1459 = vmul.f32 %v475, %v1442
      %v1460 = vmul.f32 %v476, %v1446
      %v1461 = vmul.f32 %v477, %v1446
      %v1462 = vmul.f32 %v478, %v1446
      %v1463 = vmul.f32 %v479, %v1446
      %1480 = vrot.lane.b32.xlu0 %v1448, 90
      %v1481 = vpop.permute.xlu0 %1480
      %1482 = vrot.lane.b32.xlu0 %v1449, 90
      %v1483 = vpop.permute.xlu0 %1482
      %1484 = vrot.lane.b32.xlu0 %v1450, 90
      %v1485 = vpop.permute.xlu0 %1484
      %1486 = vrot.lane.b32.xlu0 %v1451, 90
      %v1487 = vpop.permute.xlu0 %1486
      %1488 = vrot.lane.b32.xlu0 %v1452, 90
      %v1489 = vpop.permute.xlu0 %1488
      %1490 = vrot.lane.b32.xlu0 %v1453, 90
      %v1491 = vpop.permute.xlu0 %1490
      %1492 = vrot.lane.b32.xlu0 %v1454, 90
      %v1493 = vpop.permute.xlu0 %1492
      %1494 = vrot.lane.b32.xlu0 %v1455, 90
      %v1495 = vpop.permute.xlu0 %1494
      %1496 = vrot.lane.b32.xlu0 %v1456, 90
      %v1497 = vpop.permute.xlu0 %1496
      %1498 = vrot.lane.b32.xlu0 %v1457, 90
      %v1499 = vpop.permute.xlu0 %1498
      %1500 = vrot.lane.b32.xlu0 %v1458, 90
      %v1501 = vpop.permute.xlu0 %1500
      %1502 = vrot.lane.b32.xlu0 %v1459, 90
      %v1503 = vpop.permute.xlu0 %1502
      %1504 = vrot.lane.b32.xlu0 %v1460, 90
      %v1505 = vpop.permute.xlu0 %1504
      %1506 = vrot.lane.b32.xlu0 %v1461, 90
      %v1507 = vpop.permute.xlu0 %1506
      %1508 = vrot.lane.b32.xlu0 %v1462, 90
      %v1509 = vpop.permute.xlu0 %1508
      %1510 = vrot.lane.b32.xlu0 %v1463, 90
      %v1511 = vpop.permute.xlu0 %1510
      %v1512 = vsel %vm1387, %v1481, %v1483
      %v1513 = vsel %vm1387, %v1483, %v1485
      %v1514 = vsel %vm1387, %v1485, %v1487
      %v1515 = vsel %vm1387, %v1489, %v1491
      %v1516 = vsel %vm1387, %v1491, %v1493
      %v1517 = vsel %vm1387, %v1493, %v1495
      %v1518 = vsel %vm1387, %v1497, %v1499
      %v1519 = vsel %vm1387, %v1499, %v1501
      %v1520 = vsel %vm1387, %v1501, %v1503
      %v1521 = vsel %vm1387, %v1505, %v1507
      %v1522 = vsel %vm1387, %v1507, %v1509
      %v1523 = vsel %vm1387, %v1509, %v1511
      %v1540 = vadd.f32 %v1050, %v1512
      %v1541 = vadd.f32 %v1051, %v1513
      %v1542 = vadd.f32 %v1052, %v1514
      %v1543 = vadd.f32 %v1053, %v1487
      %v1544 = vadd.f32 %v1054, %v1515
      %v1545 = vadd.f32 %v1055, %v1516
      %v1546 = vadd.f32 %v1056, %v1517
      %v1547 = vadd.f32 %v1057, %v1495
      %v1548 = vadd.f32 %v1058, %v1518
      %v1549 = vadd.f32 %v1059, %v1519
      %v1550 = vadd.f32 %v1060, %v1520
      %v1551 = vadd.f32 %v1061, %v1503
      %v1552 = vadd.f32 %v1062, %v1521
      %v1553 = vadd.f32 %v1063, %v1522
      %v1554 = vadd.f32 %v1064, %v1523
      %v1555 = vadd.f32 %v1065, %v1511
      %1556 = vset.pattern.permute.xlu0 12
      %1557 = vperm.xlu0 %1556, %v428
      %v1558 = vpop.permute.xlu0 %1557
      %1560 = vset.pattern.permute.xlu0 12
      %1561 = vperm.xlu0 %1560, %v429
      %v1562 = vpop.permute.xlu0 %1561
      %1564 = vset.pattern.permute.xlu0 12
      %1565 = vperm.xlu0 %1564, %v430
      %v1566 = vpop.permute.xlu0 %1565
      %1568 = vset.pattern.permute.xlu0 12
      %1569 = vperm.xlu0 %1568, %v431
      %v1570 = vpop.permute.xlu0 %1569
      %v1572 = vmul.f32 %v464, %v1558
      %v1573 = vmul.f32 %v465, %v1558
      %v1574 = vmul.f32 %v466, %v1558
      %v1575 = vmul.f32 %v467, %v1558
      %v1576 = vmul.f32 %v468, %v1562
      %v1577 = vmul.f32 %v469, %v1562
      %v1578 = vmul.f32 %v470, %v1562
      %v1579 = vmul.f32 %v471, %v1562
      %v1580 = vmul.f32 %v472, %v1566
      %v1581 = vmul.f32 %v473, %v1566
      %v1582 = vmul.f32 %v474, %v1566
      %v1583 = vmul.f32 %v475, %v1566
      %v1584 = vmul.f32 %v476, %v1570
      %v1585 = vmul.f32 %v477, %v1570
      %v1586 = vmul.f32 %v478, %v1570
      %v1587 = vmul.f32 %v479, %v1570
      %1604 = vrot.lane.b32.xlu0 %v1572, 86
      %v1605 = vpop.permute.xlu0 %1604
      %1606 = vrot.lane.b32.xlu0 %v1573, 86
      %v1607 = vpop.permute.xlu0 %1606
      %1608 = vrot.lane.b32.xlu0 %v1574, 86
      %v1609 = vpop.permute.xlu0 %1608
      %1610 = vrot.lane.b32.xlu0 %v1575, 86
      %v1611 = vpop.permute.xlu0 %1610
      %1612 = vrot.lane.b32.xlu0 %v1576, 86
      %v1613 = vpop.permute.xlu0 %1612
      %1614 = vrot.lane.b32.xlu0 %v1577, 86
      %v1615 = vpop.permute.xlu0 %1614
      %1616 = vrot.lane.b32.xlu0 %v1578, 86
      %v1617 = vpop.permute.xlu0 %1616
      %1618 = vrot.lane.b32.xlu0 %v1579, 86
      %v1619 = vpop.permute.xlu0 %1618
      %1620 = vrot.lane.b32.xlu0 %v1580, 86
      %v1621 = vpop.permute.xlu0 %1620
      %1622 = vrot.lane.b32.xlu0 %v1581, 86
      %v1623 = vpop.permute.xlu0 %1622
      %1624 = vrot.lane.b32.xlu0 %v1582, 86
      %v1625 = vpop.permute.xlu0 %1624
      %1626 = vrot.lane.b32.xlu0 %v1583, 86
      %v1627 = vpop.permute.xlu0 %1626
      %1628 = vrot.lane.b32.xlu0 %v1584, 86
      %v1629 = vpop.permute.xlu0 %1628
      %1630 = vrot.lane.b32.xlu0 %v1585, 86
      %v1631 = vpop.permute.xlu0 %1630
      %1632 = vrot.lane.b32.xlu0 %v1586, 86
      %v1633 = vpop.permute.xlu0 %1632
      %1634 = vrot.lane.b32.xlu0 %v1587, 86
      %v1635 = vpop.permute.xlu0 %1634
      %vm1636 = vcmask 703488
      %v1637 = vsel %vm1636, %v1605, %v1607
      %v1638 = vsel %vm1636, %v1607, %v1609
      %v1639 = vsel %vm1636, %v1609, %v1611
      %v1640 = vsel %vm1636, %v1613, %v1615
      %v1641 = vsel %vm1636, %v1615, %v1617
      %v1642 = vsel %vm1636, %v1617, %v1619
      %v1643 = vsel %vm1636, %v1621, %v1623
      %v1644 = vsel %vm1636, %v1623, %v1625
      %v1645 = vsel %vm1636, %v1625, %v1627
      %v1646 = vsel %vm1636, %v1629, %v1631
      %v1647 = vsel %vm1636, %v1631, %v1633
      %v1648 = vsel %vm1636, %v1633, %v1635
      %v1661 = vadd.f32 %v1171, %v1637
      %v1662 = vadd.f32 %v1172, %v1638
      %v1663 = vadd.f32 %v1173, %v1639
      %v1664 = vadd.f32 %v1174, %v1640
      %v1665 = vadd.f32 %v1175, %v1641
      %v1666 = vadd.f32 %v1176, %v1642
      %v1667 = vadd.f32 %v1177, %v1643
      %v1668 = vadd.f32 %v1178, %v1644
      %v1669 = vadd.f32 %v1179, %v1645
      %v1670 = vadd.f32 %v1180, %v1646
      %v1671 = vadd.f32 %v1181, %v1647
      %v1672 = vadd.f32 %v1182, %v1648
      %1673 = vset.pattern.permute.xlu0 13
      %1674 = vperm.xlu0 %1673, %v428
      %v1675 = vpop.permute.xlu0 %1674
      %1677 = vset.pattern.permute.xlu0 13
      %1678 = vperm.xlu0 %1677, %v429
      %v1679 = vpop.permute.xlu0 %1678
      %1681 = vset.pattern.permute.xlu0 13
      %1682 = vperm.xlu0 %1681, %v430
      %v1683 = vpop.permute.xlu0 %1682
      %1685 = vset.pattern.permute.xlu0 13
      %1686 = vperm.xlu0 %1685, %v431
      %v1687 = vpop.permute.xlu0 %1686
      %v1689 = vmul.f32 %v464, %v1675
      %v1690 = vmul.f32 %v465, %v1675
      %v1691 = vmul.f32 %v466, %v1675
      %v1692 = vmul.f32 %v467, %v1675
      %v1693 = vmul.f32 %v468, %v1679
      %v1694 = vmul.f32 %v469, %v1679
      %v1695 = vmul.f32 %v470, %v1679
      %v1696 = vmul.f32 %v471, %v1679
      %v1697 = vmul.f32 %v472, %v1683
      %v1698 = vmul.f32 %v473, %v1683
      %v1699 = vmul.f32 %v474, %v1683
      %v1700 = vmul.f32 %v475, %v1683
      %v1701 = vmul.f32 %v476, %v1687
      %v1702 = vmul.f32 %v477, %v1687
      %v1703 = vmul.f32 %v478, %v1687
      %v1704 = vmul.f32 %v479, %v1687
      %1721 = vrot.lane.b32.xlu0 %v1689, 86
      %v1722 = vpop.permute.xlu0 %1721
      %1723 = vrot.lane.b32.xlu0 %v1690, 86
      %v1724 = vpop.permute.xlu0 %1723
      %1725 = vrot.lane.b32.xlu0 %v1691, 86
      %v1726 = vpop.permute.xlu0 %1725
      %1727 = vrot.lane.b32.xlu0 %v1692, 86
      %v1728 = vpop.permute.xlu0 %1727
      %1729 = vrot.lane.b32.xlu0 %v1693, 86
      %v1730 = vpop.permute.xlu0 %1729
      %1731 = vrot.lane.b32.xlu0 %v1694, 86
      %v1732 = vpop.permute.xlu0 %1731
      %1733 = vrot.lane.b32.xlu0 %v1695, 86
      %v1734 = vpop.permute.xlu0 %1733
      %1735 = vrot.lane.b32.xlu0 %v1696, 86
      %v1736 = vpop.permute.xlu0 %1735
      %1737 = vrot.lane.b32.xlu0 %v1697, 86
      %v1738 = vpop.permute.xlu0 %1737
      %1739 = vrot.lane.b32.xlu0 %v1698, 86
      %v1740 = vpop.permute.xlu0 %1739
      %1741 = vrot.lane.b32.xlu0 %v1699, 86
      %v1742 = vpop.permute.xlu0 %1741
      %1743 = vrot.lane.b32.xlu0 %v1700, 86
      %v1744 = vpop.permute.xlu0 %1743
      %1745 = vrot.lane.b32.xlu0 %v1701, 86
      %v1746 = vpop.permute.xlu0 %1745
      %1747 = vrot.lane.b32.xlu0 %v1702, 86
      %v1748 = vpop.permute.xlu0 %1747
      %1749 = vrot.lane.b32.xlu0 %v1703, 86
      %v1750 = vpop.permute.xlu0 %1749
      %1751 = vrot.lane.b32.xlu0 %v1704, 86
      %v1752 = vpop.permute.xlu0 %1751
      %v1753 = vsel %vm1636, %v1722, %v1724
      %v1754 = vsel %vm1636, %v1724, %v1726
      %v1755 = vsel %vm1636, %v1726, %v1728
      %v1756 = vsel %vm1636, %v1730, %v1732
      %v1757 = vsel %vm1636, %v1732, %v1734
      %v1758 = vsel %vm1636, %v1734, %v1736
      %v1759 = vsel %vm1636, %v1738, %v1740
      %v1760 = vsel %vm1636, %v1740, %v1742
      %v1761 = vsel %vm1636, %v1742, %v1744
      %v1762 = vsel %vm1636, %v1746, %v1748
      %v1763 = vsel %vm1636, %v1748, %v1750
      %v1764 = vsel %vm1636, %v1750, %v1752
      %v1781 = vadd.f32 %v1291, %v1753
      %v1782 = vadd.f32 %v1292, %v1754
      %v1783 = vadd.f32 %v1293, %v1755
      %v1784 = vadd.f32 %v1294, %v1728
      %v1785 = vadd.f32 %v1295, %v1756
      %v1786 = vadd.f32 %v1296, %v1757
      %v1787 = vadd.f32 %v1297, %v1758
      %v1788 = vadd.f32 %v1298, %v1736
      %v1789 = vadd.f32 %v1299, %v1759
      %v1790 = vadd.f32 %v1300, %v1760
      %v1791 = vadd.f32 %v1301, %v1761
      %v1792 = vadd.f32 %v1302, %v1744
      %v1793 = vadd.f32 %v1303, %v1762
      %v1794 = vadd.f32 %v1304, %v1763
      %v1795 = vadd.f32 %v1305, %v1764
      %v1796 = vadd.f32 %v1306, %v1752
      %1797 = vset.pattern.permute.xlu0 14
      %1798 = vperm.xlu0 %1797, %v428
      %v1799 = vpop.permute.xlu0 %1798
      %1801 = vset.pattern.permute.xlu0 14
      %1802 = vperm.xlu0 %1801, %v429
      %v1803 = vpop.permute.xlu0 %1802
      %1805 = vset.pattern.permute.xlu0 14
      %1806 = vperm.xlu0 %1805, %v430
      %v1807 = vpop.permute.xlu0 %1806
      %1809 = vset.pattern.permute.xlu0 14
      %1810 = vperm.xlu0 %1809, %v431
      %v1811 = vpop.permute.xlu0 %1810
      %v1813 = vmul.f32 %v464, %v1799
      %v1814 = vmul.f32 %v465, %v1799
      %v1815 = vmul.f32 %v466, %v1799
      %v1816 = vmul.f32 %v467, %v1799
      %v1817 = vmul.f32 %v468, %v1803
      %v1818 = vmul.f32 %v469, %v1803
      %v1819 = vmul.f32 %v470, %v1803
      %v1820 = vmul.f32 %v471, %v1803
      %v1821 = vmul.f32 %v472, %v1807
      %v1822 = vmul.f32 %v473, %v1807
      %v1823 = vmul.f32 %v474, %v1807
      %v1824 = vmul.f32 %v475, %v1807
      %v1825 = vmul.f32 %v476, %v1811
      %v1826 = vmul.f32 %v477, %v1811
      %v1827 = vmul.f32 %v478, %v1811
      %v1828 = vmul.f32 %v479, %v1811
      %1845 = vrot.lane.b32.xlu0 %v1813, 86
      %v1846 = vpop.permute.xlu0 %1845
      %1847 = vrot.lane.b32.xlu0 %v1814, 86
      %v1848 = vpop.permute.xlu0 %1847
      %1849 = vrot.lane.b32.xlu0 %v1815, 86
      %v1850 = vpop.permute.xlu0 %1849
      %1851 = vrot.lane.b32.xlu0 %v1816, 86
      %v1852 = vpop.permute.xlu0 %1851
      %1853 = vrot.lane.b32.xlu0 %v1817, 86
      %v1854 = vpop.permute.xlu0 %1853
      %1855 = vrot.lane.b32.xlu0 %v1818, 86
      %v1856 = vpop.permute.xlu0 %1855
      %1857 = vrot.lane.b32.xlu0 %v1819, 86
      %v1858 = vpop.permute.xlu0 %1857
      %1859 = vrot.lane.b32.xlu0 %v1820, 86
      %v1860 = vpop.permute.xlu0 %1859
      %1861 = vrot.lane.b32.xlu0 %v1821, 86
      %v1862 = vpop.permute.xlu0 %1861
      %1863 = vrot.lane.b32.xlu0 %v1822, 86
      %v1864 = vpop.permute.xlu0 %1863
      %1865 = vrot.lane.b32.xlu0 %v1823, 86
      %v1866 = vpop.permute.xlu0 %1865
      %1867 = vrot.lane.b32.xlu0 %v1824, 86
      %v1868 = vpop.permute.xlu0 %1867
      %1869 = vrot.lane.b32.xlu0 %v1825, 86
      %v1870 = vpop.permute.xlu0 %1869
      %1871 = vrot.lane.b32.xlu0 %v1826, 86
      %v1872 = vpop.permute.xlu0 %1871
      %1873 = vrot.lane.b32.xlu0 %v1827, 86
      %v1874 = vpop.permute.xlu0 %1873
      %1875 = vrot.lane.b32.xlu0 %v1828, 86
      %v1876 = vpop.permute.xlu0 %1875
      %v1877 = vsel %vm1636, %v1846, %v1848
      %v1878 = vsel %vm1636, %v1848, %v1850
      %v1879 = vsel %vm1636, %v1850, %v1852
      %v1880 = vsel %vm1636, %v1854, %v1856
      %v1881 = vsel %vm1636, %v1856, %v1858
      %v1882 = vsel %vm1636, %v1858, %v1860
      %v1883 = vsel %vm1636, %v1862, %v1864
      %v1884 = vsel %vm1636, %v1864, %v1866
      %v1885 = vsel %vm1636, %v1866, %v1868
      %v1886 = vsel %vm1636, %v1870, %v1872
      %v1887 = vsel %vm1636, %v1872, %v1874
      %v1888 = vsel %vm1636, %v1874, %v1876
      %v1905 = vadd.f32 %v1416, %v1877
      %v1906 = vadd.f32 %v1417, %v1878
      %v1907 = vadd.f32 %v1418, %v1879
      %v1908 = vadd.f32 %v1419, %v1852
      %v1909 = vadd.f32 %v1420, %v1880
      %v1910 = vadd.f32 %v1421, %v1881
      %v1911 = vadd.f32 %v1422, %v1882
      %v1912 = vadd.f32 %v1423, %v1860
      %v1913 = vadd.f32 %v1424, %v1883
      %v1914 = vadd.f32 %v1425, %v1884
      %v1915 = vadd.f32 %v1426, %v1885
      %v1916 = vadd.f32 %v1427, %v1868
      %v1917 = vadd.f32 %v1428, %v1886
      %v1918 = vadd.f32 %v1429, %v1887
      %v1919 = vadd.f32 %v1430, %v1888
      %v1920 = vadd.f32 %v1431, %v1876
      %1921 = vset.pattern.permute.xlu0 15
      %1922 = vperm.xlu0 %1921, %v428
      %v1923 = vpop.permute.xlu0 %1922
      %1925 = vset.pattern.permute.xlu0 15
      %1926 = vperm.xlu0 %1925, %v429
      %v1927 = vpop.permute.xlu0 %1926
      %1929 = vset.pattern.permute.xlu0 15
      %1930 = vperm.xlu0 %1929, %v430
      %v1931 = vpop.permute.xlu0 %1930
      %1933 = vset.pattern.permute.xlu0 15
      %1934 = vperm.xlu0 %1933, %v431
      %v1935 = vpop.permute.xlu0 %1934
      %v1937 = vmul.f32 %v464, %v1923
      %v1938 = vmul.f32 %v465, %v1923
      %v1939 = vmul.f32 %v466, %v1923
      %v1940 = vmul.f32 %v467, %v1923
      %v1941 = vmul.f32 %v468, %v1927
      %v1942 = vmul.f32 %v469, %v1927
      %v1943 = vmul.f32 %v470, %v1927
      %v1944 = vmul.f32 %v471, %v1927
      %v1945 = vmul.f32 %v472, %v1931
      %v1946 = vmul.f32 %v473, %v1931
      %v1947 = vmul.f32 %v474, %v1931
      %v1948 = vmul.f32 %v475, %v1931
      %v1949 = vmul.f32 %v476, %v1935
      %v1950 = vmul.f32 %v477, %v1935
      %v1951 = vmul.f32 %v478, %v1935
      %v1952 = vmul.f32 %v479, %v1935
      %1969 = vrot.lane.b32.xlu0 %v1937, 71
      %v1970 = vpop.permute.xlu0 %1969
      %1971 = vrot.lane.b32.xlu0 %v1938, 71
      %v1972 = vpop.permute.xlu0 %1971
      %1973 = vrot.lane.b32.xlu0 %v1939, 71
      %v1974 = vpop.permute.xlu0 %1973
      %1975 = vrot.lane.b32.xlu0 %v1940, 71
      %v1976 = vpop.permute.xlu0 %1975
      %1977 = vrot.lane.b32.xlu0 %v1941, 71
      %v1978 = vpop.permute.xlu0 %1977
      %1979 = vrot.lane.b32.xlu0 %v1942, 71
      %v1980 = vpop.permute.xlu0 %1979
      %1981 = vrot.lane.b32.xlu0 %v1943, 71
      %v1982 = vpop.permute.xlu0 %1981
      %1983 = vrot.lane.b32.xlu0 %v1944, 71
      %v1984 = vpop.permute.xlu0 %1983
      %1985 = vrot.lane.b32.xlu0 %v1945, 71
      %v1986 = vpop.permute.xlu0 %1985
      %1987 = vrot.lane.b32.xlu0 %v1946, 71
      %v1988 = vpop.permute.xlu0 %1987
      %1989 = vrot.lane.b32.xlu0 %v1947, 71
      %v1990 = vpop.permute.xlu0 %1989
      %1991 = vrot.lane.b32.xlu0 %v1948, 71
      %v1992 = vpop.permute.xlu0 %1991
      %1993 = vrot.lane.b32.xlu0 %v1949, 71
      %v1994 = vpop.permute.xlu0 %1993
      %1995 = vrot.lane.b32.xlu0 %v1950, 71
      %v1996 = vpop.permute.xlu0 %1995
      %1997 = vrot.lane.b32.xlu0 %v1951, 71
      %v1998 = vpop.permute.xlu0 %1997
      %1999 = vrot.lane.b32.xlu0 %v1952, 71
      %v2000 = vpop.permute.xlu0 %1999
      %vm2001 = vcmask 580608
      %v2002 = vsel %vm2001, %v1970, %v1972
      %v2003 = vsel %vm2001, %v1972, %v1974
      %v2004 = vsel %vm2001, %v1974, %v1976
      %v2005 = vsel %vm2001, %v1978, %v1980
      %v2006 = vsel %vm2001, %v1980, %v1982
      %v2007 = vsel %vm2001, %v1982, %v1984
      %v2008 = vsel %vm2001, %v1986, %v1988
      %v2009 = vsel %vm2001, %v1988, %v1990
      %v2010 = vsel %vm2001, %v1990, %v1992
      %v2011 = vsel %vm2001, %v1994, %v1996
      %v2012 = vsel %vm2001, %v1996, %v1998
      %v2013 = vsel %vm2001, %v1998, %v2000
      %v2030 = vadd.f32 %v1540, %v2002
      %v2031 = vadd.f32 %v1541, %v2003
      %v2032 = vadd.f32 %v1542, %v2004
      %v2033 = vadd.f32 %v1543, %v1976
      %v2034 = vadd.f32 %v1544, %v2005
      %v2035 = vadd.f32 %v1545, %v2006
      %v2036 = vadd.f32 %v1546, %v2007
      %v2037 = vadd.f32 %v1547, %v1984
      %v2038 = vadd.f32 %v1548, %v2008
      %v2039 = vadd.f32 %v1549, %v2009
      %v2040 = vadd.f32 %v1550, %v2010
      %v2041 = vadd.f32 %v1551, %v1992
      %v2042 = vadd.f32 %v1552, %v2011
      %v2043 = vadd.f32 %v1553, %v2012
      %v2044 = vadd.f32 %v1554, %v2013
      %v2045 = vadd.f32 %v1555, %v2000
      %2046 = vset.pattern.permute.xlu0 16
      %2047 = vperm.xlu0 %2046, %v428
      %v2048 = vpop.permute.xlu0 %2047
      %2050 = vset.pattern.permute.xlu0 16
      %2051 = vperm.xlu0 %2050, %v429
      %v2052 = vpop.permute.xlu0 %2051
      %2054 = vset.pattern.permute.xlu0 16
      %2055 = vperm.xlu0 %2054, %v430
      %v2056 = vpop.permute.xlu0 %2055
      %2058 = vset.pattern.permute.xlu0 16
      %2059 = vperm.xlu0 %2058, %v431
      %v2060 = vpop.permute.xlu0 %2059
      %v2062 = vmul.f32 %v464, %v2048
      %v2063 = vmul.f32 %v465, %v2048
      %v2064 = vmul.f32 %v466, %v2048
      %v2065 = vmul.f32 %v467, %v2048
      %v2066 = vmul.f32 %v468, %v2052
      %v2067 = vmul.f32 %v469, %v2052
      %v2068 = vmul.f32 %v470, %v2052
      %v2069 = vmul.f32 %v471, %v2052
      %v2070 = vmul.f32 %v472, %v2056
      %v2071 = vmul.f32 %v473, %v2056
      %v2072 = vmul.f32 %v474, %v2056
      %v2073 = vmul.f32 %v475, %v2056
      %v2074 = vmul.f32 %v476, %v2060
      %v2075 = vmul.f32 %v477, %v2060
      %v2076 = vmul.f32 %v478, %v2060
      %v2077 = vmul.f32 %v479, %v2060
      %2094 = vrot.lane.b32.xlu0 %v2062, 67
      %v2095 = vpop.permute.xlu0 %2094
      %2096 = vrot.lane.b32.xlu0 %v2063, 67
      %v2097 = vpop.permute.xlu0 %2096
      %2098 = vrot.lane.b32.xlu0 %v2064, 67
      %v2099 = vpop.permute.xlu0 %2098
      %2100 = vrot.lane.b32.xlu0 %v2065, 67
      %v2101 = vpop.permute.xlu0 %2100
      %2102 = vrot.lane.b32.xlu0 %v2066, 67
      %v2103 = vpop.permute.xlu0 %2102
      %2104 = vrot.lane.b32.xlu0 %v2067, 67
      %v2105 = vpop.permute.xlu0 %2104
      %2106 = vrot.lane.b32.xlu0 %v2068, 67
      %v2107 = vpop.permute.xlu0 %2106
      %2108 = vrot.lane.b32.xlu0 %v2069, 67
      %v2109 = vpop.permute.xlu0 %2108
      %2110 = vrot.lane.b32.xlu0 %v2070, 67
      %v2111 = vpop.permute.xlu0 %2110
      %2112 = vrot.lane.b32.xlu0 %v2071, 67
      %v2113 = vpop.permute.xlu0 %2112
      %2114 = vrot.lane.b32.xlu0 %v2072, 67
      %v2115 = vpop.permute.xlu0 %2114
      %2116 = vrot.lane.b32.xlu0 %v2073, 67
      %v2117 = vpop.permute.xlu0 %2116
      %2118 = vrot.lane.b32.xlu0 %v2074, 67
      %v2119 = vpop.permute.xlu0 %2118
      %2120 = vrot.lane.b32.xlu0 %v2075, 67
      %v2121 = vpop.permute.xlu0 %2120
      %2122 = vrot.lane.b32.xlu0 %v2076, 67
      %v2123 = vpop.permute.xlu0 %2122
      %2124 = vrot.lane.b32.xlu0 %v2077, 67
      %v2125 = vpop.permute.xlu0 %2124
      %vm2126 = vcmask 547840
      %v2127 = vsel %vm2126, %v2095, %v2097
      %v2128 = vsel %vm2126, %v2097, %v2099
      %v2129 = vsel %vm2126, %v2099, %v2101
      %v2130 = vsel %vm2126, %v2103, %v2105
      %v2131 = vsel %vm2126, %v2105, %v2107
      %v2132 = vsel %vm2126, %v2107, %v2109
      %v2133 = vsel %vm2126, %v2111, %v2113
      %v2134 = vsel %vm2126, %v2113, %v2115
      %v2135 = vsel %vm2126, %v2115, %v2117
      %v2136 = vsel %vm2126, %v2119, %v2121
      %v2137 = vsel %vm2126, %v2121, %v2123
      %v2138 = vsel %vm2126, %v2123, %v2125
      %v2151 = vadd.f32 %v1661, %v2127
      %v2152 = vadd.f32 %v1662, %v2128
      %v2153 = vadd.f32 %v1663, %v2129
      %v2154 = vadd.f32 %v1664, %v2130
      %v2155 = vadd.f32 %v1665, %v2131
      %v2156 = vadd.f32 %v1666, %v2132
      %v2157 = vadd.f32 %v1667, %v2133
      %v2158 = vadd.f32 %v1668, %v2134
      %v2159 = vadd.f32 %v1669, %v2135
      %v2160 = vadd.f32 %v1670, %v2136
      %v2161 = vadd.f32 %v1671, %v2137
      %v2162 = vadd.f32 %v1672, %v2138
      %2163 = vset.pattern.permute.xlu0 17
      %2164 = vperm.xlu0 %2163, %v428
      %v2165 = vpop.permute.xlu0 %2164
      %2167 = vset.pattern.permute.xlu0 17
      %2168 = vperm.xlu0 %2167, %v429
      %v2169 = vpop.permute.xlu0 %2168
      %2171 = vset.pattern.permute.xlu0 17
      %2172 = vperm.xlu0 %2171, %v430
      %v2173 = vpop.permute.xlu0 %2172
      %2175 = vset.pattern.permute.xlu0 17
      %2176 = vperm.xlu0 %2175, %v431
      %v2177 = vpop.permute.xlu0 %2176
      %v2179 = vmul.f32 %v464, %v2165
      %v2180 = vmul.f32 %v465, %v2165
      %v2181 = vmul.f32 %v466, %v2165
      %v2182 = vmul.f32 %v467, %v2165
      %v2183 = vmul.f32 %v468, %v2169
      %v2184 = vmul.f32 %v469, %v2169
      %v2185 = vmul.f32 %v470, %v2169
      %v2186 = vmul.f32 %v471, %v2169
      %v2187 = vmul.f32 %v472, %v2173
      %v2188 = vmul.f32 %v473, %v2173
      %v2189 = vmul.f32 %v474, %v2173
      %v2190 = vmul.f32 %v475, %v2173
      %v2191 = vmul.f32 %v476, %v2177
      %v2192 = vmul.f32 %v477, %v2177
      %v2193 = vmul.f32 %v478, %v2177
      %v2194 = vmul.f32 %v479, %v2177
      %2211 = vrot.lane.b32.xlu0 %v2179, 67
      %v2212 = vpop.permute.xlu0 %2211
      %2213 = vrot.lane.b32.xlu0 %v2180, 67
      %v2214 = vpop.permute.xlu0 %2213
      %2215 = vrot.lane.b32.xlu0 %v2181, 67
      %v2216 = vpop.permute.xlu0 %2215
      %2217 = vrot.lane.b32.xlu0 %v2182, 67
      %v2218 = vpop.permute.xlu0 %2217
      %2219 = vrot.lane.b32.xlu0 %v2183, 67
      %v2220 = vpop.permute.xlu0 %2219
      %2221 = vrot.lane.b32.xlu0 %v2184, 67
      %v2222 = vpop.permute.xlu0 %2221
      %2223 = vrot.lane.b32.xlu0 %v2185, 67
      %v2224 = vpop.permute.xlu0 %2223
      %2225 = vrot.lane.b32.xlu0 %v2186, 67
      %v2226 = vpop.permute.xlu0 %2225
      %2227 = vrot.lane.b32.xlu0 %v2187, 67
      %v2228 = vpop.permute.xlu0 %2227
      %2229 = vrot.lane.b32.xlu0 %v2188, 67
      %v2230 = vpop.permute.xlu0 %2229
      %2231 = vrot.lane.b32.xlu0 %v2189, 67
      %v2232 = vpop.permute.xlu0 %2231
      %2233 = vrot.lane.b32.xlu0 %v2190, 67
      %v2234 = vpop.permute.xlu0 %2233
      %2235 = vrot.lane.b32.xlu0 %v2191, 67
      %v2236 = vpop.permute.xlu0 %2235
      %2237 = vrot.lane.b32.xlu0 %v2192, 67
      %v2238 = vpop.permute.xlu0 %2237
      %2239 = vrot.lane.b32.xlu0 %v2193, 67
      %v2240 = vpop.permute.xlu0 %2239
      %2241 = vrot.lane.b32.xlu0 %v2194, 67
      %v2242 = vpop.permute.xlu0 %2241
      %v2243 = vsel %vm2126, %v2212, %v2214
      %v2244 = vsel %vm2126, %v2214, %v2216
      %v2245 = vsel %vm2126, %v2216, %v2218
      %v2246 = vsel %vm2126, %v2220, %v2222
      %v2247 = vsel %vm2126, %v2222, %v2224
      %v2248 = vsel %vm2126, %v2224, %v2226
      %v2249 = vsel %vm2126, %v2228, %v2230
      %v2250 = vsel %vm2126, %v2230, %v2232
      %v2251 = vsel %vm2126, %v2232, %v2234
      %v2252 = vsel %vm2126, %v2236, %v2238
      %v2253 = vsel %vm2126, %v2238, %v2240
      %v2254 = vsel %vm2126, %v2240, %v2242
      %v2271 = vadd.f32 %v1781, %v2243
      %v2272 = vadd.f32 %v1782, %v2244
      %v2273 = vadd.f32 %v1783, %v2245
      %v2274 = vadd.f32 %v1784, %v2218
      %v2275 = vadd.f32 %v1785, %v2246
      %v2276 = vadd.f32 %v1786, %v2247
      %v2277 = vadd.f32 %v1787, %v2248
      %v2278 = vadd.f32 %v1788, %v2226
      %v2279 = vadd.f32 %v1789, %v2249
      %v2280 = vadd.f32 %v1790, %v2250
      %v2281 = vadd.f32 %v1791, %v2251
      %v2282 = vadd.f32 %v1792, %v2234
      %v2283 = vadd.f32 %v1793, %v2252
      %v2284 = vadd.f32 %v1794, %v2253
      %v2285 = vadd.f32 %v1795, %v2254
      %v2286 = vadd.f32 %v1796, %v2242
      %2287 = vset.pattern.permute.xlu0 18
      %2288 = vperm.xlu0 %2287, %v428
      %v2289 = vpop.permute.xlu0 %2288
      %2291 = vset.pattern.permute.xlu0 18
      %2292 = vperm.xlu0 %2291, %v429
      %v2293 = vpop.permute.xlu0 %2292
      %2295 = vset.pattern.permute.xlu0 18
      %2296 = vperm.xlu0 %2295, %v430
      %v2297 = vpop.permute.xlu0 %2296
      %2299 = vset.pattern.permute.xlu0 18
      %2300 = vperm.xlu0 %2299, %v431
      %v2301 = vpop.permute.xlu0 %2300
      %v2303 = vmul.f32 %v464, %v2289
      %v2304 = vmul.f32 %v465, %v2289
      %v2305 = vmul.f32 %v466, %v2289
      %v2306 = vmul.f32 %v467, %v2289
      %v2307 = vmul.f32 %v468, %v2293
      %v2308 = vmul.f32 %v469, %v2293
      %v2309 = vmul.f32 %v470, %v2293
      %v2310 = vmul.f32 %v471, %v2293
      %v2311 = vmul.f32 %v472, %v2297
      %v2312 = vmul.f32 %v473, %v2297
      %v2313 = vmul.f32 %v474, %v2297
      %v2314 = vmul.f32 %v475, %v2297
      %v2315 = vmul.f32 %v476, %v2301
      %v2316 = vmul.f32 %v477, %v2301
      %v2317 = vmul.f32 %v478, %v2301
      %v2318 = vmul.f32 %v479, %v2301
      %2335 = vrot.lane.b32.xlu0 %v2303, 67
      %v2336 = vpop.permute.xlu0 %2335
      %2337 = vrot.lane.b32.xlu0 %v2304, 67
      %v2338 = vpop.permute.xlu0 %2337
      %2339 = vrot.lane.b32.xlu0 %v2305, 67
      %v2340 = vpop.permute.xlu0 %2339
      %2341 = vrot.lane.b32.xlu0 %v2306, 67
      %v2342 = vpop.permute.xlu0 %2341
      %2343 = vrot.lane.b32.xlu0 %v2307, 67
      %v2344 = vpop.permute.xlu0 %2343
      %2345 = vrot.lane.b32.xlu0 %v2308, 67
      %v2346 = vpop.permute.xlu0 %2345
      %2347 = vrot.lane.b32.xlu0 %v2309, 67
      %v2348 = vpop.permute.xlu0 %2347
      %2349 = vrot.lane.b32.xlu0 %v2310, 67
      %v2350 = vpop.permute.xlu0 %2349
      %2351 = vrot.lane.b32.xlu0 %v2311, 67
      %v2352 = vpop.permute.xlu0 %2351
      %2353 = vrot.lane.b32.xlu0 %v2312, 67
      %v2354 = vpop.permute.xlu0 %2353
      %2355 = vrot.lane.b32.xlu0 %v2313, 67
      %v2356 = vpop.permute.xlu0 %2355
      %2357 = vrot.lane.b32.xlu0 %v2314, 67
      %v2358 = vpop.permute.xlu0 %2357
      %2359 = vrot.lane.b32.xlu0 %v2315, 67
      %v2360 = vpop.permute.xlu0 %2359
      %2361 = vrot.lane.b32.xlu0 %v2316, 67
      %v2362 = vpop.permute.xlu0 %2361
      %2363 = vrot.lane.b32.xlu0 %v2317, 67
      %v2364 = vpop.permute.xlu0 %2363
      %2365 = vrot.lane.b32.xlu0 %v2318, 67
      %v2366 = vpop.permute.xlu0 %2365
      %v2367 = vsel %vm2126, %v2336, %v2338
      %v2368 = vsel %vm2126, %v2338, %v2340
      %v2369 = vsel %vm2126, %v2340, %v2342
      %v2370 = vsel %vm2126, %v2344, %v2346
      %v2371 = vsel %vm2126, %v2346, %v2348
      %v2372 = vsel %vm2126, %v2348, %v2350
      %v2373 = vsel %vm2126, %v2352, %v2354
      %v2374 = vsel %vm2126, %v2354, %v2356
      %v2375 = vsel %vm2126, %v2356, %v2358
      %v2376 = vsel %vm2126, %v2360, %v2362
      %v2377 = vsel %vm2126, %v2362, %v2364
      %v2378 = vsel %vm2126, %v2364, %v2366
      %v2395 = vadd.f32 %v1905, %v2367
      %v2396 = vadd.f32 %v1906, %v2368
      %v2397 = vadd.f32 %v1907, %v2369
      %v2398 = vadd.f32 %v1908, %v2342
      %v2399 = vadd.f32 %v1909, %v2370
      %v2400 = vadd.f32 %v1910, %v2371
      %v2401 = vadd.f32 %v1911, %v2372
      %v2402 = vadd.f32 %v1912, %v2350
      %v2403 = vadd.f32 %v1913, %v2373
      %v2404 = vadd.f32 %v1914, %v2374
      %v2405 = vadd.f32 %v1915, %v2375
      %v2406 = vadd.f32 %v1916, %v2358
      %v2407 = vadd.f32 %v1917, %v2376
      %v2408 = vadd.f32 %v1918, %v2377
      %v2409 = vadd.f32 %v1919, %v2378
      %v2410 = vadd.f32 %v1920, %v2366
      %2411 = vset.pattern.permute.xlu0 19
      %2412 = vperm.xlu0 %2411, %v428
      %v2413 = vpop.permute.xlu0 %2412
      %2415 = vset.pattern.permute.xlu0 19
      %2416 = vperm.xlu0 %2415, %v429
      %v2417 = vpop.permute.xlu0 %2416
      %2419 = vset.pattern.permute.xlu0 19
      %2420 = vperm.xlu0 %2419, %v430
      %v2421 = vpop.permute.xlu0 %2420
      %2423 = vset.pattern.permute.xlu0 19
      %2424 = vperm.xlu0 %2423, %v431
      %v2425 = vpop.permute.xlu0 %2424
      %v2427 = vmul.f32 %v464, %v2413
      %v2428 = vmul.f32 %v465, %v2413
      %v2429 = vmul.f32 %v466, %v2413
      %v2430 = vmul.f32 %v467, %v2413
      %v2431 = vmul.f32 %v468, %v2417
      %v2432 = vmul.f32 %v469, %v2417
      %v2433 = vmul.f32 %v470, %v2417
      %v2434 = vmul.f32 %v471, %v2417
      %v2435 = vmul.f32 %v472, %v2421
      %v2436 = vmul.f32 %v473, %v2421
      %v2437 = vmul.f32 %v474, %v2421
      %v2438 = vmul.f32 %v475, %v2421
      %v2439 = vmul.f32 %v476, %v2425
      %v2440 = vmul.f32 %v477, %v2425
      %v2441 = vmul.f32 %v478, %v2425
      %v2442 = vmul.f32 %v479, %v2425
      %2459 = vrot.lane.b32.xlu0 %v2427, 67
      %v2460 = vpop.permute.xlu0 %2459
      %2461 = vrot.lane.b32.xlu0 %v2428, 67
      %v2462 = vpop.permute.xlu0 %2461
      %2463 = vrot.lane.b32.xlu0 %v2429, 67
      %v2464 = vpop.permute.xlu0 %2463
      %2465 = vrot.lane.b32.xlu0 %v2430, 67
      %v2466 = vpop.permute.xlu0 %2465
      %2467 = vrot.lane.b32.xlu0 %v2431, 67
      %v2468 = vpop.permute.xlu0 %2467
      %2469 = vrot.lane.b32.xlu0 %v2432, 67
      %v2470 = vpop.permute.xlu0 %2469
      %2471 = vrot.lane.b32.xlu0 %v2433, 67
      %v2472 = vpop.permute.xlu0 %2471
      %2473 = vrot.lane.b32.xlu0 %v2434, 67
      %v2474 = vpop.permute.xlu0 %2473
      %2475 = vrot.lane.b32.xlu0 %v2435, 67
      %v2476 = vpop.permute.xlu0 %2475
      %2477 = vrot.lane.b32.xlu0 %v2436, 67
      %v2478 = vpop.permute.xlu0 %2477
      %2479 = vrot.lane.b32.xlu0 %v2437, 67
      %v2480 = vpop.permute.xlu0 %2479
      %2481 = vrot.lane.b32.xlu0 %v2438, 67
      %v2482 = vpop.permute.xlu0 %2481
      %2483 = vrot.lane.b32.xlu0 %v2439, 67
      %v2484 = vpop.permute.xlu0 %2483
      %2485 = vrot.lane.b32.xlu0 %v2440, 67
      %v2486 = vpop.permute.xlu0 %2485
      %2487 = vrot.lane.b32.xlu0 %v2441, 67
      %v2488 = vpop.permute.xlu0 %2487
      %2489 = vrot.lane.b32.xlu0 %v2442, 67
      %v2490 = vpop.permute.xlu0 %2489
      %v2491 = vsel %vm2126, %v2460, %v2462
      %v2492 = vsel %vm2126, %v2462, %v2464
      %v2493 = vsel %vm2126, %v2464, %v2466
      %v2494 = vsel %vm2126, %v2468, %v2470
      %v2495 = vsel %vm2126, %v2470, %v2472
      %v2496 = vsel %vm2126, %v2472, %v2474
      %v2497 = vsel %vm2126, %v2476, %v2478
      %v2498 = vsel %vm2126, %v2478, %v2480
      %v2499 = vsel %vm2126, %v2480, %v2482
      %v2500 = vsel %vm2126, %v2484, %v2486
      %v2501 = vsel %vm2126, %v2486, %v2488
      %v2502 = vsel %vm2126, %v2488, %v2490
      %v2519 = vadd.f32 %v2030, %v2491
      %v2520 = vadd.f32 %v2031, %v2492
      %v2521 = vadd.f32 %v2032, %v2493
      %v2522 = vadd.f32 %v2033, %v2466
      %v2523 = vadd.f32 %v2034, %v2494
      %v2524 = vadd.f32 %v2035, %v2495
      %v2525 = vadd.f32 %v2036, %v2496
      %v2526 = vadd.f32 %v2037, %v2474
      %v2527 = vadd.f32 %v2038, %v2497
      %v2528 = vadd.f32 %v2039, %v2498
      %v2529 = vadd.f32 %v2040, %v2499
      %v2530 = vadd.f32 %v2041, %v2482
      %v2531 = vadd.f32 %v2042, %v2500
      %v2532 = vadd.f32 %v2043, %v2501
      %v2533 = vadd.f32 %v2044, %v2502
      %v2534 = vadd.f32 %v2045, %v2490
      %2535 = vset.pattern.permute.xlu0 20
      %2536 = vperm.xlu0 %2535, %v428
      %v2537 = vpop.permute.xlu0 %2536
      %2539 = vset.pattern.permute.xlu0 20
      %2540 = vperm.xlu0 %2539, %v429
      %v2541 = vpop.permute.xlu0 %2540
      %2543 = vset.pattern.permute.xlu0 20
      %2544 = vperm.xlu0 %2543, %v430
      %v2545 = vpop.permute.xlu0 %2544
      %2547 = vset.pattern.permute.xlu0 20
      %2548 = vperm.xlu0 %2547, %v431
      %v2549 = vpop.permute.xlu0 %2548
      %v2551 = vmul.f32 %v464, %v2537
      %v2552 = vmul.f32 %v465, %v2537
      %v2553 = vmul.f32 %v466, %v2537
      %v2554 = vmul.f32 %v467, %v2537
      %v2555 = vmul.f32 %v468, %v2541
      %v2556 = vmul.f32 %v469, %v2541
      %v2557 = vmul.f32 %v470, %v2541
      %v2558 = vmul.f32 %v471, %v2541
      %v2559 = vmul.f32 %v472, %v2545
      %v2560 = vmul.f32 %v473, %v2545
      %v2561 = vmul.f32 %v474, %v2545
      %v2562 = vmul.f32 %v475, %v2545
      %v2563 = vmul.f32 %v476, %v2549
      %v2564 = vmul.f32 %v477, %v2549
      %v2565 = vmul.f32 %v478, %v2549
      %v2566 = vmul.f32 %v479, %v2549
      %2583 = vrot.lane.b32.xlu0 %v2551, 48
      %v2584 = vpop.permute.xlu0 %2583
      %2585 = vrot.lane.b32.xlu0 %v2552, 48
      %v2586 = vpop.permute.xlu0 %2585
      %2587 = vrot.lane.b32.xlu0 %v2553, 48
      %v2588 = vpop.permute.xlu0 %2587
      %2589 = vrot.lane.b32.xlu0 %v2554, 48
      %v2590 = vpop.permute.xlu0 %2589
      %2591 = vrot.lane.b32.xlu0 %v2555, 48
      %v2592 = vpop.permute.xlu0 %2591
      %2593 = vrot.lane.b32.xlu0 %v2556, 48
      %v2594 = vpop.permute.xlu0 %2593
      %2595 = vrot.lane.b32.xlu0 %v2557, 48
      %v2596 = vpop.permute.xlu0 %2595
      %2597 = vrot.lane.b32.xlu0 %v2558, 48
      %v2598 = vpop.permute.xlu0 %2597
      %2599 = vrot.lane.b32.xlu0 %v2559, 48
      %v2600 = vpop.permute.xlu0 %2599
      %2601 = vrot.lane.b32.xlu0 %v2560, 48
      %v2602 = vpop.permute.xlu0 %2601
      %2603 = vrot.lane.b32.xlu0 %v2561, 48
      %v2604 = vpop.permute.xlu0 %2603
      %2605 = vrot.lane.b32.xlu0 %v2562, 48
      %v2606 = vpop.permute.xlu0 %2605
      %2607 = vrot.lane.b32.xlu0 %v2563, 48
      %v2608 = vpop.permute.xlu0 %2607
      %2609 = vrot.lane.b32.xlu0 %v2564, 48
      %v2610 = vpop.permute.xlu0 %2609
      %2611 = vrot.lane.b32.xlu0 %v2565, 48
      %v2612 = vpop.permute.xlu0 %2611
      %2613 = vrot.lane.b32.xlu0 %v2566, 48
      %v2614 = vpop.permute.xlu0 %2613
      %vm2615 = vcmask 392192
      %v2616 = vsel %vm2615, %v2584, %v2586
      %v2617 = vsel %vm2615, %v2586, %v2588
      %v2618 = vsel %vm2615, %v2588, %v2590
      %v2619 = vsel %vm2615, %v2592, %v2594
      %v2620 = vsel %vm2615, %v2594, %v2596
      %v2621 = vsel %vm2615, %v2596, %v2598
      %v2622 = vsel %vm2615, %v2600, %v2602
      %v2623 = vsel %vm2615, %v2602, %v2604
      %v2624 = vsel %vm2615, %v2604, %v2606
      %v2625 = vsel %vm2615, %v2608, %v2610
      %v2626 = vsel %vm2615, %v2610, %v2612
      %v2627 = vsel %vm2615, %v2612, %v2614
      %v2640 = vadd.f32 %v2151, %v2616
      %v2641 = vadd.f32 %v2152, %v2617
      %v2642 = vadd.f32 %v2153, %v2618
      %v2643 = vadd.f32 %v2154, %v2619
      %v2644 = vadd.f32 %v2155, %v2620
      %v2645 = vadd.f32 %v2156, %v2621
      %v2646 = vadd.f32 %v2157, %v2622
      %v2647 = vadd.f32 %v2158, %v2623
      %v2648 = vadd.f32 %v2159, %v2624
      %v2649 = vadd.f32 %v2160, %v2625
      %v2650 = vadd.f32 %v2161, %v2626
      %v2651 = vadd.f32 %v2162, %v2627
      %2652 = vset.pattern.permute.xlu0 21
      %2653 = vperm.xlu0 %2652, %v428
      %v2654 = vpop.permute.xlu0 %2653
      %2656 = vset.pattern.permute.xlu0 21
      %2657 = vperm.xlu0 %2656, %v429
      %v2658 = vpop.permute.xlu0 %2657
      %2660 = vset.pattern.permute.xlu0 21
      %2661 = vperm.xlu0 %2660, %v430
      %v2662 = vpop.permute.xlu0 %2661
      %2664 = vset.pattern.permute.xlu0 21
      %2665 = vperm.xlu0 %2664, %v431
      %v2666 = vpop.permute.xlu0 %2665
      %v2668 = vmul.f32 %v464, %v2654
      %v2669 = vmul.f32 %v465, %v2654
      %v2670 = vmul.f32 %v466, %v2654
      %v2671 = vmul.f32 %v467, %v2654
      %v2672 = vmul.f32 %v468, %v2658
      %v2673 = vmul.f32 %v469, %v2658
      %v2674 = vmul.f32 %v470, %v2658
      %v2675 = vmul.f32 %v471, %v2658
      %v2676 = vmul.f32 %v472, %v2662
      %v2677 = vmul.f32 %v473, %v2662
      %v2678 = vmul.f32 %v474, %v2662
      %v2679 = vmul.f32 %v475, %v2662
      %v2680 = vmul.f32 %v476, %v2666
      %v2681 = vmul.f32 %v477, %v2666
      %v2682 = vmul.f32 %v478, %v2666
      %v2683 = vmul.f32 %v479, %v2666
      %2700 = vrot.lane.b32.xlu0 %v2668, 48
      %v2701 = vpop.permute.xlu0 %2700
      %2702 = vrot.lane.b32.xlu0 %v2669, 48
      %v2703 = vpop.permute.xlu0 %2702
      %2704 = vrot.lane.b32.xlu0 %v2670, 48
      %v2705 = vpop.permute.xlu0 %2704
      %2706 = vrot.lane.b32.xlu0 %v2671, 48
      %v2707 = vpop.permute.xlu0 %2706
      %2708 = vrot.lane.b32.xlu0 %v2672, 48
      %v2709 = vpop.permute.xlu0 %2708
      %2710 = vrot.lane.b32.xlu0 %v2673, 48
      %v2711 = vpop.permute.xlu0 %2710
      %2712 = vrot.lane.b32.xlu0 %v2674, 48
      %v2713 = vpop.permute.xlu0 %2712
      %2714 = vrot.lane.b32.xlu0 %v2675, 48
      %v2715 = vpop.permute.xlu0 %2714
      %2716 = vrot.lane.b32.xlu0 %v2676, 48
      %v2717 = vpop.permute.xlu0 %2716
      %2718 = vrot.lane.b32.xlu0 %v2677, 48
      %v2719 = vpop.permute.xlu0 %2718
      %2720 = vrot.lane.b32.xlu0 %v2678, 48
      %v2721 = vpop.permute.xlu0 %2720
      %2722 = vrot.lane.b32.xlu0 %v2679, 48
      %v2723 = vpop.permute.xlu0 %2722
      %2724 = vrot.lane.b32.xlu0 %v2680, 48
      %v2725 = vpop.permute.xlu0 %2724
      %2726 = vrot.lane.b32.xlu0 %v2681, 48
      %v2727 = vpop.permute.xlu0 %2726
      %2728 = vrot.lane.b32.xlu0 %v2682, 48
      %v2729 = vpop.permute.xlu0 %2728
      %2730 = vrot.lane.b32.xlu0 %v2683, 48
      %v2731 = vpop.permute.xlu0 %2730
      %v2732 = vsel %vm2615, %v2701, %v2703
      %v2733 = vsel %vm2615, %v2703, %v2705
      %v2734 = vsel %vm2615, %v2705, %v2707
      %v2735 = vsel %vm2615, %v2709, %v2711
      %v2736 = vsel %vm2615, %v2711, %v2713
      %v2737 = vsel %vm2615, %v2713, %v2715
      %v2738 = vsel %vm2615, %v2717, %v2719
      %v2739 = vsel %vm2615, %v2719, %v2721
      %v2740 = vsel %vm2615, %v2721, %v2723
      %v2741 = vsel %vm2615, %v2725, %v2727
      %v2742 = vsel %vm2615, %v2727, %v2729
      %v2743 = vsel %vm2615, %v2729, %v2731
      %v2760 = vadd.f32 %v2271, %v2732
      %v2761 = vadd.f32 %v2272, %v2733
      %v2762 = vadd.f32 %v2273, %v2734
      %v2763 = vadd.f32 %v2274, %v2707
      %v2764 = vadd.f32 %v2275, %v2735
      %v2765 = vadd.f32 %v2276, %v2736
      %v2766 = vadd.f32 %v2277, %v2737
      %v2767 = vadd.f32 %v2278, %v2715
      %v2768 = vadd.f32 %v2279, %v2738
      %v2769 = vadd.f32 %v2280, %v2739
      %v2770 = vadd.f32 %v2281, %v2740
      %v2771 = vadd.f32 %v2282, %v2723
      %v2772 = vadd.f32 %v2283, %v2741
      %v2773 = vadd.f32 %v2284, %v2742
      %v2774 = vadd.f32 %v2285, %v2743
      %v2775 = vadd.f32 %v2286, %v2731
      %2776 = vset.pattern.permute.xlu0 22
      %2777 = vperm.xlu0 %2776, %v428
      %v2778 = vpop.permute.xlu0 %2777
      %2780 = vset.pattern.permute.xlu0 22
      %2781 = vperm.xlu0 %2780, %v429
      %v2782 = vpop.permute.xlu0 %2781
      %2784 = vset.pattern.permute.xlu0 22
      %2785 = vperm.xlu0 %2784, %v430
      %v2786 = vpop.permute.xlu0 %2785
      %2788 = vset.pattern.permute.xlu0 22
      %2789 = vperm.xlu0 %2788, %v431
      %v2790 = vpop.permute.xlu0 %2789
      %v2792 = vmul.f32 %v464, %v2778
      %v2793 = vmul.f32 %v465, %v2778
      %v2794 = vmul.f32 %v466, %v2778
      %v2795 = vmul.f32 %v467, %v2778
      %v2796 = vmul.f32 %v468, %v2782
      %v2797 = vmul.f32 %v469, %v2782
      %v2798 = vmul.f32 %v470, %v2782
      %v2799 = vmul.f32 %v471, %v2782
      %v2800 = vmul.f32 %v472, %v2786
      %v2801 = vmul.f32 %v473, %v2786
      %v2802 = vmul.f32 %v474, %v2786
      %v2803 = vmul.f32 %v475, %v2786
      %v2804 = vmul.f32 %v476, %v2790
      %v2805 = vmul.f32 %v477, %v2790
      %v2806 = vmul.f32 %v478, %v2790
      %v2807 = vmul.f32 %v479, %v2790
      %2824 = vrot.lane.b32.xlu0 %v2792, 48
      %v2825 = vpop.permute.xlu0 %2824
      %2826 = vrot.lane.b32.xlu0 %v2793, 48
      %v2827 = vpop.permute.xlu0 %2826
      %2828 = vrot.lane.b32.xlu0 %v2794, 48
      %v2829 = vpop.permute.xlu0 %2828
      %2830 = vrot.lane.b32.xlu0 %v2795, 48
      %v2831 = vpop.permute.xlu0 %2830
      %2832 = vrot.lane.b32.xlu0 %v2796, 48
      %v2833 = vpop.permute.xlu0 %2832
      %2834 = vrot.lane.b32.xlu0 %v2797, 48
      %v2835 = vpop.permute.xlu0 %2834
      %2836 = vrot.lane.b32.xlu0 %v2798, 48
      %v2837 = vpop.permute.xlu0 %2836
      %2838 = vrot.lane.b32.xlu0 %v2799, 48
      %v2839 = vpop.permute.xlu0 %2838
      %2840 = vrot.lane.b32.xlu0 %v2800, 48
      %v2841 = vpop.permute.xlu0 %2840
      %2842 = vrot.lane.b32.xlu0 %v2801, 48
      %v2843 = vpop.permute.xlu0 %2842
      %2844 = vrot.lane.b32.xlu0 %v2802, 48
      %v2845 = vpop.permute.xlu0 %2844
      %2846 = vrot.lane.b32.xlu0 %v2803, 48
      %v2847 = vpop.permute.xlu0 %2846
      %2848 = vrot.lane.b32.xlu0 %v2804, 48
      %v2849 = vpop.permute.xlu0 %2848
      %2850 = vrot.lane.b32.xlu0 %v2805, 48
      %v2851 = vpop.permute.xlu0 %2850
      %2852 = vrot.lane.b32.xlu0 %v2806, 48
      %v2853 = vpop.permute.xlu0 %2852
      %2854 = vrot.lane.b32.xlu0 %v2807, 48
      %v2855 = vpop.permute.xlu0 %2854
      %v2856 = vsel %vm2615, %v2825, %v2827
      %v2857 = vsel %vm2615, %v2827, %v2829
      %v2858 = vsel %vm2615, %v2829, %v2831
      %v2859 = vsel %vm2615, %v2833, %v2835
      %v2860 = vsel %vm2615, %v2835, %v2837
      %v2861 = vsel %vm2615, %v2837, %v2839
      %v2862 = vsel %vm2615, %v2841, %v2843
      %v2863 = vsel %vm2615, %v2843, %v2845
      %v2864 = vsel %vm2615, %v2845, %v2847
      %v2865 = vsel %vm2615, %v2849, %v2851
      %v2866 = vsel %vm2615, %v2851, %v2853
      %v2867 = vsel %vm2615, %v2853, %v2855
      %v2884 = vadd.f32 %v2395, %v2856
      %v2885 = vadd.f32 %v2396, %v2857
      %v2886 = vadd.f32 %v2397, %v2858
      %v2887 = vadd.f32 %v2398, %v2831
      %v2888 = vadd.f32 %v2399, %v2859
      %v2889 = vadd.f32 %v2400, %v2860
      %v2890 = vadd.f32 %v2401, %v2861
      %v2891 = vadd.f32 %v2402, %v2839
      %v2892 = vadd.f32 %v2403, %v2862
      %v2893 = vadd.f32 %v2404, %v2863
      %v2894 = vadd.f32 %v2405, %v2864
      %v2895 = vadd.f32 %v2406, %v2847
      %v2896 = vadd.f32 %v2407, %v2865
      %v2897 = vadd.f32 %v2408, %v2866
      %v2898 = vadd.f32 %v2409, %v2867
      %v2899 = vadd.f32 %v2410, %v2855
      %2900 = vset.pattern.permute.xlu0 23
      %2901 = vperm.xlu0 %2900, %v428
      %v2902 = vpop.permute.xlu0 %2901
      %2904 = vset.pattern.permute.xlu0 23
      %2905 = vperm.xlu0 %2904, %v429
      %v2906 = vpop.permute.xlu0 %2905
      %2908 = vset.pattern.permute.xlu0 23
      %2909 = vperm.xlu0 %2908, %v430
      %v2910 = vpop.permute.xlu0 %2909
      %2912 = vset.pattern.permute.xlu0 23
      %2913 = vperm.xlu0 %2912, %v431
      %v2914 = vpop.permute.xlu0 %2913
      %v2916 = vmul.f32 %v464, %v2902
      %v2917 = vmul.f32 %v465, %v2902
      %v2918 = vmul.f32 %v466, %v2902
      %v2919 = vmul.f32 %v467, %v2902
      %v2920 = vmul.f32 %v468, %v2906
      %v2921 = vmul.f32 %v469, %v2906
      %v2922 = vmul.f32 %v470, %v2906
      %v2923 = vmul.f32 %v471, %v2906
      %v2924 = vmul.f32 %v472, %v2910
      %v2925 = vmul.f32 %v473, %v2910
      %v2926 = vmul.f32 %v474, %v2910
      %v2927 = vmul.f32 %v475, %v2910
      %v2928 = vmul.f32 %v476, %v2914
      %v2929 = vmul.f32 %v477, %v2914
      %v2930 = vmul.f32 %v478, %v2914
      %v2931 = vmul.f32 %v479, %v2914
      %2948 = vrot.lane.b32.xlu0 %v2916, 48
      %v2949 = vpop.permute.xlu0 %2948
      %2950 = vrot.lane.b32.xlu0 %v2917, 48
      %v2951 = vpop.permute.xlu0 %2950
      %2952 = vrot.lane.b32.xlu0 %v2918, 48
      %v2953 = vpop.permute.xlu0 %2952
      %2954 = vrot.lane.b32.xlu0 %v2919, 48
      %v2955 = vpop.permute.xlu0 %2954
      %2956 = vrot.lane.b32.xlu0 %v2920, 48
      %v2957 = vpop.permute.xlu0 %2956
      %2958 = vrot.lane.b32.xlu0 %v2921, 48
      %v2959 = vpop.permute.xlu0 %2958
      %2960 = vrot.lane.b32.xlu0 %v2922, 48
      %v2961 = vpop.permute.xlu0 %2960
      %2962 = vrot.lane.b32.xlu0 %v2923, 48
      %v2963 = vpop.permute.xlu0 %2962
      %2964 = vrot.lane.b32.xlu0 %v2924, 48
      %v2965 = vpop.permute.xlu0 %2964
      %2966 = vrot.lane.b32.xlu0 %v2925, 48
      %v2967 = vpop.permute.xlu0 %2966
      %2968 = vrot.lane.b32.xlu0 %v2926, 48
      %v2969 = vpop.permute.xlu0 %2968
      %2970 = vrot.lane.b32.xlu0 %v2927, 48
      %v2971 = vpop.permute.xlu0 %2970
      %2972 = vrot.lane.b32.xlu0 %v2928, 48
      %v2973 = vpop.permute.xlu0 %2972
      %2974 = vrot.lane.b32.xlu0 %v2929, 48
      %v2975 = vpop.permute.xlu0 %2974
      %2976 = vrot.lane.b32.xlu0 %v2930, 48
      %v2977 = vpop.permute.xlu0 %2976
      %2978 = vrot.lane.b32.xlu0 %v2931, 48
      %v2979 = vpop.permute.xlu0 %2978
      %v2980 = vsel %vm2615, %v2949, %v2951
      %v2981 = vsel %vm2615, %v2951, %v2953
      %v2982 = vsel %vm2615, %v2953, %v2955
      %v2983 = vsel %vm2615, %v2957, %v2959
      %v2984 = vsel %vm2615, %v2959, %v2961
      %v2985 = vsel %vm2615, %v2961, %v2963
      %v2986 = vsel %vm2615, %v2965, %v2967
      %v2987 = vsel %vm2615, %v2967, %v2969
      %v2988 = vsel %vm2615, %v2969, %v2971
      %v2989 = vsel %vm2615, %v2973, %v2975
      %v2990 = vsel %vm2615, %v2975, %v2977
      %v2991 = vsel %vm2615, %v2977, %v2979
      %v3008 = vadd.f32 %v2519, %v2980
      %v3009 = vadd.f32 %v2520, %v2981
      %v3010 = vadd.f32 %v2521, %v2982
      %v3011 = vadd.f32 %v2522, %v2955
      %v3012 = vadd.f32 %v2523, %v2983
      %v3013 = vadd.f32 %v2524, %v2984
      %v3014 = vadd.f32 %v2525, %v2985
      %v3015 = vadd.f32 %v2526, %v2963
      %v3016 = vadd.f32 %v2527, %v2986
      %v3017 = vadd.f32 %v2528, %v2987
      %v3018 = vadd.f32 %v2529, %v2988
      %v3019 = vadd.f32 %v2530, %v2971
      %v3020 = vadd.f32 %v2531, %v2989
      %v3021 = vadd.f32 %v2532, %v2990
      %v3022 = vadd.f32 %v2533, %v2991
      %v3023 = vadd.f32 %v2534, %v2979
      %3024 = vset.pattern.permute.xlu0 24
      %3025 = vperm.xlu0 %3024, %v428
      %v3026 = vpop.permute.xlu0 %3025
      %3028 = vset.pattern.permute.xlu0 24
      %3029 = vperm.xlu0 %3028, %v429
      %v3030 = vpop.permute.xlu0 %3029
      %3032 = vset.pattern.permute.xlu0 24
      %3033 = vperm.xlu0 %3032, %v430
      %v3034 = vpop.permute.xlu0 %3033
      %3036 = vset.pattern.permute.xlu0 24
      %3037 = vperm.xlu0 %3036, %v431
      %v3038 = vpop.permute.xlu0 %3037
      %v3040 = vmul.f32 %v464, %v3026
      %v3041 = vmul.f32 %v465, %v3026
      %v3042 = vmul.f32 %v466, %v3026
      %v3043 = vmul.f32 %v467, %v3026
      %v3044 = vmul.f32 %v468, %v3030
      %v3045 = vmul.f32 %v469, %v3030
      %v3046 = vmul.f32 %v470, %v3030
      %v3047 = vmul.f32 %v471, %v3030
      %v3048 = vmul.f32 %v472, %v3034
      %v3049 = vmul.f32 %v473, %v3034
      %v3050 = vmul.f32 %v474, %v3034
      %v3051 = vmul.f32 %v475, %v3034
      %v3052 = vmul.f32 %v476, %v3038
      %v3053 = vmul.f32 %v477, %v3038
      %v3054 = vmul.f32 %v478, %v3038
      %v3055 = vmul.f32 %v479, %v3038
      %3072 = vrot.lane.b32.xlu0 %v3040, 44
      %v3073 = vpop.permute.xlu0 %3072
      %3074 = vrot.lane.b32.xlu0 %v3041, 44
      %v3075 = vpop.permute.xlu0 %3074
      %3076 = vrot.lane.b32.xlu0 %v3042, 44
      %v3077 = vpop.permute.xlu0 %3076
      %3078 = vrot.lane.b32.xlu0 %v3043, 44
      %v3079 = vpop.permute.xlu0 %3078
      %3080 = vrot.lane.b32.xlu0 %v3044, 44
      %v3081 = vpop.permute.xlu0 %3080
      %3082 = vrot.lane.b32.xlu0 %v3045, 44
      %v3083 = vpop.permute.xlu0 %3082
      %3084 = vrot.lane.b32.xlu0 %v3046, 44
      %v3085 = vpop.permute.xlu0 %3084
      %3086 = vrot.lane.b32.xlu0 %v3047, 44
      %v3087 = vpop.permute.xlu0 %3086
      %3088 = vrot.lane.b32.xlu0 %v3048, 44
      %v3089 = vpop.permute.xlu0 %3088
      %3090 = vrot.lane.b32.xlu0 %v3049, 44
      %v3091 = vpop.permute.xlu0 %3090
      %3092 = vrot.lane.b32.xlu0 %v3050, 44
      %v3093 = vpop.permute.xlu0 %3092
      %3094 = vrot.lane.b32.xlu0 %v3051, 44
      %v3095 = vpop.permute.xlu0 %3094
      %3096 = vrot.lane.b32.xlu0 %v3052, 44
      %v3097 = vpop.permute.xlu0 %3096
      %3098 = vrot.lane.b32.xlu0 %v3053, 44
      %v3099 = vpop.permute.xlu0 %3098
      %3100 = vrot.lane.b32.xlu0 %v3054, 44
      %v3101 = vpop.permute.xlu0 %3100
      %3102 = vrot.lane.b32.xlu0 %v3055, 44
      %v3103 = vpop.permute.xlu0 %3102
      %vm3104 = vcmask 359424
      %v3105 = vsel %vm3104, %v3073, %v3075
      %v3106 = vsel %vm3104, %v3075, %v3077
      %v3107 = vsel %vm3104, %v3077, %v3079
      %v3108 = vsel %vm3104, %v3081, %v3083
      %v3109 = vsel %vm3104, %v3083, %v3085
      %v3110 = vsel %vm3104, %v3085, %v3087
      %v3111 = vsel %vm3104, %v3089, %v3091
      %v3112 = vsel %vm3104, %v3091, %v3093
      %v3113 = vsel %vm3104, %v3093, %v3095
      %v3114 = vsel %vm3104, %v3097, %v3099
      %v3115 = vsel %vm3104, %v3099, %v3101
      %v3116 = vsel %vm3104, %v3101, %v3103
      %v3129 = vadd.f32 %v2640, %v3105
      %v3130 = vadd.f32 %v2641, %v3106
      %v3131 = vadd.f32 %v2642, %v3107
      %v3132 = vadd.f32 %v2643, %v3108
      %v3133 = vadd.f32 %v2644, %v3109
      %v3134 = vadd.f32 %v2645, %v3110
      %v3135 = vadd.f32 %v2646, %v3111
      %v3136 = vadd.f32 %v2647, %v3112
      %v3137 = vadd.f32 %v2648, %v3113
      %v3138 = vadd.f32 %v2649, %v3114
      %v3139 = vadd.f32 %v2650, %v3115
      %v3140 = vadd.f32 %v2651, %v3116
      %3157 = vrot.lane.b32.xlu0 %v2760, 127
      %v3158 = vpop.permute.xlu0 %3157
      %3159 = vrot.lane.b32.xlu0 %v2761, 127
      %v3160 = vpop.permute.xlu0 %3159
      %3161 = vrot.lane.b32.xlu0 %v2762, 127
      %v3162 = vpop.permute.xlu0 %3161
      %3163 = vrot.lane.b32.xlu0 %v2763, 127
      %v3164 = vpop.permute.xlu0 %3163
      %3165 = vrot.lane.b32.xlu0 %v2764, 127
      %v3166 = vpop.permute.xlu0 %3165
      %3167 = vrot.lane.b32.xlu0 %v2765, 127
      %v3168 = vpop.permute.xlu0 %3167
      %3169 = vrot.lane.b32.xlu0 %v2766, 127
      %v3170 = vpop.permute.xlu0 %3169
      %3171 = vrot.lane.b32.xlu0 %v2767, 127
      %v3172 = vpop.permute.xlu0 %3171
      %3173 = vrot.lane.b32.xlu0 %v2768, 127
      %v3174 = vpop.permute.xlu0 %3173
      %3175 = vrot.lane.b32.xlu0 %v2769, 127
      %v3176 = vpop.permute.xlu0 %3175
      %3177 = vrot.lane.b32.xlu0 %v2770, 127
      %v3178 = vpop.permute.xlu0 %3177
      %3179 = vrot.lane.b32.xlu0 %v2771, 127
      %v3180 = vpop.permute.xlu0 %3179
      %3181 = vrot.lane.b32.xlu0 %v2772, 127
      %v3182 = vpop.permute.xlu0 %3181
      %3183 = vrot.lane.b32.xlu0 %v2773, 127
      %v3184 = vpop.permute.xlu0 %3183
      %3185 = vrot.lane.b32.xlu0 %v2774, 127
      %v3186 = vpop.permute.xlu0 %3185
      %3187 = vrot.lane.b32.xlu0 %v2775, 127
      %v3188 = vpop.permute.xlu0 %3187
      %vm3189 = vcmask 1039360
      %v3190 = vsel %vm3189, %v3158, %v3160
      %v3191 = vsel %vm3189, %v3160, %v3162
      %v3192 = vsel %vm3189, %v3162, %v3164
      %v3193 = vsel %vm3189, %v3166, %v3168
      %v3194 = vsel %vm3189, %v3168, %v3170
      %v3195 = vsel %vm3189, %v3170, %v3172
      %v3196 = vsel %vm3189, %v3174, %v3176
      %v3197 = vsel %vm3189, %v3176, %v3178
      %v3198 = vsel %vm3189, %v3178, %v3180
      %v3199 = vsel %vm3189, %v3182, %v3184
      %v3200 = vsel %vm3189, %v3184, %v3186
      %v3201 = vsel %vm3189, %v3186, %v3188
      %v3214 = vadd.f32 %v3129, %v3190
      %v3215 = vadd.f32 %v3130, %v3191
      %v3216 = vadd.f32 %v3131, %v3192
      %v3217 = vadd.f32 %v3132, %v3193
      %v3218 = vadd.f32 %v3133, %v3194
      %v3219 = vadd.f32 %v3134, %v3195
      %v3220 = vadd.f32 %v3135, %v3196
      %v3221 = vadd.f32 %v3136, %v3197
      %v3222 = vadd.f32 %v3137, %v3198
      %v3223 = vadd.f32 %v3138, %v3199
      %v3224 = vadd.f32 %v3139, %v3200
      %v3225 = vadd.f32 %v3140, %v3201
      %3242 = vrot.lane.b32.xlu0 %v3008, 127
      %v3243 = vpop.permute.xlu0 %3242
      %3244 = vrot.lane.b32.xlu0 %v3009, 127
      %v3245 = vpop.permute.xlu0 %3244
      %3246 = vrot.lane.b32.xlu0 %v3010, 127
      %v3247 = vpop.permute.xlu0 %3246
      %3248 = vrot.lane.b32.xlu0 %v3011, 127
      %v3249 = vpop.permute.xlu0 %3248
      %3250 = vrot.lane.b32.xlu0 %v3012, 127
      %v3251 = vpop.permute.xlu0 %3250
      %3252 = vrot.lane.b32.xlu0 %v3013, 127
      %v3253 = vpop.permute.xlu0 %3252
      %3254 = vrot.lane.b32.xlu0 %v3014, 127
      %v3255 = vpop.permute.xlu0 %3254
      %3256 = vrot.lane.b32.xlu0 %v3015, 127
      %v3257 = vpop.permute.xlu0 %3256
      %3258 = vrot.lane.b32.xlu0 %v3016, 127
      %v3259 = vpop.permute.xlu0 %3258
      %3260 = vrot.lane.b32.xlu0 %v3017, 127
      %v3261 = vpop.permute.xlu0 %3260
      %3262 = vrot.lane.b32.xlu0 %v3018, 127
      %v3263 = vpop.permute.xlu0 %3262
      %3264 = vrot.lane.b32.xlu0 %v3019, 127
      %v3265 = vpop.permute.xlu0 %3264
      %3266 = vrot.lane.b32.xlu0 %v3020, 127
      %v3267 = vpop.permute.xlu0 %3266
      %3268 = vrot.lane.b32.xlu0 %v3021, 127
      %v3269 = vpop.permute.xlu0 %3268
      %3270 = vrot.lane.b32.xlu0 %v3022, 127
      %v3271 = vpop.permute.xlu0 %3270
      %3272 = vrot.lane.b32.xlu0 %v3023, 127
      %v3273 = vpop.permute.xlu0 %3272
      %v3274 = vsel %vm3189, %v3243, %v3245
      %v3275 = vsel %vm3189, %v3245, %v3247
      %v3276 = vsel %vm3189, %v3247, %v3249
      %v3277 = vsel %vm3189, %v3251, %v3253
      %v3278 = vsel %vm3189, %v3253, %v3255
      %v3279 = vsel %vm3189, %v3255, %v3257
      %v3280 = vsel %vm3189, %v3259, %v3261
      %v3281 = vsel %vm3189, %v3261, %v3263
      %v3282 = vsel %vm3189, %v3263, %v3265
      %v3283 = vsel %vm3189, %v3267, %v3269
      %v3284 = vsel %vm3189, %v3269, %v3271
      %v3285 = vsel %vm3189, %v3271, %v3273
      %v3302 = vadd.f32 %v2884, %v3274
      %v3303 = vadd.f32 %v2885, %v3275
      %v3304 = vadd.f32 %v2886, %v3276
      %v3305 = vadd.f32 %v2887, %v3249
      %v3306 = vadd.f32 %v2888, %v3277
      %v3307 = vadd.f32 %v2889, %v3278
      %v3308 = vadd.f32 %v2890, %v3279
      %v3309 = vadd.f32 %v2891, %v3257
      %v3310 = vadd.f32 %v2892, %v3280
      %v3311 = vadd.f32 %v2893, %v3281
      %v3312 = vadd.f32 %v2894, %v3282
      %v3313 = vadd.f32 %v2895, %v3265
      %v3314 = vadd.f32 %v2896, %v3283
      %v3315 = vadd.f32 %v2897, %v3284
      %v3316 = vadd.f32 %v2898, %v3285
      %v3317 = vadd.f32 %v2899, %v3273
      %3334 = vrot.lane.b32.xlu0 %v3302, 126
      %v3335 = vpop.permute.xlu0 %3334
      %3336 = vrot.lane.b32.xlu0 %v3303, 126
      %v3337 = vpop.permute.xlu0 %3336
      %3338 = vrot.lane.b32.xlu0 %v3304, 126
      %v3339 = vpop.permute.xlu0 %3338
      %3340 = vrot.lane.b32.xlu0 %v3305, 126
      %v3341 = vpop.permute.xlu0 %3340
      %3342 = vrot.lane.b32.xlu0 %v3306, 126
      %v3343 = vpop.permute.xlu0 %3342
      %3344 = vrot.lane.b32.xlu0 %v3307, 126
      %v3345 = vpop.permute.xlu0 %3344
      %3346 = vrot.lane.b32.xlu0 %v3308, 126
      %v3347 = vpop.permute.xlu0 %3346
      %3348 = vrot.lane.b32.xlu0 %v3309, 126
      %v3349 = vpop.permute.xlu0 %3348
      %3350 = vrot.lane.b32.xlu0 %v3310, 126
      %v3351 = vpop.permute.xlu0 %3350
      %3352 = vrot.lane.b32.xlu0 %v3311, 126
      %v3353 = vpop.permute.xlu0 %3352
      %3354 = vrot.lane.b32.xlu0 %v3312, 126
      %v3355 = vpop.permute.xlu0 %3354
      %3356 = vrot.lane.b32.xlu0 %v3313, 126
      %v3357 = vpop.permute.xlu0 %3356
      %3358 = vrot.lane.b32.xlu0 %v3314, 126
      %v3359 = vpop.permute.xlu0 %3358
      %3360 = vrot.lane.b32.xlu0 %v3315, 126
      %v3361 = vpop.permute.xlu0 %3360
      %3362 = vrot.lane.b32.xlu0 %v3316, 126
      %v3363 = vpop.permute.xlu0 %3362
      %3364 = vrot.lane.b32.xlu0 %v3317, 126
      %v3365 = vpop.permute.xlu0 %3364
      %vm3366 = vcmask 1031168
      %v3367 = vsel %vm3366, %v3335, %v3337
      %v3368 = vsel %vm3366, %v3337, %v3339
      %v3369 = vsel %vm3366, %v3339, %v3341
      %v3370 = vsel %vm3366, %v3343, %v3345
      %v3371 = vsel %vm3366, %v3345, %v3347
      %v3372 = vsel %vm3366, %v3347, %v3349
      %v3373 = vsel %vm3366, %v3351, %v3353
      %v3374 = vsel %vm3366, %v3353, %v3355
      %v3375 = vsel %vm3366, %v3355, %v3357
      %v3376 = vsel %vm3366, %v3359, %v3361
      %v3377 = vsel %vm3366, %v3361, %v3363
      %v3378 = vsel %vm3366, %v3363, %v3365
      %v3391 = vadd.f32 %v3214, %v3367
      %v3392 = vadd.f32 %v3215, %v3368
      %v3393 = vadd.f32 %v3216, %v3369
      %v3394 = vadd.f32 %v3217, %v3370
      %v3395 = vadd.f32 %v3218, %v3371
      %v3396 = vadd.f32 %v3219, %v3372
      %v3397 = vadd.f32 %v3220, %v3373
      %v3398 = vadd.f32 %v3221, %v3374
      %v3399 = vadd.f32 %v3222, %v3375
      %v3400 = vadd.f32 %v3223, %v3376
      %v3401 = vadd.f32 %v3224, %v3377
      %v3402 = vadd.f32 %v3225, %v3378
      %v3403 = vld [vmem:[%s387] sm:$0xff]
      %v3404 = vld [vmem:[%s387 + $0x8] sm:$0xff]
      %v3405 = vld [vmem:[%s387 + $0x10] sm:$0xff]
      %v3406 = vld [vmem:[%s387 + $0x18] sm:$0xff]
      %3408 = vset.pattern.permute.xlu0 0
      %3409 = vperm.xlu0 %3408, %v3403
      %v3410 = vpop.permute.xlu0 %3409
      %3413 = vset.pattern.permute.xlu0 0
      %3414 = vperm.xlu0 %3413, %v3404
      %v3415 = vpop.permute.xlu0 %3414
      %3418 = vset.pattern.permute.xlu0 0
      %3419 = vperm.xlu0 %3418, %v3405
      %v3420 = vpop.permute.xlu0 %3419
      %3423 = vset.pattern.permute.xlu0 0
      %3424 = vperm.xlu0 %3423, %v3406
      %v3425 = vpop.permute.xlu0 %3424
      %v3427 = vadd.f32 %v3391, %v3410
      %v3428 = vadd.f32 %v3392, %v3410
      %v3429 = vadd.f32 %v3393, %v3410
      %v3430 = vadd.f32 %v3394, %v3415
      %v3431 = vadd.f32 %v3395, %v3415
      %v3432 = vadd.f32 %v3396, %v3415
      %v3433 = vadd.f32 %v3397, %v3420
      %v3434 = vadd.f32 %v3398, %v3420
      %v3435 = vadd.f32 %v3399, %v3420
      %v3436 = vadd.f32 %v3400, %v3425
      %v3437 = vadd.f32 %v3401, %v3425
      %v3438 = vadd.f32 %v3402, %v3425
      %v3439 = vmax.f32 %v3427, 0.0
      %v3440 = vmax.f32 %v3428, 0.0
      %v3441 = vmax.f32 %v3429, 0.0
      %v3442 = vmax.f32 %v3430, 0.0
      %v3443 = vmax.f32 %v3431, 0.0
      %v3444 = vmax.f32 %v3432, 0.0
      %v3445 = vmax.f32 %v3433, 0.0
      %v3446 = vmax.f32 %v3434, 0.0
      %v3447 = vmax.f32 %v3435, 0.0
      %v3448 = vmax.f32 %v3436, 0.0
      %v3449 = vmax.f32 %v3437, 0.0
      %v3450 = vmax.f32 %v3438, 0.0
      %v3451 = vpack.c.bf16 %v3442, %v3439
      %v3452 = vpack.c.bf16 %v3443, %v3440
      %v3453 = vpack.c.bf16 %v3444, %v3441
      %v3454 = vpack.c.bf16 %v3448, %v3445
      %v3455 = vpack.c.bf16 %v3449, %v3446
      %v3456 = vpack.c.bf16 %v3450, %v3447
      %v3457 = vld [vmem:[%s392] sm:$0xf]
      %v3458 = vld [vmem:[%s392 + $0x4] sm:$0xf]
      %v3459 = vld [vmem:[%s392 + $0x8] sm:$0xf]
      %v3460 = vld [vmem:[%s392 + $0xc] sm:$0xf]
      %v3461 = vld [vmem:[%s397] sm:$0xff]
      %v3462 = vld [vmem:[%s397 + $0x8] sm:$0xff]
      %v3463 = vld [vmem:[%s397 + $0x10] sm:$0xff]
      %v3464 = vld [vmem:[%s397 + $0x18] sm:$0xff]
      %3466 = vset.pattern.permute.xlu0 0
      %3467 = vperm.xlu0 %3466, %v3461
      %v3468 = vpop.permute.xlu0 %3467
      %3471 = vset.pattern.permute.xlu0 0
      %3472 = vperm.xlu0 %3471, %v3462
      %v3473 = vpop.permute.xlu0 %3472
      %3476 = vset.pattern.permute.xlu0 0
      %3477 = vperm.xlu0 %3476, %v3463
      %v3478 = vpop.permute.xlu0 %3477
      %3481 = vset.pattern.permute.xlu0 0
      %3482 = vperm.xlu0 %3481, %v3464
      %v3483 = vpop.permute.xlu0 %3482
      %v3489 = vunpack.c.l.b16 %v3457
      %v3490 = vunpack.c.l.b16 %v3458
      %v3491 = vunpack.c.l.b16 %v3459
      %v3492 = vunpack.c.l.b16 %v3460
      %v3493 = vpack.c.b16 %v3490, %v3489
      %v3494 = vpack.c.b16 %v3492, %v3491
      %vm3495 = vcmask 261120
      %v3497 = vsel %vm3495, %v3493, 0
      %v3500 = vsel %vm3495, %v3494, 0
      %3502 = vmatprep.subr.bf16.mxu0 %v3452
      %3503 = vmatpush1.bf16.msra.mxu0 %v3451
      %3504 = vmatprep.subr.bf16.mxu0 %v3455
      %3505 = vmatpush1.bf16.msra.mxu0 %v3454
      %3506 = vmatprep.subr.bf16.mxu0 0
      %3507 = vmatpush1.bf16.msra.mxu0 0
      %3508 = vmatprep.subr.bf16.mxu0 0
      %3509 = vmatpush1.bf16.msra.mxu0 0
      %3510 = vmatprep.subr.bf16.mxu0 0
      %3511 = vmatpush1.bf16.msra.mxu0 0
      %3512 = vmatprep.subr.bf16.mxu0 0
      %3513 = vmatpush1.bf16.msra.mxu0 0
      %3514 = vmatprep.subr.bf16.mxu0 0
      %3515 = vmatpush1.bf16.msra.mxu0 0
      %3516 = vmatprep.subr.bf16.mxu0 0
      %3517 = vmatpush1.bf16.msra.mxu0 0
      %3518 = vmatprep.subr.bf16.mxu0 0
      %3519 = vmatpush1.bf16.msra.mxu0 0
      %3520 = vmatprep.subr.bf16.mxu0 0
      %3521 = vmatpush1.bf16.msra.mxu0 0
      %3522 = vmatprep.subr.bf16.mxu0 0
      %3523 = vmatpush1.bf16.msra.mxu0 0
      %3524 = vmatprep.subr.bf16.mxu0 0
      %3525 = vmatpush1.bf16.msra.mxu0 0
      %3526 = vmatprep.subr.bf16.mxu0 0
      %3527 = vmatpush1.bf16.msra.mxu0 0
      %3528 = vmatprep.subr.bf16.mxu0 0
      %3529 = vmatpush1.bf16.msra.mxu0 0
      %3530 = vmatprep.subr.bf16.mxu0 0
      %3531 = vmatpush1.bf16.msra.mxu0 0
      %3532 = vmatprep.subr.bf16.mxu0 0
      %3533 = vmatpush1.bf16.msra.mxu0 0
      %3534 = vmatprep.mubr.bf16.mxu0 0
      %3535 = vmatmul.mubr.bf16.gmra.mrb[0].mxu0 %v3497
      %v3536 = vpop.f32.mrb[0].mxu0
      %v3537 = vadd.f32 %v3468, %v3536
      %v3538 = vpop.f32.mrb[0].mxu0
      %v3539 = vadd.f32 %v3468, %v3538
      %v3540 = vpop.f32.mrb[0].mxu0
      %v3541 = vadd.f32 %v3473, %v3540
      %v3542 = vpop.f32.mrb[0].mxu0
      %v3543 = vadd.f32 %v3473, %v3542
      %3544 = vmatprep.mubr.bf16.mxu0 0
      %3545 = vmatmul.mubr.bf16.gmra.mrb[0].mxu0 %v3500
      %v3546 = vpop.f32.mrb[0].mxu0
      %v3547 = vadd.f32 %v3478, %v3546
      %v3548 = vpop.f32.mrb[0].mxu0
      %v3549 = vadd.f32 %v3478, %v3548
      %v3550 = vpop.f32.mrb[0].mxu0
      %v3551 = vadd.f32 %v3483, %v3550
      %v3552 = vpop.f32.mrb[0].mxu0
      %v3553 = vadd.f32 %v3483, %v3552
      %3554 = vdwg.mxu0
      %3555 = vmatprep.subr.bf16.mxu0 0
      %3556 = vmatpush1.bf16.msra.mxu0 %v3453
      %3557 = vmatprep.subr.bf16.mxu0 0
      %3558 = vmatpush1.bf16.msra.mxu0 %v3456
      %3559 = vmatprep.subr.bf16.mxu0 0
      %3560 = vmatpush1.bf16.msra.mxu0 0
      %3561 = vmatprep.subr.bf16.mxu0 0
      %3562 = vmatpush1.bf16.msra.mxu0 0
      %3563 = vmatprep.subr.bf16.mxu0 0
      %3564 = vmatpush1.bf16.msra.mxu0 0
      %3565 = vmatprep.subr.bf16.mxu0 0
      %3566 = vmatpush1.bf16.msra.mxu0 0
      %3567 = vmatprep.subr.bf16.mxu0 0
      %3568 = vmatpush1.bf16.msra.mxu0 0
      %3569 = vmatprep.subr.bf16.mxu0 0
      %3570 = vmatpush1.bf16.msra.mxu0 0
      %3571 = vmatprep.subr.bf16.mxu0 0
      %3572 = vmatpush1.bf16.msra.mxu0 0
      %3573 = vmatprep.subr.bf16.mxu0 0
      %3574 = vmatpush1.bf16.msra.mxu0 0
      %3575 = vmatprep.subr.bf16.mxu0 0
      %3576 = vmatpush1.bf16.msra.mxu0 0
      %3577 = vmatprep.subr.bf16.mxu0 0
      %3578 = vmatpush1.bf16.msra.mxu0 0
      %3579 = vmatprep.subr.bf16.mxu0 0
      %3580 = vmatpush1.bf16.msra.mxu0 0
      %3581 = vmatprep.subr.bf16.mxu0 0
      %3582 = vmatpush1.bf16.msra.mxu0 0
      %3583 = vmatprep.subr.bf16.mxu0 0
      %3584 = vmatpush1.bf16.msra.mxu0 0
      %3585 = vmatprep.subr.bf16.mxu0 0
      %3586 = vmatpush1.bf16.msra.mxu0 0
      %3587 = vmatprep.mubr.bf16.mxu0 0
      %3588 = vmatmul.mubr.bf16.gmra.mrb[0].mxu0 %v3497
      %v3589 = vpop.f32.mrb[0].mxu0
      %v3590 = vadd.f32 %v3468, %v3589
      %v3591 = vpop.f32.mrb[0].mxu0
      %v3592 = vpop.f32.mrb[0].mxu0
      %v3593 = vadd.f32 %v3473, %v3592
      %v3594 = vpop.f32.mrb[0].mxu0
      %3595 = vmatprep.mubr.bf16.mxu0 0
      %3596 = vmatmul.mubr.bf16.gmra.mrb[0].mxu0 %v3500
      %v3597 = vpop.f32.mrb[0].mxu0
      %v3598 = vadd.f32 %v3478, %v3597
      %v3599 = vpop.f32.mrb[0].mxu0
      %v3600 = vpop.f32.mrb[0].mxu0
      %v3601 = vadd.f32 %v3483, %v3600
      %v3602 = vpop.f32.mrb[0].mxu0
      %3603 = vdwg.mxu0
      %v3604 = vmax.f32 %v3537, 0.0
      %v3605 = vmax.f32 %v3539, 0.0
      %v3606 = vmax.f32 %v3590, 0.0
      %v3607 = vmax.f32 %v3541, 0.0
      %v3608 = vmax.f32 %v3543, 0.0
      %v3609 = vmax.f32 %v3593, 0.0
      %v3610 = vmax.f32 %v3547, 0.0
      %v3611 = vmax.f32 %v3549, 0.0
      %v3612 = vmax.f32 %v3598, 0.0
      %v3613 = vmax.f32 %v3551, 0.0
      %v3614 = vmax.f32 %v3553, 0.0
      %v3615 = vmax.f32 %v3601, 0.0
      %v3616 = vpack.c.bf16 %v3607, %v3604
      %v3617 = vpack.c.bf16 %v3608, %v3605
      %v3618 = vpack.c.bf16 %v3609, %v3606
      %v3619 = vpack.c.bf16 %v3613, %v3610
      %v3620 = vpack.c.bf16 %v3614, %v3611
      %v3621 = vpack.c.bf16 %v3615, %v3612
      %v3622 = vld [vmem:[%s401] sm:$0xf]
      %v3623 = vld [vmem:[%s405] sm:$0xff]
      %3625 = vset.pattern.permute.xlu0 0
      %3626 = vperm.xlu0 %3625, %v3623
      %v3627 = vpop.permute.xlu0 %3626
      %v3630 = vsel %vm3495, %v3622, 0
      %3632 = vmatprep.subr.bf16.mxu0 %v3617
      %3633 = vmatpush1.bf16.msra.mxu0 %v3616
      %3634 = vmatprep.subr.bf16.mxu0 %v3620
      %3635 = vmatpush1.bf16.msra.mxu0 %v3619
      %3636 = vmatprep.subr.bf16.mxu0 0
      %3637 = vmatpush1.bf16.msra.mxu0 0
      %3638 = vmatprep.subr.bf16.mxu0 0
      %3639 = vmatpush1.bf16.msra.mxu0 0
      %3640 = vmatprep.subr.bf16.mxu0 0
      %3641 = vmatpush1.bf16.msra.mxu0 0
      %3642 = vmatprep.subr.bf16.mxu0 0
      %3643 = vmatpush1.bf16.msra.mxu0 0
      %3644 = vmatprep.subr.bf16.mxu0 0
      %3645 = vmatpush1.bf16.msra.mxu0 0
      %3646 = vmatprep.subr.bf16.mxu0 0
      %3647 = vmatpush1.bf16.msra.mxu0 0
      %3648 = vmatprep.subr.bf16.mxu0 0
      %3649 = vmatpush1.bf16.msra.mxu0 0
      %3650 = vmatprep.subr.bf16.mxu0 0
      %3651 = vmatpush1.bf16.msra.mxu0 0
      %3652 = vmatprep.subr.bf16.mxu0 0
      %3653 = vmatpush1.bf16.msra.mxu0 0
      %3654 = vmatprep.subr.bf16.mxu0 0
      %3655 = vmatpush1.bf16.msra.mxu0 0
      %3656 = vmatprep.subr.bf16.mxu0 0
      %3657 = vmatpush1.bf16.msra.mxu0 0
      %3658 = vmatprep.subr.bf16.mxu0 0
      %3659 = vmatpush1.bf16.msra.mxu0 0
      %3660 = vmatprep.subr.bf16.mxu0 0
      %3661 = vmatpush1.bf16.msra.mxu0 0
      %3662 = vmatprep.subr.bf16.mxu0 0
      %3663 = vmatpush1.bf16.msra.mxu0 0
      %3664 = vmatprep.mubr.bf16.mxu0 0
      %3665 = vmatmul.mubr.bf16.gmra.mrb[0].mxu0 %v3630
      %v3666 = vpop.f32.mrb[0].mxu0
      %v3667 = vadd.f32 %v3627, %v3666
      %v3668 = vpop.f32.mrb[0].mxu0
      %v3669 = vadd.f32 %v3627, %v3668
      %v3670 = vpop.f32.mrb[0].mxu0
      %v3671 = vpop.f32.mrb[0].mxu0
      %3672 = vdwg.mxu0
      %3673 = vmatprep.subr.bf16.mxu0 0
      %3674 = vmatpush1.bf16.msra.mxu0 %v3618
      %3675 = vmatprep.subr.bf16.mxu0 0
      %3676 = vmatpush1.bf16.msra.mxu0 %v3621
      %3677 = vmatprep.subr.bf16.mxu0 0
      %3678 = vmatpush1.bf16.msra.mxu0 0
      %3679 = vmatprep.subr.bf16.mxu0 0
      %3680 = vmatpush1.bf16.msra.mxu0 0
      %3681 = vmatprep.subr.bf16.mxu0 0
      %3682 = vmatpush1.bf16.msra.mxu0 0
      %3683 = vmatprep.subr.bf16.mxu0 0
      %3684 = vmatpush1.bf16.msra.mxu0 0
      %3685 = vmatprep.subr.bf16.mxu0 0
      %3686 = vmatpush1.bf16.msra.mxu0 0
      %3687 = vmatprep.subr.bf16.mxu0 0
      %3688 = vmatpush1.bf16.msra.mxu0 0
      %3689 = vmatprep.subr.bf16.mxu0 0
      %3690 = vmatpush1.bf16.msra.mxu0 0
      %3691 = vmatprep.subr.bf16.mxu0 0
      %3692 = vmatpush1.bf16.msra.mxu0 0
      %3693 = vmatprep.subr.bf16.mxu0 0
      %3694 = vmatpush1.bf16.msra.mxu0 0
      %3695 = vmatprep.subr.bf16.mxu0 0
      %3696 = vmatpush1.bf16.msra.mxu0 0
      %3697 = vmatprep.subr.bf16.mxu0 0
      %3698 = vmatpush1.bf16.msra.mxu0 0
      %3699 = vmatprep.subr.bf16.mxu0 0
      %3700 = vmatpush1.bf16.msra.mxu0 0
      %3701 = vmatprep.subr.bf16.mxu0 0
      %3702 = vmatpush1.bf16.msra.mxu0 0
      %3703 = vmatprep.subr.bf16.mxu0 0
      %3704 = vmatpush1.bf16.msra.mxu0 0
      %3705 = vmatprep.mubr.bf16.mxu0 0
      %3706 = vmatmul.mubr.bf16.gmra.mrb[0].mxu0 %v3630
      %v3707 = vpop.f32.mrb[0].mxu0
      %v3708 = vadd.f32 %v3627, %v3707
      %v3709 = vpop.f32.mrb[0].mxu0
      %v3710 = vpop.f32.mrb[0].mxu0
      %v3711 = vpop.f32.mrb[0].mxu0
      %3712 = vdwg.mxu0
      %3713 = vst [vmem:[%s414] sm:$0xff] %v3667
      %3714 = vst [vmem:[%s414 + $0x8] sm:$0xff] %v3669
      %3715 = vst [vmem:[%s414 + $0x10] sm:$0xff] %v3708
      %p3716 = scmp.lt.s32.totalorder %s22, 1
      %s3717 = scalar_select %p3716, %s22, 1
      %p3718 = scmp.lt.s32.totalorder %s23, 1
      %s3719 = scalar_select %p3718, %s23, 1
      %s3720 = smul.addr %s3719, 3
      %s3721 = smul.addr %s3717, 6
      %s3722 = sadd.s32 %s3720, %s3721
      %s3723 = smul.addr %s3722, 8
      %s3724 = scalar_lea.vmem %s7, %s3723
      // Predicated region
      $region49: #{forward.1} parent=47 // pred_check
        %p3725 = pneg %p232
      $region50: #{forward.1} parent=47 // pred_check_branch
        %3727 = sbr.rel (%p3725) target = $region52
      $region51: #{forward.1} parent=47 // pred_region
        _
      $region52: #{forward.1} parent=47 // pred_fallthru
        _
    $region48: #{forward.1} parent=5 // pred_fallthru
      _
    %p3728 = scmp.le.s32.totalorder 2, %s13
    // Predicated region
    $region53: #{forward.1} parent=5 // pred_check
      %p3729 = pneg %p3728
    $region54: #{forward.1} parent=5 // pred_check_branch
      %3731 = sbr.rel (%p3729) target = $region56
    $region55: #{forward.1} parent=5 // pred_region
      %s3732 = ssub.s32 %s13, 2
      // Predicated region
      $region57: #{forward.1} parent=55 // pred_check
        %p3733 = pneg %p238
      $region58: #{forward.1} parent=55 // pred_check_branch
        %3735 = sbr.rel (%p3733) target = $region60
      $region59: #{forward.1} parent=55 // pred_region
        %p3736 = scmp.lt.s32.totalorder %s24, 1
        %s3737 = scalar_select %p3736, %s24, 1
        %p3738 = scmp.lt.s32.totalorder %s25, 1
        %s3739 = scalar_select %p3738, %s25, 1
        %s3740 = smul.addr %s3739, 3
        %s3741 = smul.addr %s3737, 6
        %s3742 = sadd.s32 %s3740, %s3741
        %s3743 = smul.addr %s3742, 8
        %s3744 = scalar_lea.vmem %s7, %s3743
      $region60: #{forward.1} parent=55 // pred_fallthru
        _
    $region56: #{forward.1} parent=5 // pred_fallthru
      _
  $region6: #{forward.1} parent=0 // loop_footer
    %s17 = sadd.s32 1, %s13
  $region7: #{forward.1} parent=0 // loop_footer_branch
    %12 = sbr.rel target = $region3
  $region8: #{forward.1} parent=0 // loop_exit
    _

</llo_original>
